<compile_context>
chip_gen: v5e
topology: v5e:2x2
jax: 0.10.0
libtpu: 0.0.40
codegen_flags: <defaults>
</compile_context>

<pallas_src>
import math
import functools

import jax
import jax.numpy as jnp
from jax.experimental import pallas as pl
from jax.experimental.pallas import tpu as pltpu


_LN_EPS = 1e-5
_GELU_C = math.sqrt(2.0 / math.pi)


def _layer_norm_f32(y, gamma, beta):
    mean = jnp.mean(y, axis=-1, keepdims=True)
    var = jnp.mean(jnp.square(y - mean), axis=-1, keepdims=True)
    inv = jax.lax.rsqrt(var + _LN_EPS)
    return (y - mean) * inv * gamma + beta


def _gelu_tanh(x):
    # tanh-approximate GELU (transcendental goes to the EUP slot).
    # TODO(synk): PyTorch F.gelu defaults to exact erf-GELU; the tanh form
    # differs by <~1e-3.  Swap in lax.erf if bit-closer numerics are needed.
    return 0.5 * x * (1.0 + jnp.tanh(_GELU_C * (x + 0.044715 * x * x * x)))


@functools.lru_cache(maxsize=1)
def _vmem_capacity_bytes():
    """Per-TensorCore VMEM capacity (64 MiB on v7x, 128 MiB on v5e/v6e)."""
    try:
        cap = getattr(pltpu.get_tpu_info(), "vmem_capacity_bytes", None)
        if cap:
            return int(cap)
    except Exception:
        pass
    try:
        if "v7" in jax.devices()[0].device_kind.lower():
            return 64 << 20
    except Exception:
        pass
    return 128 << 20


def _divisor_tile(total, target, unit):
    """Largest power-of-two tile <= target that divides `total` and is a
    multiple of `unit`; falls back to `total` (no tiling)."""
    if total <= target:
        return total
    c = target
    while c >= unit:
        if total % c == 0:
            return c
        c //= 2
    return total


def _make_block_kernel(num_heads, head_dim, hidden_dim, seq_len, tq, tkv):
    h, d, H, S = num_heads, head_dim, hidden_dim, seq_len
    nkv = S // tkv

    def kernel(x_ref, q_ref, k_ref, v_ref, mb_ref,
               wo_ref, bo_ref, g1_ref, be1_ref,
               w1_ref, fb1_ref, w2_ref, fb2_ref,
               g2_ref, be2_ref,
               o_ref,
               y_scr, ybf_scr, acc_scr):
        f = pl.program_id(2)
        nf = pl.num_programs(2)

        # ---- f == 0: attention on this row tile + residual + LayerNorm1 ----
        @pl.when(f == 0)
        def _attention():
            q = q_ref[0]                                   # (h, tq, d) bf16

            if nkv == 1:
                # Whole sequence fits in one K tile: direct softmax.
                s = jnp.einsum('hqd,hkd->hqk', q, k_ref[0],
                               preferred_element_type=jnp.float32)
                # additive mask bias: 0 keep / -1e9 masked (== masked_fill)
                s = s + mb_ref[0][None, :, :]
                m = jnp.max(s, axis=-1, keepdims=True)
                p = jnp.exp(s - m)
                l_i = jnp.sum(p, axis=-1, keepdims=True)
                acc = jnp.einsum('hqk,hkd->hqd', p.astype(jnp.bfloat16),
                                 v_ref[0], preferred_element_type=jnp.float32)
            else:
                # Flash-style online softmax over K tiles of size tkv
                # (tkv is a multiple of 128, so slices are lane-aligned).
                def kv_step(i, carry):
                    m_i, l_i, acc = carry
                    k0 = pl.multiple_of(i * tkv, tkv)
                    k_t = k_ref[0, :, pl.ds(k0, tkv), :]   # (h, tkv, d)
                    v_t = v_ref[0, :, pl.ds(k0, tkv), :]
                    s = jnp.einsum('hqd,hkd->hqk', q, k_t,
                                   preferred_element_type=jnp.float32)
                    s = s + mb_ref[0, :, pl.ds(k0, tkv)][None, :, :]
                    m_new = jnp.maximum(m_i, jnp.max(s, axis=-1, keepdims=True))
                    alpha = jnp.exp(m_i - m_new)
                    p = jnp.exp(s - m_new)
                    l_new = alpha * l_i + jnp.sum(p, axis=-1, keepdims=True)
                    acc_new = alpha * acc + jnp.einsum(
                        'hqk,hkd->hqd', p.astype(jnp.bfloat16), v_t,
                        preferred_element_type=jnp.float32)
                    return m_new, l_new, acc_new

                init = (jnp.full((h, tq, 1), -1e30, jnp.float32),
                        jnp.zeros((h, tq, 1), jnp.float32),
                        jnp.zeros((h, tq, d), jnp.float32))
                _, l_i, acc = jax.lax.fori_loop(0, nkv, kv_step, init,
                                                unroll=nkv <= 8)

            # attention dropout: identity (eval mode)
            ctx = (acc * pl.reciprocal(l_i, approx=True)).astype(jnp.bfloat16)

            # Output projection: per-head (tq, d) @ (d, H) accumulation; Wo is
            # shipped head-major so no lane-splitting reshape is needed.
            attn_out = jnp.zeros((tq, H), jnp.float32)
            for head in range(h):
                attn_out = attn_out + jnp.dot(
                    ctx[head], wo_ref[head], preferred_element_type=jnp.float32)
            attn_out = attn_out + bo_ref[...]
            # attn-output dropout: identity (eval mode)

            x_q = x_ref[0].astype(jnp.float32)             # (tq, H) residual
            y = _layer_norm_f32(x_q + attn_out, g1_ref[...], be1_ref[...])
            y_scr[...] = y
            ybf_scr[...] = y.astype(jnp.bfloat16)          # cached bf16 copy
            acc_scr[...] = jnp.zeros((tq, H), jnp.float32)

        # ---- every f step: one F-tile of the MLP ----
        h1 = jnp.dot(ybf_scr[...], w1_ref[...],
                     preferred_element_type=jnp.float32) + fb1_ref[...]
        h1 = _gelu_tanh(h1)                                # MLP dropout: identity
        acc_scr[...] += jnp.dot(h1.astype(jnp.bfloat16), w2_ref[...],
                                preferred_element_type=jnp.float32)

        # ---- last f step: fc2 bias + residual + LayerNorm2 -> output ----
        @pl.when(f == nf - 1)
        def _finalize():
            out = _layer_norm_f32(y_scr[...] + acc_scr[...] + fb2_ref[...],
                                  g2_ref[...], be2_ref[...])
            o_ref[0] = out.astype(o_ref.dtype)

    return kernel


def transformer_block(x, mask_bias, p, *, num_heads):
    """x: (B, S, H) f32, mask_bias: (B, 1, S) f32 additive bias (0 / -1e9)."""
    B, S, H = x.shape
    F = p['w1'].shape[1]
    h = num_heads
    d = H // h

    # ---- generation-aware tiles / VMEM budget ------------------------------
    small_vmem = _vmem_capacity_bytes() <= (64 << 20) + (1 << 20)   # v7x
    if small_vmem:
        tq = _divisor_tile(S, 128, 8)
        tf = _divisor_tile(F, 512, 128)
        cap = 48 << 20
    else:                                                           # v5e / v6e
        tq = _divisor_tile(S, 512, 8)
        tf = _divisor_tile(F, 1024, 128)
        cap = 100 << 20
    tkv = _divisor_tile(S, 512, 128)          # multiple of 128 or full S

    # megacore balance: keep B * nq even so both v7x TensorCores get work
    if B == 1 and (S // tq) % 2 == 1 and tq % 16 == 0:
        tq //= 2

    def vmem_need(tq_):
        bf2, f4 = 2, 4
        d_pad = max(d, 128)                      # lane padding of (.., d) bufs
        kv_blk = h * S * d_pad * bf2             # one K or V block
        tiles = (tq_ * H * bf2 + h * tq_ * d_pad * bf2 + 2 * kv_blk
                 + H * tf * bf2 + tf * H * bf2 + tf * f4)
        consts = h * d * H * bf2 + 6 * H * f4 + S * f4
        out_t = tq_ * H * f4
        scr = tq_ * H * (2 * f4 + bf2)
        tmp = (2 * h * tq_ * tkv * f4 + h * tq_ * (d_pad + 2) * f4
               + 2 * tq_ * tf * f4 + 4 * tq_ * H * f4)
        return 2 * (tiles + consts + out_t) + scr + tmp + (4 << 20)

    need = vmem_need(tq)
    while need > cap and tq % 16 == 0 and tq > 8:
        tq //= 2
        need = vmem_need(tq)
    nq = S // tq
    nf = F // tf
    vmem_limit = int(min(max(need, 32 << 20), cap))

    # ---- hoisted fused QKV projection (plain XLA GEMM, once per layer;
    #      1/sqrt(d) already folded into the q columns by prepare_layer) -----
    x_bf = x.astype(jnp.bfloat16)
    qkv = jnp.dot(x_bf, p['wqkv'], preferred_element_type=jnp.float32) + p['bqkv']
    q, k, v = jnp.split(qkv, 3, axis=-1)

    def head_major(t):                      # (B, S, H) -> (B, h, S, d) bf16
        return t.reshape(B, S, h, d).transpose(0, 2, 1, 3).astype(jnp.bfloat16)

    q, k, v = head_major(q), head_major(k), head_major(v)

    kernel = _make_block_kernel(h, d, H, S, tq, tkv)

    def const2d(shape):
        return pl.BlockSpec(shape, lambda b, qi, f: (0, 0))

    # NOTE: after the QKV hoist the only sizable grid-invariant block is Wo
    # (h*d*H bf16); pl.Buffered(1) on the constant blocks would shave a couple
    # of MiB but is not needed to fit the per-generation budgets above.
    in_specs = [
        pl.BlockSpec((1, tq, H), lambda b, qi, f: (b, qi, 0)),         # x tile (bf16)
        pl.BlockSpec((1, h, tq, d), lambda b, qi, f: (b, 0, qi, 0)),   # q tile
        pl.BlockSpec((1, h, S, d), lambda b, qi, f: (b, 0, 0, 0)),     # k (full seq)
        pl.BlockSpec((1, h, S, d), lambda b, qi, f: (b, 0, 0, 0)),     # v (full seq)
        pl.BlockSpec((1, 1, S), lambda b, qi, f: (b, 0, 0)),           # mask bias
        pl.BlockSpec((h, d, H), lambda b, qi, f: (0, 0, 0)),           # Wo head-major
        const2d((1, H)),                                               # bo
        const2d((1, H)), const2d((1, H)),                              # LN1 gamma/beta
        pl.BlockSpec((H, tf), lambda b, qi, f: (0, f)),                # fc1 W tile
        pl.BlockSpec((1, tf), lambda b, qi, f: (0, f)),                # fc1 b tile
        pl.BlockSpec((tf, H), lambda b, qi, f: (f, 0)),                # fc2 W tile
        const2d((1, H)),                                               # fc2 b
        const2d((1, H)), const2d((1, H)),                              # LN2 gamma/beta
    ]

    return pl.pallas_call(
        kernel,
        out_shape=jax.ShapeDtypeStruct((B, S, H), jnp.float32),
        grid_spec=pltpu.PrefetchScalarGridSpec(
            num_scalar_prefetch=0,
            grid=(B, nq, nf),
            in_specs=in_specs,
            out_specs=pl.BlockSpec((1, tq, H), lambda b, qi, f: (b, qi, 0)),
            scratch_shapes=[pltpu.VMEM((tq, H), jnp.float32),    # y (post-LN1)
                            pltpu.VMEM((tq, H), jnp.bfloat16),   # y bf16 cache
                            pltpu.VMEM((tq, H), jnp.float32)],   # fc2 accumulator
        ),
        compiler_params=pltpu.CompilerParams(
            dimension_semantics=("parallel", "parallel", "arbitrary"),
            vmem_limit_bytes=vmem_limit),
    )(x_bf, q, k, v, mask_bias,
      p['wo_hm'], p['bo'], p['g1'], p['be1'],
      p['w1'], p['fb1'], p['w2'], p['fb2'],
      p['g2'], p['be2'])


@functools.partial(jax.jit, static_argnames=("num_heads",))
def decoder_forward(x, mask, layer_params, *, num_heads):
    # additive mask bias: 0 where keep, -1e9 where masked (== masked_fill)
    mask_bias = ((mask - 1.0) * 1e9).astype(jnp.float32)
    for p in layer_params:
        x = transformer_block(x, mask_bias, p, num_heads=num_heads)
    return x


def init_params(key, hidden_dim, ff_dim):
    H, F = hidden_dim, ff_dim
    keys = jax.random.split(key, 6)

    def lin(k, fan_in, fan_out):
        # weights stored already transposed to (in, out) so the kernel
        # computes x @ W (PyTorch Linear computes x @ W.T).
        bound = 1.0 / math.sqrt(fan_in)
        kw, kb = jax.random.split(k)
        w = jax.random.uniform(kw, (fan_in, fan_out), jnp.float32, -bound, bound)
        b = jax.random.uniform(kb, (1, fan_out), jnp.float32, -bound, bound)
        return w, b

    wq, bq = lin(keys[0], H, H)
    wk, bk = lin(keys[1], H, H)
    wv, bv = lin(keys[2], H, H)
    wo, bo = lin(keys[3], H, H)
    w1, fb1 = lin(keys[4], H, F)
    w2, fb2 = lin(keys[5], F, H)
    return dict(
        wq=wq, bq=bq, wk=wk, bk=bk, wv=wv, bv=bv, wo=wo, bo=bo,
        g1=jnp.ones((1, H), jnp.float32), be1=jnp.zeros((1, H), jnp.float32),
        w1=w1, fb1=fb1, w2=w2, fb2=fb2,
        g2=jnp.ones((1, H), jnp.float32), be2=jnp.zeros((1, H), jnp.float32),
    )


def prepare_layer(params, num_heads):
    """Fuse Wq/Wk/Wv, fold 1/sqrt(d) into the q columns, cast weights to bf16,
    reshape Wo to head-major (h, d, H)."""
    H = params['wq'].shape[0]
    d = H // num_heads
    scale = 1.0 / math.sqrt(d)
    wqkv = jnp.concatenate([params['wq'] * scale, params['wk'], params['wv']],
                           axis=1)
    bqkv = jnp.concatenate([params['bq'] * scale, params['bk'], params['bv']],
                           axis=1)
    return dict(
        wqkv=wqkv.astype(jnp.bfloat16), bqkv=bqkv.astype(jnp.float32),
        wo_hm=params['wo'].astype(jnp.bfloat16).reshape(num_heads, d, H),
        bo=params['bo'],
        g1=params['g1'], be1=params['be1'],
        w1=params['w1'].astype(jnp.bfloat16), fb1=params['fb1'],
        w2=params['w2'].astype(jnp.bfloat16), fb2=params['fb2'],
        g2=params['g2'], be2=params['be2'],
    )


if __name__ == "__main__":
    B, S, H, FF, NHEADS, NLAYERS = 2, 8, 32, 64, 4, 2

    key = jax.random.PRNGKey(0)
    kx, kp = jax.random.split(key)

    x = jax.random.normal(kx, (B, S, H), jnp.float32)
    # key-padding-style mask: last two positions of batch 1 are masked out
    mask = jnp.ones((B, 1, S), jnp.float32)
    mask = mask.at[1, 0, S - 2:].set(0.0)

    layer_keys = jax.random.split(kp, NLAYERS)
    layer_params = tuple(prepare_layer(init_params(k, H, FF), NHEADS)
                         for k in layer_keys)

    out = decoder_forward(x, mask, layer_params, num_heads=NHEADS)
    out = jax.block_until_ready(out)
    assert out.shape == (B, S, H) and bool(jnp.all(jnp.isfinite(out)))
    print("KERNEL_OK")
</pallas_src>

<mosaic_0001>
module attributes {stable_mosaic.version = 11 : i64} {
  func.func @kernel(%arg0: i32, %arg1: i32, %arg2: i32, %arg3: memref<1x8x32xbf16, #tpu.memory_space<vmem>>, %arg4: memref<1x4x8x8xbf16, #tpu.memory_space<vmem>>, %arg5: memref<1x4x8x8xbf16, #tpu.memory_space<vmem>>, %arg6: memref<1x4x8x8xbf16, #tpu.memory_space<vmem>>, %arg7: memref<1x1x8xf32, #tpu.memory_space<vmem>>, %arg8: memref<4x8x32xbf16, #tpu.memory_space<vmem>>, %arg9: memref<1x32xf32, #tpu.memory_space<vmem>>, %arg10: memref<1x32xf32, #tpu.memory_space<vmem>>, %arg11: memref<1x32xf32, #tpu.memory_space<vmem>>, %arg12: memref<32x64xbf16, #tpu.memory_space<vmem>>, %arg13: memref<1x64xf32, #tpu.memory_space<vmem>>, %arg14: memref<64x32xbf16, #tpu.memory_space<vmem>>, %arg15: memref<1x32xf32, #tpu.memory_space<vmem>>, %arg16: memref<1x32xf32, #tpu.memory_space<vmem>>, %arg17: memref<1x32xf32, #tpu.memory_space<vmem>>, %arg18: memref<1x8x32xf32, #tpu.memory_space<vmem>>, %arg19: memref<8x32xf32, #tpu.memory_space<vmem>>, %arg20: memref<8x32xbf16, #tpu.memory_space<vmem>>, %arg21: memref<8x32xf32, #tpu.memory_space<vmem>>) attributes {dimension_semantics = [#tpu.dimension_semantics<parallel>, #tpu.dimension_semantics<parallel>, #tpu.dimension_semantics<arbitrary>], iteration_bounds = array<i64: 2, 1, 1>, scalar_prefetch = 0 : i64, scratch_operands = 3 : i64, tpu.core_type = #tpu.core_type<tc>, window_params = [{transform_indices = @transform_0, window_bounds = array<i64: 1, 8, 32>}, {transform_indices = @transform_1, window_bounds = array<i64: 1, 4, 8, 8>}, {transform_indices = @transform_2, window_bounds = array<i64: 1, 4, 8, 8>}, {transform_indices = @transform_3, window_bounds = array<i64: 1, 4, 8, 8>}, {transform_indices = @transform_4, window_bounds = array<i64: 1, 1, 8>}, {pipeline_mode = #tpu.pipeline_mode<synchronous>, transform_indices = @transform_5, window_bounds = array<i64: 4, 8, 32>}, {pipeline_mode = #tpu.pipeline_mode<synchronous>, transform_indices = @transform_6, window_bounds = array<i64: 1, 32>}, {pipeline_mode = #tpu.pipeline_mode<synchronous>, transform_indices = @transform_7, window_bounds = array<i64: 1, 32>}, {pipeline_mode = #tpu.pipeline_mode<synchronous>, transform_indices = @transform_8, window_bounds = array<i64: 1, 32>}, {transform_indices = @transform_9, window_bounds = array<i64: 32, 64>}, {transform_indices = @transform_10, window_bounds = array<i64: 1, 64>}, {transform_indices = @transform_11, window_bounds = array<i64: 64, 32>}, {pipeline_mode = #tpu.pipeline_mode<synchronous>, transform_indices = @transform_12, window_bounds = array<i64: 1, 32>}, {pipeline_mode = #tpu.pipeline_mode<synchronous>, transform_indices = @transform_13, window_bounds = array<i64: 1, 32>}, {pipeline_mode = #tpu.pipeline_mode<synchronous>, transform_indices = @transform_14, window_bounds = array<i64: 1, 32>}, {transform_indices = @transform_15, window_bounds = array<i64: 1, 8, 32>}]} {
    %c0_i32 = arith.constant 0 : i32
    %0 = arith.cmpi eq, %arg2, %c0_i32 : i32
    %1 = arith.extui %0 : i1 to i32
    %c0_i32_0 = arith.constant 0 : i32
    %2 = arith.cmpi ne, %1, %c0_i32_0 : i32
    scf.if %2 {
      %c0_19 = arith.constant 0 : index
      %c0_20 = arith.constant 0 : index
      %c0_21 = arith.constant 0 : index
      %c0_22 = arith.constant 0 : index
      %31 = vector.load %arg4[%c0_19, %c0_20, %c0_21, %c0_22] : memref<1x4x8x8xbf16, #tpu.memory_space<vmem>>, vector<1x4x8x8xbf16>
      %32 = vector.shape_cast %31 : vector<1x4x8x8xbf16> to vector<4x8x8xbf16>
      %c0_23 = arith.constant 0 : index
      %c0_24 = arith.constant 0 : index
      %c0_25 = arith.constant 0 : index
      %c0_26 = arith.constant 0 : index
      %33 = vector.load %arg5[%c0_23, %c0_24, %c0_25, %c0_26] : memref<1x4x8x8xbf16, #tpu.memory_space<vmem>>, vector<1x4x8x8xbf16>
      %34 = vector.shape_cast %33 : vector<1x4x8x8xbf16> to vector<4x8x8xbf16>
      "tpu.trace_start"() <{level = 10 : i32, message = "hqd,hkd->hqk"}> : () -> ()
      %cst_27 = arith.constant dense<0.000000e+00> : vector<4x8x8xf32>
      %35 = tpu.matmul %32, %34, %cst_27 {dimension_numbers = #tpu.dot_dimension_numbers<[2], [2], [1], [1], [0, 0, 0, 1, 1, 1], [0], [0]>} : vector<4x8x8xbf16>, vector<4x8x8xbf16>, vector<4x8x8xf32> -> vector<4x8x8xf32>
      "tpu.trace_stop"() : () -> ()
      %c0_28 = arith.constant 0 : index
      %c0_29 = arith.constant 0 : index
      %c0_30 = arith.constant 0 : index
      %36 = vector.load %arg7[%c0_28, %c0_29, %c0_30] : memref<1x1x8xf32, #tpu.memory_space<vmem>>, vector<1x1x8xf32>
      %37 = vector.shape_cast %36 : vector<1x1x8xf32> to vector<1x8xf32>
      %38 = vector.shape_cast %37 : vector<1x8xf32> to vector<1x1x8xf32>
      %39 = vector.broadcast %38 : vector<1x1x8xf32> to vector<4x8x8xf32>
      %40 = arith.addf %35, %39 : vector<4x8x8xf32>
      %cst_31 = arith.constant dense<0xFF800000> : vector<4x8xf32>
      %41 = vector.multi_reduction <maximumf>, %40, %cst_31 [2] : vector<4x8x8xf32> to vector<4x8xf32>
      %42 = vector.shape_cast %41 : vector<4x8xf32> to vector<4x8x1xf32>
      %43 = vector.broadcast %42 : vector<4x8x1xf32> to vector<4x8x8xf32>
      %44 = arith.subf %40, %43 : vector<4x8x8xf32>
      %45 = math.exp %44 : vector<4x8x8xf32>
      %cst_32 = arith.constant dense<0.000000e+00> : vector<4x8xf32>
      %46 = vector.multi_reduction <add>, %45, %cst_32 [2] : vector<4x8x8xf32> to vector<4x8xf32>
      %47 = vector.shape_cast %46 : vector<4x8xf32> to vector<4x8x1xf32>
      %48 = arith.truncf %45 : vector<4x8x8xf32> to vector<4x8x8xbf16>
      %c0_33 = arith.constant 0 : index
      %c0_34 = arith.constant 0 : index
      %c0_35 = arith.constant 0 : index
      %c0_36 = arith.constant 0 : index
      %49 = vector.load %arg6[%c0_33, %c0_34, %c0_35, %c0_36] : memref<1x4x8x8xbf16, #tpu.memory_space<vmem>>, vector<1x4x8x8xbf16>
      %50 = vector.shape_cast %49 : vector<1x4x8x8xbf16> to vector<4x8x8xbf16>
      "tpu.trace_start"() <{level = 10 : i32, message = "hqk,hkd->hqd"}> : () -> ()
      %cst_37 = arith.constant dense<0.000000e+00> : vector<4x8x8xf32>
      %51 = tpu.matmul %48, %50, %cst_37 {dimension_numbers = #tpu.dot_dimension_numbers<[2], [1], [1], [2], [0, 0, 0, 1, 1, 2], [0], [0]>} : vector<4x8x8xbf16>, vector<4x8x8xbf16>, vector<4x8x8xf32> -> vector<4x8x8xf32>
      "tpu.trace_stop"() : () -> ()
      %52 = tpu.reciprocal %47 {approx = true} : vector<4x8x1xf32> -> vector<4x8x1xf32>
      %53 = vector.broadcast %52 : vector<4x8x1xf32> to vector<4x8x8xf32>
      %54 = arith.mulf %51, %53 : vector<4x8x8xf32>
      %55 = arith.truncf %54 : vector<4x8x8xf32> to vector<4x8x8xbf16>
      %cst_38 = arith.constant 0.000000e+00 : f32
      %56 = vector.broadcast %cst_38 : f32 to vector<8x32xf32>
      %57 = vector.extract_strided_slice %55 {offsets = [0, 0, 0], sizes = [1, 8, 8], strides = [1, 1, 1]} : vector<4x8x8xbf16> to vector<1x8x8xbf16>
      %58 = vector.shape_cast %57 : vector<1x8x8xbf16> to vector<8x8xbf16>
      %c0_39 = arith.constant 0 : index
      %c0_40 = arith.constant 0 : index
      %c0_41 = arith.constant 0 : index
      %59 = vector.load %arg8[%c0_39, %c0_40, %c0_41] : memref<4x8x32xbf16, #tpu.memory_space<vmem>>, vector<1x8x32xbf16>
      %60 = vector.shape_cast %59 : vector<1x8x32xbf16> to vector<8x32xbf16>
      %cst_42 = arith.constant dense<0.000000e+00> : vector<8x32xf32>
      %61 = tpu.matmul %58, %60, %cst_42 {dimension_numbers = #tpu.dot_dimension_numbers<[1], [0], [0], [1], [0, 0, 1, 1], [], []>} : vector<8x8xbf16>, vector<8x32xbf16>, vector<8x32xf32> -> vector<8x32xf32>
      %62 = arith.addf %56, %61 : vector<8x32xf32>
      %63 = vector.extract_strided_slice %55 {offsets = [1, 0, 0], sizes = [1, 8, 8], strides = [1, 1, 1]} : vector<4x8x8xbf16> to vector<1x8x8xbf16>
      %64 = vector.shape_cast %63 : vector<1x8x8xbf16> to vector<8x8xbf16>
      %c1 = arith.constant 1 : index
      %c0_43 = arith.constant 0 : index
      %c0_44 = arith.constant 0 : index
      %65 = vector.load %arg8[%c1, %c0_43, %c0_44] : memref<4x8x32xbf16, #tpu.memory_space<vmem>>, vector<1x8x32xbf16>
      %66 = vector.shape_cast %65 : vector<1x8x32xbf16> to vector<8x32xbf16>
      %cst_45 = arith.constant dense<0.000000e+00> : vector<8x32xf32>
      %67 = tpu.matmul %64, %66, %cst_45 {dimension_numbers = #tpu.dot_dimension_numbers<[1], [0], [0], [1], [0, 0, 1, 1], [], []>} : vector<8x8xbf16>, vector<8x32xbf16>, vector<8x32xf32> -> vector<8x32xf32>
      %68 = arith.addf %62, %67 : vector<8x32xf32>
      %69 = vector.extract_strided_slice %55 {offsets = [2, 0, 0], sizes = [1, 8, 8], strides = [1, 1, 1]} : vector<4x8x8xbf16> to vector<1x8x8xbf16>
      %70 = vector.shape_cast %69 : vector<1x8x8xbf16> to vector<8x8xbf16>
      %c2 = arith.constant 2 : index
      %c0_46 = arith.constant 0 : index
      %c0_47 = arith.constant 0 : index
      %71 = vector.load %arg8[%c2, %c0_46, %c0_47] : memref<4x8x32xbf16, #tpu.memory_space<vmem>>, vector<1x8x32xbf16>
      %72 = vector.shape_cast %71 : vector<1x8x32xbf16> to vector<8x32xbf16>
      %cst_48 = arith.constant dense<0.000000e+00> : vector<8x32xf32>
      %73 = tpu.matmul %70, %72, %cst_48 {dimension_numbers = #tpu.dot_dimension_numbers<[1], [0], [0], [1], [0, 0, 1, 1], [], []>} : vector<8x8xbf16>, vector<8x32xbf16>, vector<8x32xf32> -> vector<8x32xf32>
      %74 = arith.addf %68, %73 : vector<8x32xf32>
      %75 = vector.extract_strided_slice %55 {offsets = [3, 0, 0], sizes = [1, 8, 8], strides = [1, 1, 1]} : vector<4x8x8xbf16> to vector<1x8x8xbf16>
      %76 = vector.shape_cast %75 : vector<1x8x8xbf16> to vector<8x8xbf16>
      %c3 = arith.constant 3 : index
      %c0_49 = arith.constant 0 : index
      %c0_50 = arith.constant 0 : index
      %77 = vector.load %arg8[%c3, %c0_49, %c0_50] : memref<4x8x32xbf16, #tpu.memory_space<vmem>>, vector<1x8x32xbf16>
      %78 = vector.shape_cast %77 : vector<1x8x32xbf16> to vector<8x32xbf16>
      %cst_51 = arith.constant dense<0.000000e+00> : vector<8x32xf32>
      %79 = tpu.matmul %76, %78, %cst_51 {dimension_numbers = #tpu.dot_dimension_numbers<[1], [0], [0], [1], [0, 0, 1, 1], [], []>} : vector<8x8xbf16>, vector<8x32xbf16>, vector<8x32xf32> -> vector<8x32xf32>
      %80 = arith.addf %74, %79 : vector<8x32xf32>
      %c0_52 = arith.constant 0 : index
      %c0_53 = arith.constant 0 : index
      %81 = vector.load %arg9[%c0_52, %c0_53] : memref<1x32xf32, #tpu.memory_space<vmem>>, vector<1x32xf32>
      %82 = vector.broadcast %81 : vector<1x32xf32> to vector<8x32xf32>
      %83 = arith.addf %80, %82 : vector<8x32xf32>
      %c0_54 = arith.constant 0 : index
      %c0_55 = arith.constant 0 : index
      %c0_56 = arith.constant 0 : index
      %84 = vector.load %arg3[%c0_54, %c0_55, %c0_56] : memref<1x8x32xbf16, #tpu.memory_space<vmem>>, vector<1x8x32xbf16>
      %85 = vector.shape_cast %84 : vector<1x8x32xbf16> to vector<8x32xbf16>
      %86 = arith.extf %85 : vector<8x32xbf16> to vector<8x32xf32>
      %87 = arith.addf %86, %83 : vector<8x32xf32>
      %c0_57 = arith.constant 0 : index
      %c0_58 = arith.constant 0 : index
      %88 = vector.load %arg10[%c0_57, %c0_58] : memref<1x32xf32, #tpu.memory_space<vmem>>, vector<1x32xf32>
      %c0_59 = arith.constant 0 : index
      %c0_60 = arith.constant 0 : index
      %89 = vector.load %arg11[%c0_59, %c0_60] : memref<1x32xf32, #tpu.memory_space<vmem>>, vector<1x32xf32>
      %cst_61 = arith.constant dense<0.000000e+00> : vector<8xf32>
      %90 = vector.multi_reduction <add>, %87, %cst_61 [1] : vector<8x32xf32> to vector<8xf32>
      %91 = vector.shape_cast %90 : vector<8xf32> to vector<8x1xf32>
      %cst_62 = arith.constant 3.200000e+01 : f32
      %92 = vector.broadcast %cst_62 : f32 to vector<8x1xf32>
      %93 = arith.divf %91, %92 : vector<8x1xf32>
      %94 = vector.broadcast %93 : vector<8x1xf32> to vector<8x32xf32>
      %95 = arith.subf %87, %94 : vector<8x32xf32>
      %96 = arith.mulf %95, %95 : vector<8x32xf32>
      %cst_63 = arith.constant dense<0.000000e+00> : vector<8xf32>
      %97 = vector.multi_reduction <add>, %96, %cst_63 [1] : vector<8x32xf32> to vector<8xf32>
      %98 = vector.shape_cast %97 : vector<8xf32> to vector<8x1xf32>
      %cst_64 = arith.constant 3.200000e+01 : f32
      %99 = vector.broadcast %cst_64 : f32 to vector<8x1xf32>
      %100 = arith.divf %98, %99 : vector<8x1xf32>
      %cst_65 = arith.constant 9.99999974E-6 : f32
      %101 = vector.broadcast %cst_65 : f32 to vector<8x1xf32>
      %102 = arith.addf %100, %101 : vector<8x1xf32>
      %103 = math.rsqrt %102 : vector<8x1xf32>
      %104 = vector.broadcast %93 : vector<8x1xf32> to vector<8x32xf32>
      %105 = arith.subf %87, %104 : vector<8x32xf32>
      %106 = vector.broadcast %103 : vector<8x1xf32> to vector<8x32xf32>
      %107 = arith.mulf %105, %106 : vector<8x32xf32>
      %108 = vector.broadcast %88 : vector<1x32xf32> to vector<8x32xf32>
      %109 = arith.mulf %107, %108 : vector<8x32xf32>
      %110 = vector.broadcast %89 : vector<1x32xf32> to vector<8x32xf32>
      %111 = arith.addf %109, %110 : vector<8x32xf32>
      %c0_66 = arith.constant 0 : index
      %c0_67 = arith.constant 0 : index
      %112 = vector.load %arg19[%c0_66, %c0_67] : memref<8x32xf32, #tpu.memory_space<vmem>>, vector<8x32xf32>
      tpu.vector_store %arg19[%c0_66, %c0_67], %111 {strides = array<i32>} : memref<8x32xf32, #tpu.memory_space<vmem>>, vector<8x32xf32>,
      %113 = arith.truncf %111 : vector<8x32xf32> to vector<8x32xbf16>
      %c0_68 = arith.constant 0 : index
      %c0_69 = arith.constant 0 : index
      %114 = vector.load %arg20[%c0_68, %c0_69] : memref<8x32xbf16, #tpu.memory_space<vmem>>, vector<8x32xbf16>
      tpu.vector_store %arg20[%c0_68, %c0_69], %113 {strides = array<i32>} : memref<8x32xbf16, #tpu.memory_space<vmem>>, vector<8x32xbf16>,
      %cst_70 = arith.constant 0.000000e+00 : f32
      %115 = vector.broadcast %cst_70 : f32 to vector<8x32xf32>
      %c0_71 = arith.constant 0 : index
      %c0_72 = arith.constant 0 : index
      %116 = vector.load %arg21[%c0_71, %c0_72] : memref<8x32xf32, #tpu.memory_space<vmem>>, vector<8x32xf32>
      tpu.vector_store %arg21[%c0_71, %c0_72], %115 {strides = array<i32>} : memref<8x32xf32, #tpu.memory_space<vmem>>, vector<8x32xf32>,
    } else {
    }
    %c0 = arith.constant 0 : index
    %c0_1 = arith.constant 0 : index
    %3 = vector.load %arg20[%c0, %c0_1] : memref<8x32xbf16, #tpu.memory_space<vmem>>, vector<8x32xbf16>
    %c0_2 = arith.constant 0 : index
    %c0_3 = arith.constant 0 : index
    %4 = vector.load %arg12[%c0_2, %c0_3] : memref<32x64xbf16, #tpu.memory_space<vmem>>, vector<32x64xbf16>
    %cst = arith.constant dense<0.000000e+00> : vector<8x64xf32>
    %5 = tpu.matmul %3, %4, %cst {dimension_numbers = #tpu.dot_dimension_numbers<[1], [0], [0], [1], [0, 0, 1, 1], [], []>} : vector<8x32xbf16>, vector<32x64xbf16>, vector<8x64xf32> -> vector<8x64xf32>
    %c0_4 = arith.constant 0 : index
    %c0_5 = arith.constant 0 : index
    %6 = vector.load %arg13[%c0_4, %c0_5] : memref<1x64xf32, #tpu.memory_space<vmem>>, vector<1x64xf32>
    %7 = vector.broadcast %6 : vector<1x64xf32> to vector<8x64xf32>
    %8 = arith.addf %5, %7 : vector<8x64xf32>
    %cst_6 = arith.constant 5.000000e-01 : f32
    %9 = vector.broadcast %cst_6 : f32 to vector<8x64xf32>
    %10 = arith.mulf %9, %8 : vector<8x64xf32>
    %cst_7 = arith.constant 4.471500e-02 : f32
    %11 = vector.broadcast %cst_7 : f32 to vector<8x64xf32>
    %12 = arith.mulf %11, %8 : vector<8x64xf32>
    %13 = arith.mulf %12, %8 : vector<8x64xf32>
    %14 = arith.mulf %13, %8 : vector<8x64xf32>
    %15 = arith.addf %8, %14 : vector<8x64xf32>
    %cst_8 = arith.constant 0.797884583 : f32
    %16 = vector.broadcast %cst_8 : f32 to vector<8x64xf32>
    %17 = arith.mulf %16, %15 : vector<8x64xf32>
    %18 = math.tanh %17 : vector<8x64xf32>
    %cst_9 = arith.constant 1.000000e+00 : f32
    %19 = vector.broadcast %cst_9 : f32 to vector<8x64xf32>
    %20 = arith.addf %19, %18 : vector<8x64xf32>
    %21 = arith.mulf %10, %20 : vector<8x64xf32>
    %c0_10 = arith.constant 0 : index
    %c0_11 = arith.constant 0 : index
    %22 = vector.load %arg21[%c0_10, %c0_11] : memref<8x32xf32, #tpu.memory_space<vmem>>, vector<8x32xf32>
    %23 = arith.truncf %21 : vector<8x64xf32> to vector<8x64xbf16>
    %c0_12 = arith.constant 0 : index
    %c0_13 = arith.constant 0 : index
    %24 = vector.load %arg14[%c0_12, %c0_13] : memref<64x32xbf16, #tpu.memory_space<vmem>>, vector<64x32xbf16>
    %cst_14 = arith.constant dense<0.000000e+00> : vector<8x32xf32>
    %25 = tpu.matmul %23, %24, %cst_14 {dimension_numbers = #tpu.dot_dimension_numbers<[1], [0], [0], [1], [0, 0, 1, 1], [], []>} : vector<8x64xbf16>, vector<64x32xbf16>, vector<8x32xf32> -> vector<8x32xf32>
    %26 = arith.addf %22, %25 : vector<8x32xf32>
    %c0_15 = arith.constant 0 : index
    %c0_16 = arith.constant 0 : index
    %27 = vector.load %arg21[%c0_15, %c0_16] : memref<8x32xf32, #tpu.memory_space<vmem>>, vector<8x32xf32>
    tpu.vector_store %arg21[%c0_15, %c0_16], %26 {strides = array<i32>} : memref<8x32xf32, #tpu.memory_space<vmem>>, vector<8x32xf32>,
    %c0_i32_17 = arith.constant 0 : i32
    %28 = arith.cmpi eq, %arg2, %c0_i32_17 : i32
    %29 = arith.extui %28 : i1 to i32
    %c0_i32_18 = arith.constant 0 : i32
    %30 = arith.cmpi ne, %29, %c0_i32_18 : i32
    scf.if %30 {
      %c0_19 = arith.constant 0 : index
      %c0_20 = arith.constant 0 : index
      %31 = vector.load %arg19[%c0_19, %c0_20] : memref<8x32xf32, #tpu.memory_space<vmem>>, vector<8x32xf32>
      %c0_21 = arith.constant 0 : index
      %c0_22 = arith.constant 0 : index
      %32 = vector.load %arg21[%c0_21, %c0_22] : memref<8x32xf32, #tpu.memory_space<vmem>>, vector<8x32xf32>
      %33 = arith.addf %31, %32 : vector<8x32xf32>
      %c0_23 = arith.constant 0 : index
      %c0_24 = arith.constant 0 : index
      %34 = vector.load %arg15[%c0_23, %c0_24] : memref<1x32xf32, #tpu.memory_space<vmem>>, vector<1x32xf32>
      %35 = vector.broadcast %34 : vector<1x32xf32> to vector<8x32xf32>
      %36 = arith.addf %33, %35 : vector<8x32xf32>
      %c0_25 = arith.constant 0 : index
      %c0_26 = arith.constant 0 : index
      %37 = vector.load %arg16[%c0_25, %c0_26] : memref<1x32xf32, #tpu.memory_space<vmem>>, vector<1x32xf32>
      %c0_27 = arith.constant 0 : index
      %c0_28 = arith.constant 0 : index
      %38 = vector.load %arg17[%c0_27, %c0_28] : memref<1x32xf32, #tpu.memory_space<vmem>>, vector<1x32xf32>
      %cst_29 = arith.constant dense<0.000000e+00> : vector<8xf32>
      %39 = vector.multi_reduction <add>, %36, %cst_29 [1] : vector<8x32xf32> to vector<8xf32>
      %40 = vector.shape_cast %39 : vector<8xf32> to vector<8x1xf32>
      %cst_30 = arith.constant 3.200000e+01 : f32
      %41 = vector.broadcast %cst_30 : f32 to vector<8x1xf32>
      %42 = arith.divf %40, %41 : vector<8x1xf32>
      %43 = vector.broadcast %42 : vector<8x1xf32> to vector<8x32xf32>
      %44 = arith.subf %36, %43 : vector<8x32xf32>
      %45 = arith.mulf %44, %44 : vector<8x32xf32>
      %cst_31 = arith.constant dense<0.000000e+00> : vector<8xf32>
      %46 = vector.multi_reduction <add>, %45, %cst_31 [1] : vector<8x32xf32> to vector<8xf32>
      %47 = vector.shape_cast %46 : vector<8xf32> to vector<8x1xf32>
      %cst_32 = arith.constant 3.200000e+01 : f32
      %48 = vector.broadcast %cst_32 : f32 to vector<8x1xf32>
      %49 = arith.divf %47, %48 : vector<8x1xf32>
      %cst_33 = arith.constant 9.99999974E-6 : f32
      %50 = vector.broadcast %cst_33 : f32 to vector<8x1xf32>
      %51 = arith.addf %49, %50 : vector<8x1xf32>
      %52 = math.rsqrt %51 : vector<8x1xf32>
      %53 = vector.broadcast %42 : vector<8x1xf32> to vector<8x32xf32>
      %54 = arith.subf %36, %53 : vector<8x32xf32>
      %55 = vector.broadcast %52 : vector<8x1xf32> to vector<8x32xf32>
      %56 = arith.mulf %54, %55 : vector<8x32xf32>
      %57 = vector.broadcast %37 : vector<1x32xf32> to vector<8x32xf32>
      %58 = arith.mulf %56, %57 : vector<8x32xf32>
      %59 = vector.broadcast %38 : vector<1x32xf32> to vector<8x32xf32>
      %60 = arith.addf %58, %59 : vector<8x32xf32>
      %c0_34 = arith.constant 0 : index
      %c0_35 = arith.constant 0 : index
      %c0_36 = arith.constant 0 : index
      %61 = vector.load %arg18[%c0_34, %c0_35, %c0_36] : memref<1x8x32xf32, #tpu.memory_space<vmem>>, vector<1x8x32xf32>
      %62 = vector.shape_cast %61 : vector<1x8x32xf32> to vector<8x32xf32>
      %63 = vector.shape_cast %60 : vector<8x32xf32> to vector<1x8x32xf32>
      tpu.vector_store %arg18[%c0_34, %c0_35, %c0_36], %63 {strides = array<i32>} : memref<1x8x32xf32, #tpu.memory_space<vmem>>, vector<1x8x32xf32>,
    } else {
    }
    return
  }
  func.func @transform_0(%arg0: i32, %arg1: i32, %arg2: i32) -> (i32, i32, i32) {
    %c0_i32 = arith.constant 0 : i32
    %c0_i32_0 = arith.constant 0 : i32
    return %arg0, %arg1, %c0_i32 : i32, i32, i32
  }
  func.func @transform_1(%arg0: i32, %arg1: i32, %arg2: i32) -> (i32, i32, i32, i32) {
    %c0_i32 = arith.constant 0 : i32
    %c0_i32_0 = arith.constant 0 : i32
    %c0_i32_1 = arith.constant 0 : i32
    return %arg0, %c0_i32, %arg1, %c0_i32_0 : i32, i32, i32, i32
  }
  func.func @transform_2(%arg0: i32, %arg1: i32, %arg2: i32) -> (i32, i32, i32, i32) {
    %c0_i32 = arith.constant 0 : i32
    %c0_i32_0 = arith.constant 0 : i32
    %c0_i32_1 = arith.constant 0 : i32
    %c0_i32_2 = arith.constant 0 : i32
    return %arg0, %c0_i32, %c0_i32_0, %c0_i32_1 : i32, i32, i32, i32
  }
  func.func @transform_3(%arg0: i32, %arg1: i32, %arg2: i32) -> (i32, i32, i32, i32) {
    %c0_i32 = arith.constant 0 : i32
    %c0_i32_0 = arith.constant 0 : i32
    %c0_i32_1 = arith.constant 0 : i32
    %c0_i32_2 = arith.constant 0 : i32
    return %arg0, %c0_i32, %c0_i32_0, %c0_i32_1 : i32, i32, i32, i32
  }
  func.func @transform_4(%arg0: i32, %arg1: i32, %arg2: i32) -> (i32, i32, i32) {
    %c0_i32 = arith.constant 0 : i32
    %c0_i32_0 = arith.constant 0 : i32
    %c0_i32_1 = arith.constant 0 : i32
    return %arg0, %c0_i32, %c0_i32_0 : i32, i32, i32
  }
  func.func @transform_5(%arg0: i32, %arg1: i32, %arg2: i32) -> (i32, i32, i32) {
    %c0_i32 = arith.constant 0 : i32
    %c0_i32_0 = arith.constant 0 : i32
    %c0_i32_1 = arith.constant 0 : i32
    %c0_i32_2 = arith.constant 0 : i32
    return %c0_i32, %c0_i32_0, %c0_i32_1 : i32, i32, i32
  }
  func.func @transform_6(%arg0: i32, %arg1: i32, %arg2: i32) -> (i32, i32) {
    %c0_i32 = arith.constant 0 : i32
    %c0_i32_0 = arith.constant 0 : i32
    %c0_i32_1 = arith.constant 0 : i32
    return %c0_i32, %c0_i32_0 : i32, i32
  }
  func.func @transform_7(%arg0: i32, %arg1: i32, %arg2: i32) -> (i32, i32) {
    %c0_i32 = arith.constant 0 : i32
    %c0_i32_0 = arith.constant 0 : i32
    %c0_i32_1 = arith.constant 0 : i32
    return %c0_i32, %c0_i32_0 : i32, i32
  }
  func.func @transform_8(%arg0: i32, %arg1: i32, %arg2: i32) -> (i32, i32) {
    %c0_i32 = arith.constant 0 : i32
    %c0_i32_0 = arith.constant 0 : i32
    %c0_i32_1 = arith.constant 0 : i32
    return %c0_i32, %c0_i32_0 : i32, i32
  }
  func.func @transform_9(%arg0: i32, %arg1: i32, %arg2: i32) -> (i32, i32) {
    %c0_i32 = arith.constant 0 : i32
    %c0_i32_0 = arith.constant 0 : i32
    return %c0_i32, %arg2 : i32, i32
  }
  func.func @transform_10(%arg0: i32, %arg1: i32, %arg2: i32) -> (i32, i32) {
    %c0_i32 = arith.constant 0 : i32
    %c0_i32_0 = arith.constant 0 : i32
    return %c0_i32, %arg2 : i32, i32
  }
  func.func @transform_11(%arg0: i32, %arg1: i32, %arg2: i32) -> (i32, i32) {
    %c0_i32 = arith.constant 0 : i32
    %c0_i32_0 = arith.constant 0 : i32
    return %arg2, %c0_i32 : i32, i32
  }
  func.func @transform_12(%arg0: i32, %arg1: i32, %arg2: i32) -> (i32, i32) {
    %c0_i32 = arith.constant 0 : i32
    %c0_i32_0 = arith.constant 0 : i32
    %c0_i32_1 = arith.constant 0 : i32
    return %c0_i32, %c0_i32_0 : i32, i32
  }
  func.func @transform_13(%arg0: i32, %arg1: i32, %arg2: i32) -> (i32, i32) {
    %c0_i32 = arith.constant 0 : i32
    %c0_i32_0 = arith.constant 0 : i32
    %c0_i32_1 = arith.constant 0 : i32
    return %c0_i32, %c0_i32_0 : i32, i32
  }
  func.func @transform_14(%arg0: i32, %arg1: i32, %arg2: i32) -> (i32, i32) {
    %c0_i32 = arith.constant 0 : i32
    %c0_i32_0 = arith.constant 0 : i32
    %c0_i32_1 = arith.constant 0 : i32
    return %c0_i32, %c0_i32_0 : i32, i32
  }
  func.func @transform_15(%arg0: i32, %arg1: i32, %arg2: i32) -> (i32, i32, i32) {
    %c0_i32 = arith.constant 0 : i32
    %c0_i32_0 = arith.constant 0 : i32
    return %arg0, %arg1, %c0_i32 : i32, i32, i32
  }
}

module attributes {stable_mosaic.version = 11 : i64} {
  func.func @kernel(%arg0: i32, %arg1: i32, %arg2: i32, %arg3: memref<1x8x32xbf16, #tpu.memory_space<vmem>>, %arg4: memref<1x4x8x8xbf16, #tpu.memory_space<vmem>>, %arg5: memref<1x4x8x8xbf16, #tpu.memory_space<vmem>>, %arg6: memref<1x4x8x8xbf16, #tpu.memory_space<vmem>>, %arg7: memref<1x1x8xf32, #tpu.memory_space<vmem>>, %arg8: memref<4x8x32xbf16, #tpu.memory_space<vmem>>, %arg9: memref<1x32xf32, #tpu.memory_space<vmem>>, %arg10: memref<1x32xf32, #tpu.memory_space<vmem>>, %arg11: memref<1x32xf32, #tpu.memory_space<vmem>>, %arg12: memref<32x64xbf16, #tpu.memory_space<vmem>>, %arg13: memref<1x64xf32, #tpu.memory_space<vmem>>, %arg14: memref<64x32xbf16, #tpu.memory_space<vmem>>, %arg15: memref<1x32xf32, #tpu.memory_space<vmem>>, %arg16: memref<1x32xf32, #tpu.memory_space<vmem>>, %arg17: memref<1x32xf32, #tpu.memory_space<vmem>>, %arg18: memref<1x8x32xf32, #tpu.memory_space<vmem>>, %arg19: memref<8x32xf32, #tpu.memory_space<vmem>>, %arg20: memref<8x32xbf16, #tpu.memory_space<vmem>>, %arg21: memref<8x32xf32, #tpu.memory_space<vmem>>) attributes {dimension_semantics = [#tpu.dimension_semantics<parallel>, #tpu.dimension_semantics<parallel>, #tpu.dimension_semantics<arbitrary>], iteration_bounds = array<i64: 2, 1, 1>, scalar_prefetch = 0 : i64, scratch_operands = 3 : i64, tpu.core_type = #tpu.core_type<tc>, window_params = [{transform_indices = @transform_0, window_bounds = array<i64: 1, 8, 32>}, {transform_indices = @transform_1, window_bounds = array<i64: 1, 4, 8, 8>}, {transform_indices = @transform_2, window_bounds = array<i64: 1, 4, 8, 8>}, {transform_indices = @transform_3, window_bounds = array<i64: 1, 4, 8, 8>}, {transform_indices = @transform_4, window_bounds = array<i64: 1, 1, 8>}, {pipeline_mode = #tpu.pipeline_mode<synchronous>, transform_indices = @transform_5, window_bounds = array<i64: 4, 8, 32>}, {pipeline_mode = #tpu.pipeline_mode<synchronous>, transform_indices = @transform_6, window_bounds = array<i64: 1, 32>}, {pipeline_mode = #tpu.pipeline_mode<synchronous>, transform_indices = @transform_7, window_bounds = array<i64: 1, 32>}, {pipeline_mode = #tpu.pipeline_mode<synchronous>, transform_indices = @transform_8, window_bounds = array<i64: 1, 32>}, {transform_indices = @transform_9, window_bounds = array<i64: 32, 64>}, {transform_indices = @transform_10, window_bounds = array<i64: 1, 64>}, {transform_indices = @transform_11, window_bounds = array<i64: 64, 32>}, {pipeline_mode = #tpu.pipeline_mode<synchronous>, transform_indices = @transform_12, window_bounds = array<i64: 1, 32>}, {pipeline_mode = #tpu.pipeline_mode<synchronous>, transform_indices = @transform_13, window_bounds = array<i64: 1, 32>}, {pipeline_mode = #tpu.pipeline_mode<synchronous>, transform_indices = @transform_14, window_bounds = array<i64: 1, 32>}, {transform_indices = @transform_15, window_bounds = array<i64: 1, 8, 32>}]} {
    %c0_i32 = arith.constant 0 : i32
    %0 = arith.cmpi eq, %arg2, %c0_i32 : i32
    %1 = arith.extui %0 : i1 to i32
    %c0_i32_0 = arith.constant 0 : i32
    %2 = arith.cmpi ne, %1, %c0_i32_0 : i32
    scf.if %2 {
      %c0_19 = arith.constant 0 : index
      %c0_20 = arith.constant 0 : index
      %c0_21 = arith.constant 0 : index
      %c0_22 = arith.constant 0 : index
      %31 = vector.load %arg4[%c0_19, %c0_20, %c0_21, %c0_22] : memref<1x4x8x8xbf16, #tpu.memory_space<vmem>>, vector<1x4x8x8xbf16>
      %32 = vector.shape_cast %31 : vector<1x4x8x8xbf16> to vector<4x8x8xbf16>
      %c0_23 = arith.constant 0 : index
      %c0_24 = arith.constant 0 : index
      %c0_25 = arith.constant 0 : index
      %c0_26 = arith.constant 0 : index
      %33 = vector.load %arg5[%c0_23, %c0_24, %c0_25, %c0_26] : memref<1x4x8x8xbf16, #tpu.memory_space<vmem>>, vector<1x4x8x8xbf16>
      %34 = vector.shape_cast %33 : vector<1x4x8x8xbf16> to vector<4x8x8xbf16>
      "tpu.trace_start"() <{level = 10 : i32, message = "hqd,hkd->hqk"}> : () -> ()
      %cst_27 = arith.constant dense<0.000000e+00> : vector<4x8x8xf32>
      %35 = tpu.matmul %32, %34, %cst_27 {dimension_numbers = #tpu.dot_dimension_numbers<[2], [2], [1], [1], [0, 0, 0, 1, 1, 1], [0], [0]>} : vector<4x8x8xbf16>, vector<4x8x8xbf16>, vector<4x8x8xf32> -> vector<4x8x8xf32>
      "tpu.trace_stop"() : () -> ()
      %c0_28 = arith.constant 0 : index
      %c0_29 = arith.constant 0 : index
      %c0_30 = arith.constant 0 : index
      %36 = vector.load %arg7[%c0_28, %c0_29, %c0_30] : memref<1x1x8xf32, #tpu.memory_space<vmem>>, vector<1x1x8xf32>
      %37 = vector.shape_cast %36 : vector<1x1x8xf32> to vector<1x8xf32>
      %38 = vector.shape_cast %37 : vector<1x8xf32> to vector<1x1x8xf32>
      %39 = vector.broadcast %38 : vector<1x1x8xf32> to vector<4x8x8xf32>
      %40 = arith.addf %35, %39 : vector<4x8x8xf32>
      %cst_31 = arith.constant dense<0xFF800000> : vector<4x8xf32>
      %41 = vector.multi_reduction <maximumf>, %40, %cst_31 [2] : vector<4x8x8xf32> to vector<4x8xf32>
      %42 = vector.shape_cast %41 : vector<4x8xf32> to vector<4x8x1xf32>
      %43 = vector.broadcast %42 : vector<4x8x1xf32> to vector<4x8x8xf32>
      %44 = arith.subf %40, %43 : vector<4x8x8xf32>
      %45 = math.exp %44 : vector<4x8x8xf32>
      %cst_32 = arith.constant dense<0.000000e+00> : vector<4x8xf32>
      %46 = vector.multi_reduction <add>, %45, %cst_32 [2] : vector<4x8x8xf32> to vector<4x8xf32>
      %47 = vector.shape_cast %46 : vector<4x8xf32> to vector<4x8x1xf32>
      %48 = arith.truncf %45 : vector<4x8x8xf32> to vector<4x8x8xbf16>
      %c0_33 = arith.constant 0 : index
      %c0_34 = arith.constant 0 : index
      %c0_35 = arith.constant 0 : index
      %c0_36 = arith.constant 0 : index
      %49 = vector.load %arg6[%c0_33, %c0_34, %c0_35, %c0_36] : memref<1x4x8x8xbf16, #tpu.memory_space<vmem>>, vector<1x4x8x8xbf16>
      %50 = vector.shape_cast %49 : vector<1x4x8x8xbf16> to vector<4x8x8xbf16>
      "tpu.trace_start"() <{level = 10 : i32, message = "hqk,hkd->hqd"}> : () -> ()
      %cst_37 = arith.constant dense<0.000000e+00> : vector<4x8x8xf32>
      %51 = tpu.matmul %48, %50, %cst_37 {dimension_numbers = #tpu.dot_dimension_numbers<[2], [1], [1], [2], [0, 0, 0, 1, 1, 2], [0], [0]>} : vector<4x8x8xbf16>, vector<4x8x8xbf16>, vector<4x8x8xf32> -> vector<4x8x8xf32>
      "tpu.trace_stop"() : () -> ()
      %52 = tpu.reciprocal %47 {approx = true} : vector<4x8x1xf32> -> vector<4x8x1xf32>
      %53 = vector.broadcast %52 : vector<4x8x1xf32> to vector<4x8x8xf32>
      %54 = arith.mulf %51, %53 : vector<4x8x8xf32>
      %55 = arith.truncf %54 : vector<4x8x8xf32> to vector<4x8x8xbf16>
      %cst_38 = arith.constant 0.000000e+00 : f32
      %56 = vector.broadcast %cst_38 : f32 to vector<8x32xf32>
      %57 = vector.extract_strided_slice %55 {offsets = [0, 0, 0], sizes = [1, 8, 8], strides = [1, 1, 1]} : vector<4x8x8xbf16> to vector<1x8x8xbf16>
      %58 = vector.shape_cast %57 : vector<1x8x8xbf16> to vector<8x8xbf16>
      %c0_39 = arith.constant 0 : index
      %c0_40 = arith.constant 0 : index
      %c0_41 = arith.constant 0 : index
      %59 = vector.load %arg8[%c0_39, %c0_40, %c0_41] : memref<4x8x32xbf16, #tpu.memory_space<vmem>>, vector<1x8x32xbf16>
      %60 = vector.shape_cast %59 : vector<1x8x32xbf16> to vector<8x32xbf16>
      %cst_42 = arith.constant dense<0.000000e+00> : vector<8x32xf32>
      %61 = tpu.matmul %58, %60, %cst_42 {dimension_numbers = #tpu.dot_dimension_numbers<[1], [0], [0], [1], [0, 0, 1, 1], [], []>} : vector<8x8xbf16>, vector<8x32xbf16>, vector<8x32xf32> -> vector<8x32xf32>
      %62 = arith.addf %56, %61 : vector<8x32xf32>
      %63 = vector.extract_strided_slice %55 {offsets = [1, 0, 0], sizes = [1, 8, 8], strides = [1, 1, 1]} : vector<4x8x8xbf16> to vector<1x8x8xbf16>
      %64 = vector.shape_cast %63 : vector<1x8x8xbf16> to vector<8x8xbf16>
      %c1 = arith.constant 1 : index
      %c0_43 = arith.constant 0 : index
      %c0_44 = arith.constant 0 : index
      %65 = vector.load %arg8[%c1, %c0_43, %c0_44] : memref<4x8x32xbf16, #tpu.memory_space<vmem>>, vector<1x8x32xbf16>
      %66 = vector.shape_cast %65 : vector<1x8x32xbf16> to vector<8x32xbf16>
      %cst_45 = arith.constant dense<0.000000e+00> : vector<8x32xf32>
      %67 = tpu.matmul %64, %66, %cst_45 {dimension_numbers = #tpu.dot_dimension_numbers<[1], [0], [0], [1], [0, 0, 1, 1], [], []>} : vector<8x8xbf16>, vector<8x32xbf16>, vector<8x32xf32> -> vector<8x32xf32>
      %68 = arith.addf %62, %67 : vector<8x32xf32>
      %69 = vector.extract_strided_slice %55 {offsets = [2, 0, 0], sizes = [1, 8, 8], strides = [1, 1, 1]} : vector<4x8x8xbf16> to vector<1x8x8xbf16>
      %70 = vector.shape_cast %69 : vector<1x8x8xbf16> to vector<8x8xbf16>
      %c2 = arith.constant 2 : index
      %c0_46 = arith.constant 0 : index
      %c0_47 = arith.constant 0 : index
      %71 = vector.load %arg8[%c2, %c0_46, %c0_47] : memref<4x8x32xbf16, #tpu.memory_space<vmem>>, vector<1x8x32xbf16>
      %72 = vector.shape_cast %71 : vector<1x8x32xbf16> to vector<8x32xbf16>
      %cst_48 = arith.constant dense<0.000000e+00> : vector<8x32xf32>
      %73 = tpu.matmul %70, %72, %cst_48 {dimension_numbers = #tpu.dot_dimension_numbers<[1], [0], [0], [1], [0, 0, 1, 1], [], []>} : vector<8x8xbf16>, vector<8x32xbf16>, vector<8x32xf32> -> vector<8x32xf32>
      %74 = arith.addf %68, %73 : vector<8x32xf32>
      %75 = vector.extract_strided_slice %55 {offsets = [3, 0, 0], sizes = [1, 8, 8], strides = [1, 1, 1]} : vector<4x8x8xbf16> to vector<1x8x8xbf16>
      %76 = vector.shape_cast %75 : vector<1x8x8xbf16> to vector<8x8xbf16>
      %c3 = arith.constant 3 : index
      %c0_49 = arith.constant 0 : index
      %c0_50 = arith.constant 0 : index
      %77 = vector.load %arg8[%c3, %c0_49, %c0_50] : memref<4x8x32xbf16, #tpu.memory_space<vmem>>, vector<1x8x32xbf16>
      %78 = vector.shape_cast %77 : vector<1x8x32xbf16> to vector<8x32xbf16>
      %cst_51 = arith.constant dense<0.000000e+00> : vector<8x32xf32>
      %79 = tpu.matmul %76, %78, %cst_51 {dimension_numbers = #tpu.dot_dimension_numbers<[1], [0], [0], [1], [0, 0, 1, 1], [], []>} : vector<8x8xbf16>, vector<8x32xbf16>, vector<8x32xf32> -> vector<8x32xf32>
      %80 = arith.addf %74, %79 : vector<8x32xf32>
      %c0_52 = arith.constant 0 : index
      %c0_53 = arith.constant 0 : index
      %81 = vector.load %arg9[%c0_52, %c0_53] : memref<1x32xf32, #tpu.memory_space<vmem>>, vector<1x32xf32>
      %82 = vector.broadcast %81 : vector<1x32xf32> to vector<8x32xf32>
      %83 = arith.addf %80, %82 : vector<8x32xf32>
      %c0_54 = arith.constant 0 : index
      %c0_55 = arith.constant 0 : index
      %c0_56 = arith.constant 0 : index
      %84 = vector.load %arg3[%c0_54, %c0_55, %c0_56] : memref<1x8x32xbf16, #tpu.memory_space<vmem>>, vector<1x8x32xbf16>
      %85 = vector.shape_cast %84 : vector<1x8x32xbf16> to vector<8x32xbf16>
      %86 = arith.extf %85 : vector<8x32xbf16> to vector<8x32xf32>
      %87 = arith.addf %86, %83 : vector<8x32xf32>
      %c0_57 = arith.constant 0 : index
      %c0_58 = arith.constant 0 : index
      %88 = vector.load %arg10[%c0_57, %c0_58] : memref<1x32xf32, #tpu.memory_space<vmem>>, vector<1x32xf32>
      %c0_59 = arith.constant 0 : index
      %c0_60 = arith.constant 0 : index
      %89 = vector.load %arg11[%c0_59, %c0_60] : memref<1x32xf32, #tpu.memory_space<vmem>>, vector<1x32xf32>
      %cst_61 = arith.constant dense<0.000000e+00> : vector<8xf32>
      %90 = vector.multi_reduction <add>, %87, %cst_61 [1] : vector<8x32xf32> to vector<8xf32>
      %91 = vector.shape_cast %90 : vector<8xf32> to vector<8x1xf32>
      %cst_62 = arith.constant 3.200000e+01 : f32
      %92 = vector.broadcast %cst_62 : f32 to vector<8x1xf32>
      %93 = arith.divf %91, %92 : vector<8x1xf32>
      %94 = vector.broadcast %93 : vector<8x1xf32> to vector<8x32xf32>
      %95 = arith.subf %87, %94 : vector<8x32xf32>
      %96 = arith.mulf %95, %95 : vector<8x32xf32>
      %cst_63 = arith.constant dense<0.000000e+00> : vector<8xf32>
      %97 = vector.multi_reduction <add>, %96, %cst_63 [1] : vector<8x32xf32> to vector<8xf32>
      %98 = vector.shape_cast %97 : vector<8xf32> to vector<8x1xf32>
      %cst_64 = arith.constant 3.200000e+01 : f32
      %99 = vector.broadcast %cst_64 : f32 to vector<8x1xf32>
      %100 = arith.divf %98, %99 : vector<8x1xf32>
      %cst_65 = arith.constant 9.99999974E-6 : f32
      %101 = vector.broadcast %cst_65 : f32 to vector<8x1xf32>
      %102 = arith.addf %100, %101 : vector<8x1xf32>
      %103 = math.rsqrt %102 : vector<8x1xf32>
      %104 = vector.broadcast %93 : vector<8x1xf32> to vector<8x32xf32>
      %105 = arith.subf %87, %104 : vector<8x32xf32>
      %106 = vector.broadcast %103 : vector<8x1xf32> to vector<8x32xf32>
      %107 = arith.mulf %105, %106 : vector<8x32xf32>
      %108 = vector.broadcast %88 : vector<1x32xf32> to vector<8x32xf32>
      %109 = arith.mulf %107, %108 : vector<8x32xf32>
      %110 = vector.broadcast %89 : vector<1x32xf32> to vector<8x32xf32>
      %111 = arith.addf %109, %110 : vector<8x32xf32>
      %c0_66 = arith.constant 0 : index
      %c0_67 = arith.constant 0 : index
      %112 = vector.load %arg19[%c0_66, %c0_67] : memref<8x32xf32, #tpu.memory_space<vmem>>, vector<8x32xf32>
      tpu.vector_store %arg19[%c0_66, %c0_67], %111 {strides = array<i32>} : memref<8x32xf32, #tpu.memory_space<vmem>>, vector<8x32xf32>,
      %113 = arith.truncf %111 : vector<8x32xf32> to vector<8x32xbf16>
      %c0_68 = arith.constant 0 : index
      %c0_69 = arith.constant 0 : index
      %114 = vector.load %arg20[%c0_68, %c0_69] : memref<8x32xbf16, #tpu.memory_space<vmem>>, vector<8x32xbf16>
      tpu.vector_store %arg20[%c0_68, %c0_69], %113 {strides = array<i32>} : memref<8x32xbf16, #tpu.memory_space<vmem>>, vector<8x32xbf16>,
      %cst_70 = arith.constant 0.000000e+00 : f32
      %115 = vector.broadcast %cst_70 : f32 to vector<8x32xf32>
      %c0_71 = arith.constant 0 : index
      %c0_72 = arith.constant 0 : index
      %116 = vector.load %arg21[%c0_71, %c0_72] : memref<8x32xf32, #tpu.memory_space<vmem>>, vector<8x32xf32>
      tpu.vector_store %arg21[%c0_71, %c0_72], %115 {strides = array<i32>} : memref<8x32xf32, #tpu.memory_space<vmem>>, vector<8x32xf32>,
    } else {
    }
    %c0 = arith.constant 0 : index
    %c0_1 = arith.constant 0 : index
    %3 = vector.load %arg20[%c0, %c0_1] : memref<8x32xbf16, #tpu.memory_space<vmem>>, vector<8x32xbf16>
    %c0_2 = arith.constant 0 : index
    %c0_3 = arith.constant 0 : index
    %4 = vector.load %arg12[%c0_2, %c0_3] : memref<32x64xbf16, #tpu.memory_space<vmem>>, vector<32x64xbf16>
    %cst = arith.constant dense<0.000000e+00> : vector<8x64xf32>
    %5 = tpu.matmul %3, %4, %cst {dimension_numbers = #tpu.dot_dimension_numbers<[1], [0], [0], [1], [0, 0, 1, 1], [], []>} : vector<8x32xbf16>, vector<32x64xbf16>, vector<8x64xf32> -> vector<8x64xf32>
    %c0_4 = arith.constant 0 : index
    %c0_5 = arith.constant 0 : index
    %6 = vector.load %arg13[%c0_4, %c0_5] : memref<1x64xf32, #tpu.memory_space<vmem>>, vector<1x64xf32>
    %7 = vector.broadcast %6 : vector<1x64xf32> to vector<8x64xf32>
    %8 = arith.addf %5, %7 : vector<8x64xf32>
    %cst_6 = arith.constant 5.000000e-01 : f32
    %9 = vector.broadcast %cst_6 : f32 to vector<8x64xf32>
    %10 = arith.mulf %9, %8 : vector<8x64xf32>
    %cst_7 = arith.constant 4.471500e-02 : f32
    %11 = vector.broadcast %cst_7 : f32 to vector<8x64xf32>
    %12 = arith.mulf %11, %8 : vector<8x64xf32>
    %13 = arith.mulf %12, %8 : vector<8x64xf32>
    %14 = arith.mulf %13, %8 : vector<8x64xf32>
    %15 = arith.addf %8, %14 : vector<8x64xf32>
    %cst_8 = arith.constant 0.797884583 : f32
    %16 = vector.broadcast %cst_8 : f32 to vector<8x64xf32>
    %17 = arith.mulf %16, %15 : vector<8x64xf32>
    %18 = math.tanh %17 : vector<8x64xf32>
    %cst_9 = arith.constant 1.000000e+00 : f32
    %19 = vector.broadcast %cst_9 : f32 to vector<8x64xf32>
    %20 = arith.addf %19, %18 : vector<8x64xf32>
    %21 = arith.mulf %10, %20 : vector<8x64xf32>
    %c0_10 = arith.constant 0 : index
    %c0_11 = arith.constant 0 : index
    %22 = vector.load %arg21[%c0_10, %c0_11] : memref<8x32xf32, #tpu.memory_space<vmem>>, vector<8x32xf32>
    %23 = arith.truncf %21 : vector<8x64xf32> to vector<8x64xbf16>
    %c0_12 = arith.constant 0 : index
    %c0_13 = arith.constant 0 : index
    %24 = vector.load %arg14[%c0_12, %c0_13] : memref<64x32xbf16, #tpu.memory_space<vmem>>, vector<64x32xbf16>
    %cst_14 = arith.constant dense<0.000000e+00> : vector<8x32xf32>
    %25 = tpu.matmul %23, %24, %cst_14 {dimension_numbers = #tpu.dot_dimension_numbers<[1], [0], [0], [1], [0, 0, 1, 1], [], []>} : vector<8x64xbf16>, vector<64x32xbf16>, vector<8x32xf32> -> vector<8x32xf32>
    %26 = arith.addf %22, %25 : vector<8x32xf32>
    %c0_15 = arith.constant 0 : index
    %c0_16 = arith.constant 0 : index
    %27 = vector.load %arg21[%c0_15, %c0_16] : memref<8x32xf32, #tpu.memory_space<vmem>>, vector<8x32xf32>
    tpu.vector_store %arg21[%c0_15, %c0_16], %26 {strides = array<i32>} : memref<8x32xf32, #tpu.memory_space<vmem>>, vector<8x32xf32>,
    %c0_i32_17 = arith.constant 0 : i32
    %28 = arith.cmpi eq, %arg2, %c0_i32_17 : i32
    %29 = arith.extui %28 : i1 to i32
    %c0_i32_18 = arith.constant 0 : i32
    %30 = arith.cmpi ne, %29, %c0_i32_18 : i32
    scf.if %30 {
      %c0_19 = arith.constant 0 : index
      %c0_20 = arith.constant 0 : index
      %31 = vector.load %arg19[%c0_19, %c0_20] : memref<8x32xf32, #tpu.memory_space<vmem>>, vector<8x32xf32>
      %c0_21 = arith.constant 0 : index
      %c0_22 = arith.constant 0 : index
      %32 = vector.load %arg21[%c0_21, %c0_22] : memref<8x32xf32, #tpu.memory_space<vmem>>, vector<8x32xf32>
      %33 = arith.addf %31, %32 : vector<8x32xf32>
      %c0_23 = arith.constant 0 : index
      %c0_24 = arith.constant 0 : index
      %34 = vector.load %arg15[%c0_23, %c0_24] : memref<1x32xf32, #tpu.memory_space<vmem>>, vector<1x32xf32>
      %35 = vector.broadcast %34 : vector<1x32xf32> to vector<8x32xf32>
      %36 = arith.addf %33, %35 : vector<8x32xf32>
      %c0_25 = arith.constant 0 : index
      %c0_26 = arith.constant 0 : index
      %37 = vector.load %arg16[%c0_25, %c0_26] : memref<1x32xf32, #tpu.memory_space<vmem>>, vector<1x32xf32>
      %c0_27 = arith.constant 0 : index
      %c0_28 = arith.constant 0 : index
      %38 = vector.load %arg17[%c0_27, %c0_28] : memref<1x32xf32, #tpu.memory_space<vmem>>, vector<1x32xf32>
      %cst_29 = arith.constant dense<0.000000e+00> : vector<8xf32>
      %39 = vector.multi_reduction <add>, %36, %cst_29 [1] : vector<8x32xf32> to vector<8xf32>
      %40 = vector.shape_cast %39 : vector<8xf32> to vector<8x1xf32>
      %cst_30 = arith.constant 3.200000e+01 : f32
      %41 = vector.broadcast %cst_30 : f32 to vector<8x1xf32>
      %42 = arith.divf %40, %41 : vector<8x1xf32>
      %43 = vector.broadcast %42 : vector<8x1xf32> to vector<8x32xf32>
      %44 = arith.subf %36, %43 : vector<8x32xf32>
      %45 = arith.mulf %44, %44 : vector<8x32xf32>
      %cst_31 = arith.constant dense<0.000000e+00> : vector<8xf32>
      %46 = vector.multi_reduction <add>, %45, %cst_31 [1] : vector<8x32xf32> to vector<8xf32>
      %47 = vector.shape_cast %46 : vector<8xf32> to vector<8x1xf32>
      %cst_32 = arith.constant 3.200000e+01 : f32
      %48 = vector.broadcast %cst_32 : f32 to vector<8x1xf32>
      %49 = arith.divf %47, %48 : vector<8x1xf32>
      %cst_33 = arith.constant 9.99999974E-6 : f32
      %50 = vector.broadcast %cst_33 : f32 to vector<8x1xf32>
      %51 = arith.addf %49, %50 : vector<8x1xf32>
      %52 = math.rsqrt %51 : vector<8x1xf32>
      %53 = vector.broadcast %42 : vector<8x1xf32> to vector<8x32xf32>
      %54 = arith.subf %36, %53 : vector<8x32xf32>
      %55 = vector.broadcast %52 : vector<8x1xf32> to vector<8x32xf32>
      %56 = arith.mulf %54, %55 : vector<8x32xf32>
      %57 = vector.broadcast %37 : vector<1x32xf32> to vector<8x32xf32>
      %58 = arith.mulf %56, %57 : vector<8x32xf32>
      %59 = vector.broadcast %38 : vector<1x32xf32> to vector<8x32xf32>
      %60 = arith.addf %58, %59 : vector<8x32xf32>
      %c0_34 = arith.constant 0 : index
      %c0_35 = arith.constant 0 : index
      %c0_36 = arith.constant 0 : index
      %61 = vector.load %arg18[%c0_34, %c0_35, %c0_36] : memref<1x8x32xf32, #tpu.memory_space<vmem>>, vector<1x8x32xf32>
      %62 = vector.shape_cast %61 : vector<1x8x32xf32> to vector<8x32xf32>
      %63 = vector.shape_cast %60 : vector<8x32xf32> to vector<1x8x32xf32>
      tpu.vector_store %arg18[%c0_34, %c0_35, %c0_36], %63 {strides = array<i32>} : memref<1x8x32xf32, #tpu.memory_space<vmem>>, vector<1x8x32xf32>,
    } else {
    }
    return
  }
  func.func @transform_0(%arg0: i32, %arg1: i32, %arg2: i32) -> (i32, i32, i32) {
    %c0_i32 = arith.constant 0 : i32
    %c0_i32_0 = arith.constant 0 : i32
    return %arg0, %arg1, %c0_i32 : i32, i32, i32
  }
  func.func @transform_1(%arg0: i32, %arg1: i32, %arg2: i32) -> (i32, i32, i32, i32) {
    %c0_i32 = arith.constant 0 : i32
    %c0_i32_0 = arith.constant 0 : i32
    %c0_i32_1 = arith.constant 0 : i32
    return %arg0, %c0_i32, %arg1, %c0_i32_0 : i32, i32, i32, i32
  }
  func.func @transform_2(%arg0: i32, %arg1: i32, %arg2: i32) -> (i32, i32, i32, i32) {
    %c0_i32 = arith.constant 0 : i32
    %c0_i32_0 = arith.constant 0 : i32
    %c0_i32_1 = arith.constant 0 : i32
    %c0_i32_2 = arith.constant 0 : i32
    return %arg0, %c0_i32, %c0_i32_0, %c0_i32_1 : i32, i32, i32, i32
  }
  func.func @transform_3(%arg0: i32, %arg1: i32, %arg2: i32) -> (i32, i32, i32, i32) {
    %c0_i32 = arith.constant 0 : i32
    %c0_i32_0 = arith.constant 0 : i32
    %c0_i32_1 = arith.constant 0 : i32
    %c0_i32_2 = arith.constant 0 : i32
    return %arg0, %c0_i32, %c0_i32_0, %c0_i32_1 : i32, i32, i32, i32
  }
  func.func @transform_4(%arg0: i32, %arg1: i32, %arg2: i32) -> (i32, i32, i32) {
    %c0_i32 = arith.constant 0 : i32
    %c0_i32_0 = arith.constant 0 : i32
    %c0_i32_1 = arith.constant 0 : i32
    return %arg0, %c0_i32, %c0_i32_0 : i32, i32, i32
  }
  func.func @transform_5(%arg0: i32, %arg1: i32, %arg2: i32) -> (i32, i32, i32) {
    %c0_i32 = arith.constant 0 : i32
    %c0_i32_0 = arith.constant 0 : i32
    %c0_i32_1 = arith.constant 0 : i32
    %c0_i32_2 = arith.constant 0 : i32
    return %c0_i32, %c0_i32_0, %c0_i32_1 : i32, i32, i32
  }
  func.func @transform_6(%arg0: i32, %arg1: i32, %arg2: i32) -> (i32, i32) {
    %c0_i32 = arith.constant 0 : i32
    %c0_i32_0 = arith.constant 0 : i32
    %c0_i32_1 = arith.constant 0 : i32
    return %c0_i32, %c0_i32_0 : i32, i32
  }
  func.func @transform_7(%arg0: i32, %arg1: i32, %arg2: i32) -> (i32, i32) {
    %c0_i32 = arith.constant 0 : i32
    %c0_i32_0 = arith.constant 0 : i32
    %c0_i32_1 = arith.constant 0 : i32
    return %c0_i32, %c0_i32_0 : i32, i32
  }
  func.func @transform_8(%arg0: i32, %arg1: i32, %arg2: i32) -> (i32, i32) {
    %c0_i32 = arith.constant 0 : i32
    %c0_i32_0 = arith.constant 0 : i32
    %c0_i32_1 = arith.constant 0 : i32
    return %c0_i32, %c0_i32_0 : i32, i32
  }
  func.func @transform_9(%arg0: i32, %arg1: i32, %arg2: i32) -> (i32, i32) {
    %c0_i32 = arith.constant 0 : i32
    %c0_i32_0 = arith.constant 0 : i32
    return %c0_i32, %arg2 : i32, i32
  }
  func.func @transform_10(%arg0: i32, %arg1: i32, %arg2: i32) -> (i32, i32) {
    %c0_i32 = arith.constant 0 : i32
    %c0_i32_0 = arith.constant 0 : i32
    return %c0_i32, %arg2 : i32, i32
  }
  func.func @transform_11(%arg0: i32, %arg1: i32, %arg2: i32) -> (i32, i32) {
    %c0_i32 = arith.constant 0 : i32
    %c0_i32_0 = arith.constant 0 : i32
    return %arg2, %c0_i32 : i32, i32
  }
  func.func @transform_12(%arg0: i32, %arg1: i32, %arg2: i32) -> (i32, i32) {
    %c0_i32 = arith.constant 0 : i32
    %c0_i32_0 = arith.constant 0 : i32
    %c0_i32_1 = arith.constant 0 : i32
    return %c0_i32, %c0_i32_0 : i32, i32
  }
  func.func @transform_13(%arg0: i32, %arg1: i32, %arg2: i32) -> (i32, i32) {
    %c0_i32 = arith.constant 0 : i32
    %c0_i32_0 = arith.constant 0 : i32
    %c0_i32_1 = arith.constant 0 : i32
    return %c0_i32, %c0_i32_0 : i32, i32
  }
  func.func @transform_14(%arg0: i32, %arg1: i32, %arg2: i32) -> (i32, i32) {
    %c0_i32 = arith.constant 0 : i32
    %c0_i32_0 = arith.constant 0 : i32
    %c0_i32_1 = arith.constant 0 : i32
    return %c0_i32, %c0_i32_0 : i32, i32
  }
  func.func @transform_15(%arg0: i32, %arg1: i32, %arg2: i32) -> (i32, i32, i32) {
    %c0_i32 = arith.constant 0 : i32
    %c0_i32_0 = arith.constant 0 : i32
    return %arg0, %arg1, %c0_i32 : i32, i32, i32
  }
}

</mosaic_0001>

<llo_original>
// kernel: decoder_forward.3
$region0: #{decoder_forward.3}
  #allocation0 [shape = 'u32[]', space=smem, size = 0x4, offset = 0x4, fixed_abs, tag = 'smem constant byte address 0x4 - core index']
  #allocation1 [shape = 'u32[72,128]{1,0:T(1,128)}', space=vmem, size = 0x9000, scoped, tag = 'internal scratch']
  #allocation2 [shape = 'f32[8,32]{1,0:T(8,128)}', space=vmem, size = 0x1000, scoped, tag = 'scratch operand']
  #allocation3 [shape = 'bf16[8,32]{1,0:T(8,128)(2,1)}', space=vmem, size = 0x800, scoped, tag = 'scratch operand']
  #allocation4 [shape = 'f32[8,32]{1,0:T(8,128)}', space=vmem, size = 0x1000, scoped, tag = 'scratch operand']
  %s0 = inlined_call_operand.vmem [shape: bf16[2,8,32], index: 0, kind: input, shape index: {}]
  %s1 = inlined_call_operand.vmem [shape: bf16[2,4,8,8], index: 1, kind: input, shape index: {}]
  %s2 = inlined_call_operand.vmem [shape: bf16[2,4,8,8], index: 2, kind: input, shape index: {}]
  %s3 = inlined_call_operand.vmem [shape: bf16[2,4,8,8], index: 3, kind: input, shape index: {}]
  %s4 = inlined_call_operand.vmem [shape: f32[2,1,8], index: 4, kind: input, shape index: {}]
  %s5 = inlined_call_operand.vmem [shape: bf16[4,8,32], index: 5, kind: input, shape index: {}]
  %s6 = inlined_call_operand.vmem [shape: f32[1,32], index: 6, kind: input, shape index: {}]
  %s7 = inlined_call_operand.vmem [shape: f32[1,32], index: 7, kind: input, shape index: {}]
  %s8 = inlined_call_operand.vmem [shape: f32[1,32], index: 8, kind: input, shape index: {}]
  %s9 = inlined_call_operand.vmem [shape: bf16[32,64], index: 9, kind: input, shape index: {}]
  %s10 = inlined_call_operand.vmem [shape: f32[1,64], index: 10, kind: input, shape index: {}]
  %s11 = inlined_call_operand.vmem [shape: bf16[64,32], index: 11, kind: input, shape index: {}]
  %s12 = inlined_call_operand.vmem [shape: f32[1,32], index: 12, kind: input, shape index: {}]
  %s13 = inlined_call_operand.vmem [shape: f32[1,32], index: 13, kind: input, shape index: {}]
  %s14 = inlined_call_operand.vmem [shape: f32[1,32], index: 14, kind: input, shape index: {}]
  %s15 = inlined_call_operand.hbm [shape: f32[2,8,32], index: 15, kind: output, shape index: {}]
  %s16 = sld [smem:[#allocation0]]
  $region101: #{decoder_forward.3} parent=0
    _
  %s18 = ssub.s32 1, %s16
  %s19 = scalar_select 0, %s18, %s16
  $region1: #{decoder_forward.3} parent=0
    #allocation5 [shape = 'u8[8192]{0}', space=vmem, size = 0x2000, scoped, tag = 'output window, operand 0']
    #allocation6 [shape = 's32[2]{0}', space=sflag, size = 0x8, scoped, tag = 'scoped memory for decoder_forward.3']
    %20 = vsyncpa [#allocation6], 0
    %s21 = scalar_lea.sflag [#allocation6], 1
    %22 = vsyncpa %s21, 0
    loop: start=0, step=1, limit=4
    $region2: #{decoder_forward.3} parent=1 // loop_pre_header
      _
    $region3: #{decoder_forward.3} parent=1 // loop_header
      %s24 = sphi 0, %s28
      %p25 = scmp.ge.s32.totalorder %s24, 4
      %s31 = sphi 0, %s50
      %s32 = sphi 0, %s46
      %s33 = sphi 0, %s42
      %s34 = sphi 0, %s31
      %s35 = sphi 0, %s32
      %s36 = sphi 0, %s33
      %s37 = sphi 0, %s34
      %s38 = sphi 0, %s35
      %s39 = sphi 0, %s36
      %s55 = sphi 0, %s57
      %s58 = sphi 0, %s55
      %s59 = sphi 0, %s58
      %s75 = sphi 0, %s59
      %s83 = sphi 0, %s85
      %s86 = sphi 0, %s83
      %s87 = sphi 0, %s86
      %s103 = sphi 0, %s87
      %s109 = sphi 0, %s111
      %s112 = sphi 0, %s109
      %s113 = sphi 0, %s112
      %s129 = sphi 0, %s113
      %s135 = sphi 0, %s137
      %s138 = sphi 0, %s135
      %s139 = sphi 0, %s138
      %s155 = sphi 0, %s139
      %s161 = sphi 0, %s163
      %s164 = sphi 0, %s161
      %s165 = sphi 0, %s164
      %s181 = sphi 0, %s165
      %s185 = sphi 0, %s185
      %s187 = sphi 0, %s185
      %s188 = sphi 0, %s187
      %s202 = sphi 0, %s188
      %s206 = sphi 0, %s206
      %s208 = sphi 0, %s206
      %s209 = sphi 0, %s208
      %s223 = sphi 0, %s209
      %s227 = sphi 0, %s227
      %s229 = sphi 0, %s227
      %s230 = sphi 0, %s229
      %s244 = sphi 0, %s230
      %s248 = sphi 0, %s248
      %s250 = sphi 0, %s248
      %s251 = sphi 0, %s250
      %s265 = sphi 0, %s251
      %s271 = sphi 0, %s273
      %s274 = sphi 0, %s271
      %s275 = sphi 0, %s274
      %s291 = sphi 0, %s275
      %s297 = sphi 0, %s299
      %s300 = sphi 0, %s297
      %s301 = sphi 0, %s300
      %s317 = sphi 0, %s301
      %s323 = sphi 0, %s325
      %s326 = sphi 0, %s323
      %s327 = sphi 0, %s326
      %s343 = sphi 0, %s327
      %s347 = sphi 0, %s347
      %s349 = sphi 0, %s347
      %s350 = sphi 0, %s349
      %s364 = sphi 0, %s350
      %s368 = sphi 0, %s368
      %s370 = sphi 0, %s368
      %s371 = sphi 0, %s370
      %s385 = sphi 0, %s371
      %s389 = sphi 0, %s389
      %s391 = sphi 0, %s389
      %s392 = sphi 0, %s391
      %s406 = sphi 0, %s392
      %s414 = sphi 0, %s416
      %s417 = sphi 0, %s414
      %s418 = sphi 0, %s417
      %s434 = sphi 0, %s418
    $region4: #{decoder_forward.3} parent=1 // loop_header_branch
      %27 = sbr.rel (%p25) target = $region8
    $region5: #{decoder_forward.3} parent=1 // loop_body
      %s29 = ssub.s32 %s24, 1
      %s30 = ssub.s32 %s24, 2
      %s40 = sadd.s32 1, %s33
      %p41 = scmp.ge.s32.totalorder %s40, 1
      %s42 = scalar_select %p41, 0, %s40
      %s43 = sadd.s32 1, %s32
      %s44 = scalar_select %p41, %s43, %s32
      %p45 = scmp.ge.s32.totalorder %s44, 1
      %s46 = scalar_select %p45, 0, %s44
      %s47 = sadd.s32 1, %s31
      %s48 = scalar_select %p45, %s47, %s31
      %p49 = scmp.ge.s32.totalorder %s48, 2
      %s50 = scalar_select %p49, 0, %s48
      %s51 = ssub.s32 %s31, %s50
      %s52 = ssub.s32 %s32, %s46
      %s53 = sor.u32 %s51, %s52
      %p54 = scmp.eq.s32.totalorder %s53, 0
      %s56 = sadd.s32 %s55, 1
      %s57 = scalar_select %p54, %s55, %s56
      %p60 = pneg %p54
      %p61 = scmp.eq.s32.totalorder %s24, 1
      %p62 = por %p60, %p61
      %p63 = scmp.ne.s32.totalorder %s55, %s58
      %p64 = scmp.eq.s32.totalorder %s24, 0
      %p65 = por %p63, %p64
      %p66 = scmp.ne.s32.totalorder %s55, %s58
      %p67 = scmp.eq.s32.totalorder %s29, 1
      %p68 = por %p66, %p67
      %p69 = scmp.ne.s32.totalorder %s58, %s59
      %p70 = scmp.eq.s32.totalorder %s29, 0
      %p71 = por %p69, %p70
      %p72 = scmp.ne.s32.totalorder %s58, %s59
      %p73 = scmp.eq.s32.totalorder %s30, 1
      %p74 = por %p72, %p73
      %p76 = scmp.ne.s32.totalorder %s59, %s75
      %p77 = scmp.eq.s32.totalorder %s30, 0
      %p78 = por %p76, %p77
      %s79 = ssub.s32 %s31, %s50
      %s80 = ssub.s32 %s32, %s46
      %s81 = sor.u32 %s79, %s80
      %p82 = scmp.eq.s32.totalorder %s81, 0
      %s84 = sadd.s32 %s83, 1
      %s85 = scalar_select %p82, %s83, %s84
      %p88 = pneg %p82
      %p89 = scmp.eq.s32.totalorder %s24, 1
      %p90 = por %p88, %p89
      %p91 = scmp.ne.s32.totalorder %s83, %s86
      %p92 = scmp.eq.s32.totalorder %s24, 0
      %p93 = por %p91, %p92
      %p94 = scmp.ne.s32.totalorder %s83, %s86
      %p95 = scmp.eq.s32.totalorder %s29, 1
      %p96 = por %p94, %p95
      %p97 = scmp.ne.s32.totalorder %s86, %s87
      %p98 = scmp.eq.s32.totalorder %s29, 0
      %p99 = por %p97, %p98
      %p100 = scmp.ne.s32.totalorder %s86, %s87
      %p101 = scmp.eq.s32.totalorder %s30, 1
      %p102 = por %p100, %p101
      %p104 = scmp.ne.s32.totalorder %s87, %s103
      %p105 = scmp.eq.s32.totalorder %s30, 0
      %p106 = por %p104, %p105
      %s107 = ssub.s32 %s31, %s50
      %p108 = scmp.eq.s32.totalorder %s107, 0
      %s110 = sadd.s32 %s109, 1
      %s111 = scalar_select %p108, %s109, %s110
      %p114 = pneg %p108
      %p115 = scmp.eq.s32.totalorder %s24, 1
      %p116 = por %p114, %p115
      %p117 = scmp.ne.s32.totalorder %s109, %s112
      %p118 = scmp.eq.s32.totalorder %s24, 0
      %p119 = por %p117, %p118
      %p120 = scmp.ne.s32.totalorder %s109, %s112
      %p121 = scmp.eq.s32.totalorder %s29, 1
      %p122 = por %p120, %p121
      %p123 = scmp.ne.s32.totalorder %s112, %s113
      %p124 = scmp.eq.s32.totalorder %s29, 0
      %p125 = por %p123, %p124
      %p126 = scmp.ne.s32.totalorder %s112, %s113
      %p127 = scmp.eq.s32.totalorder %s30, 1
      %p128 = por %p126, %p127
      %p130 = scmp.ne.s32.totalorder %s113, %s129
      %p131 = scmp.eq.s32.totalorder %s30, 0
      %p132 = por %p130, %p131
      %s133 = ssub.s32 %s31, %s50
      %p134 = scmp.eq.s32.totalorder %s133, 0
      %s136 = sadd.s32 %s135, 1
      %s137 = scalar_select %p134, %s135, %s136
      %p140 = pneg %p134
      %p141 = scmp.eq.s32.totalorder %s24, 1
      %p142 = por %p140, %p141
      %p143 = scmp.ne.s32.totalorder %s135, %s138
      %p144 = scmp.eq.s32.totalorder %s24, 0
      %p145 = por %p143, %p144
      %p146 = scmp.ne.s32.totalorder %s135, %s138
      %p147 = scmp.eq.s32.totalorder %s29, 1
      %p148 = por %p146, %p147
      %p149 = scmp.ne.s32.totalorder %s138, %s139
      %p150 = scmp.eq.s32.totalorder %s29, 0
      %p151 = por %p149, %p150
      %p152 = scmp.ne.s32.totalorder %s138, %s139
      %p153 = scmp.eq.s32.totalorder %s30, 1
      %p154 = por %p152, %p153
      %p156 = scmp.ne.s32.totalorder %s139, %s155
      %p157 = scmp.eq.s32.totalorder %s30, 0
      %p158 = por %p156, %p157
      %s159 = ssub.s32 %s31, %s50
      %p160 = scmp.eq.s32.totalorder %s159, 0
      %s162 = sadd.s32 %s161, 1
      %s163 = scalar_select %p160, %s161, %s162
      %p166 = pneg %p160
      %p167 = scmp.eq.s32.totalorder %s24, 1
      %p168 = por %p166, %p167
      %p169 = scmp.ne.s32.totalorder %s161, %s164
      %p170 = scmp.eq.s32.totalorder %s24, 0
      %p171 = por %p169, %p170
      %p172 = scmp.ne.s32.totalorder %s161, %s164
      %p173 = scmp.eq.s32.totalorder %s29, 1
      %p174 = por %p172, %p173
      %p175 = scmp.ne.s32.totalorder %s164, %s165
      %p176 = scmp.eq.s32.totalorder %s29, 0
      %p177 = por %p175, %p176
      %p178 = scmp.ne.s32.totalorder %s164, %s165
      %p179 = scmp.eq.s32.totalorder %s30, 1
      %p180 = por %p178, %p179
      %p182 = scmp.ne.s32.totalorder %s165, %s181
      %p183 = scmp.eq.s32.totalorder %s30, 0
      %p184 = por %p182, %p183
      %s186 = sadd.s32 %s185, 1
      %p189 = scmp.eq.s32.totalorder %s24, 1
      %p190 = scmp.ne.s32.totalorder %s185, %s187
      %p191 = scmp.eq.s32.totalorder %s24, 0
      %p192 = por %p190, %p191
      %p193 = scmp.ne.s32.totalorder %s185, %s187
      %p194 = scmp.eq.s32.totalorder %s29, 1
      %p195 = por %p193, %p194
      %p196 = scmp.ne.s32.totalorder %s187, %s188
      %p197 = scmp.eq.s32.totalorder %s29, 0
      %p198 = por %p196, %p197
      %p199 = scmp.ne.s32.totalorder %s187, %s188
      %p200 = scmp.eq.s32.totalorder %s30, 1
      %p201 = por %p199, %p200
      %p203 = scmp.ne.s32.totalorder %s188, %s202
      %p204 = scmp.eq.s32.totalorder %s30, 0
      %p205 = por %p203, %p204
      %s207 = sadd.s32 %s206, 1
      %p210 = scmp.eq.s32.totalorder %s24, 1
      %p211 = scmp.ne.s32.totalorder %s206, %s208
      %p212 = scmp.eq.s32.totalorder %s24, 0
      %p213 = por %p211, %p212
      %p214 = scmp.ne.s32.totalorder %s206, %s208
      %p215 = scmp.eq.s32.totalorder %s29, 1
      %p216 = por %p214, %p215
      %p217 = scmp.ne.s32.totalorder %s208, %s209
      %p218 = scmp.eq.s32.totalorder %s29, 0
      %p219 = por %p217, %p218
      %p220 = scmp.ne.s32.totalorder %s208, %s209
      %p221 = scmp.eq.s32.totalorder %s30, 1
      %p222 = por %p220, %p221
      %p224 = scmp.ne.s32.totalorder %s209, %s223
      %p225 = scmp.eq.s32.totalorder %s30, 0
      %p226 = por %p224, %p225
      %s228 = sadd.s32 %s227, 1
      %p231 = scmp.eq.s32.totalorder %s24, 1
      %p232 = scmp.ne.s32.totalorder %s227, %s229
      %p233 = scmp.eq.s32.totalorder %s24, 0
      %p234 = por %p232, %p233
      %p235 = scmp.ne.s32.totalorder %s227, %s229
      %p236 = scmp.eq.s32.totalorder %s29, 1
      %p237 = por %p235, %p236
      %p238 = scmp.ne.s32.totalorder %s229, %s230
      %p239 = scmp.eq.s32.totalorder %s29, 0
      %p240 = por %p238, %p239
      %p241 = scmp.ne.s32.totalorder %s229, %s230
      %p242 = scmp.eq.s32.totalorder %s30, 1
      %p243 = por %p241, %p242
      %p245 = scmp.ne.s32.totalorder %s230, %s244
      %p246 = scmp.eq.s32.totalorder %s30, 0
      %p247 = por %p245, %p246
      %s249 = sadd.s32 %s248, 1
      %p252 = scmp.eq.s32.totalorder %s24, 1
      %p253 = scmp.ne.s32.totalorder %s248, %s250
      %p254 = scmp.eq.s32.totalorder %s24, 0
      %p255 = por %p253, %p254
      %p256 = scmp.ne.s32.totalorder %s248, %s250
      %p257 = scmp.eq.s32.totalorder %s29, 1
      %p258 = por %p256, %p257
      %p259 = scmp.ne.s32.totalorder %s250, %s251
      %p260 = scmp.eq.s32.totalorder %s29, 0
      %p261 = por %p259, %p260
      %p262 = scmp.ne.s32.totalorder %s250, %s251
      %p263 = scmp.eq.s32.totalorder %s30, 1
      %p264 = por %p262, %p263
      %p266 = scmp.ne.s32.totalorder %s251, %s265
      %p267 = scmp.eq.s32.totalorder %s30, 0
      %p268 = por %p266, %p267
      %s269 = ssub.s32 %s33, %s42
      %p270 = scmp.eq.s32.totalorder %s269, 0
      %s272 = sadd.s32 %s271, 1
      %s273 = scalar_select %p270, %s271, %s272
      %p276 = pneg %p270
      %p277 = scmp.eq.s32.totalorder %s24, 1
      %p278 = por %p276, %p277
      %p279 = scmp.ne.s32.totalorder %s271, %s274
      %p280 = scmp.eq.s32.totalorder %s24, 0
      %p281 = por %p279, %p280
      %p282 = scmp.ne.s32.totalorder %s271, %s274
      %p283 = scmp.eq.s32.totalorder %s29, 1
      %p284 = por %p282, %p283
      %p285 = scmp.ne.s32.totalorder %s274, %s275
      %p286 = scmp.eq.s32.totalorder %s29, 0
      %p287 = por %p285, %p286
      %p288 = scmp.ne.s32.totalorder %s274, %s275
      %p289 = scmp.eq.s32.totalorder %s30, 1
      %p290 = por %p288, %p289
      %p292 = scmp.ne.s32.totalorder %s275, %s291
      %p293 = scmp.eq.s32.totalorder %s30, 0
      %p294 = por %p292, %p293
      %s295 = ssub.s32 %s33, %s42
      %p296 = scmp.eq.s32.totalorder %s295, 0
      %s298 = sadd.s32 %s297, 1
      %s299 = scalar_select %p296, %s297, %s298
      %p302 = pneg %p296
      %p303 = scmp.eq.s32.totalorder %s24, 1
      %p304 = por %p302, %p303
      %p305 = scmp.ne.s32.totalorder %s297, %s300
      %p306 = scmp.eq.s32.totalorder %s24, 0
      %p307 = por %p305, %p306
      %p308 = scmp.ne.s32.totalorder %s297, %s300
      %p309 = scmp.eq.s32.totalorder %s29, 1
      %p310 = por %p308, %p309
      %p311 = scmp.ne.s32.totalorder %s300, %s301
      %p312 = scmp.eq.s32.totalorder %s29, 0
      %p313 = por %p311, %p312
      %p314 = scmp.ne.s32.totalorder %s300, %s301
      %p315 = scmp.eq.s32.totalorder %s30, 1
      %p316 = por %p314, %p315
      %p318 = scmp.ne.s32.totalorder %s301, %s317
      %p319 = scmp.eq.s32.totalorder %s30, 0
      %p320 = por %p318, %p319
      %s321 = ssub.s32 %s33, %s42
      %p322 = scmp.eq.s32.totalorder %s321, 0
      %s324 = sadd.s32 %s323, 1
      %s325 = scalar_select %p322, %s323, %s324
      %p328 = pneg %p322
      %p329 = scmp.eq.s32.totalorder %s24, 1
      %p330 = por %p328, %p329
      %p331 = scmp.ne.s32.totalorder %s323, %s326
      %p332 = scmp.eq.s32.totalorder %s24, 0
      %p333 = por %p331, %p332
      %p334 = scmp.ne.s32.totalorder %s323, %s326
      %p335 = scmp.eq.s32.totalorder %s29, 1
      %p336 = por %p334, %p335
      %p337 = scmp.ne.s32.totalorder %s326, %s327
      %p338 = scmp.eq.s32.totalorder %s29, 0
      %p339 = por %p337, %p338
      %p340 = scmp.ne.s32.totalorder %s326, %s327
      %p341 = scmp.eq.s32.totalorder %s30, 1
      %p342 = por %p340, %p341
      %p344 = scmp.ne.s32.totalorder %s327, %s343
      %p345 = scmp.eq.s32.totalorder %s30, 0
      %p346 = por %p344, %p345
      %s348 = sadd.s32 %s347, 1
      %p351 = scmp.eq.s32.totalorder %s24, 1
      %p352 = scmp.ne.s32.totalorder %s347, %s349
      %p353 = scmp.eq.s32.totalorder %s24, 0
      %p354 = por %p352, %p353
      %p355 = scmp.ne.s32.totalorder %s347, %s349
      %p356 = scmp.eq.s32.totalorder %s29, 1
      %p357 = por %p355, %p356
      %p358 = scmp.ne.s32.totalorder %s349, %s350
      %p359 = scmp.eq.s32.totalorder %s29, 0
      %p360 = por %p358, %p359
      %p361 = scmp.ne.s32.totalorder %s349, %s350
      %p362 = scmp.eq.s32.totalorder %s30, 1
      %p363 = por %p361, %p362
      %p365 = scmp.ne.s32.totalorder %s350, %s364
      %p366 = scmp.eq.s32.totalorder %s30, 0
      %p367 = por %p365, %p366
      %s369 = sadd.s32 %s368, 1
      %p372 = scmp.eq.s32.totalorder %s24, 1
      %p373 = scmp.ne.s32.totalorder %s368, %s370
      %p374 = scmp.eq.s32.totalorder %s24, 0
      %p375 = por %p373, %p374
      %p376 = scmp.ne.s32.totalorder %s368, %s370
      %p377 = scmp.eq.s32.totalorder %s29, 1
      %p378 = por %p376, %p377
      %p379 = scmp.ne.s32.totalorder %s370, %s371
      %p380 = scmp.eq.s32.totalorder %s29, 0
      %p381 = por %p379, %p380
      %p382 = scmp.ne.s32.totalorder %s370, %s371
      %p383 = scmp.eq.s32.totalorder %s30, 1
      %p384 = por %p382, %p383
      %p386 = scmp.ne.s32.totalorder %s371, %s385
      %p387 = scmp.eq.s32.totalorder %s30, 0
      %p388 = por %p386, %p387
      %s390 = sadd.s32 %s389, 1
      %p393 = scmp.eq.s32.totalorder %s24, 1
      %p394 = scmp.ne.s32.totalorder %s389, %s391
      %p395 = scmp.eq.s32.totalorder %s24, 0
      %p396 = por %p394, %p395
      %p397 = scmp.ne.s32.totalorder %s389, %s391
      %p398 = scmp.eq.s32.totalorder %s29, 1
      %p399 = por %p397, %p398
      %p400 = scmp.ne.s32.totalorder %s391, %s392
      %p401 = scmp.eq.s32.totalorder %s29, 0
      %p402 = por %p400, %p401
      %p403 = scmp.ne.s32.totalorder %s391, %s392
      %p404 = scmp.eq.s32.totalorder %s30, 1
      %p405 = por %p403, %p404
      %p407 = scmp.ne.s32.totalorder %s392, %s406
      %p408 = scmp.eq.s32.totalorder %s30, 0
      %p409 = por %p407, %p408
      %s410 = ssub.s32 %s31, %s50
      %s411 = ssub.s32 %s32, %s46
      %s412 = sor.u32 %s410, %s411
      %p413 = scmp.eq.s32.totalorder %s412, 0
      %s415 = sadd.s32 %s414, 1
      %s416 = scalar_select %p413, %s414, %s415
      %p419 = pneg %p413
      %p420 = scmp.eq.s32.totalorder %s24, 1
      %p421 = por %p419, %p420
      %p422 = scmp.ne.s32.totalorder %s414, %s417
      %p423 = scmp.eq.s32.totalorder %s24, 0
      %p424 = por %p422, %p423
      %p425 = scmp.ne.s32.totalorder %s414, %s417
      %p426 = scmp.eq.s32.totalorder %s29, 1
      %p427 = por %p425, %p426
      %p428 = scmp.ne.s32.totalorder %s417, %s418
      %p429 = scmp.eq.s32.totalorder %s29, 0
      %p430 = por %p428, %p429
      %p431 = scmp.ne.s32.totalorder %s417, %s418
      %p432 = scmp.eq.s32.totalorder %s30, 1
      %p433 = por %p431, %p432
      %p435 = scmp.ne.s32.totalorder %s418, %s434
      %p436 = scmp.eq.s32.totalorder %s30, 0
      %p437 = por %p435, %p436
      %p438 = scmp.le.s32.totalorder 1, %s24
      %p439 = scmp.lt.s32.totalorder %s24, 3
      %p440 = pnand %p438, %p439
      %p441 = pneg %p440
      // Predicated region
      $region9: #{decoder_forward.3} parent=5 // pred_check
        _
      $region10: #{decoder_forward.3} parent=5 // pred_check_branch
        %443 = sbr.rel (%p440) target = $region12
      $region11: #{decoder_forward.3} parent=5 // pred_region
        %s444 = ssub.s32 %s24, 1
        // Predicated region
        $region13: #{decoder_forward.3} parent=11 // pred_check
          %p445 = pneg %p198
        $region14: #{decoder_forward.3} parent=11 // pred_check_branch
          %447 = sbr.rel (%p445) target = $region16
        $region15: #{decoder_forward.3} parent=11 // pred_region
          _
        $region16: #{decoder_forward.3} parent=11 // pred_fallthru
          _
        // Predicated region
        $region17: #{decoder_forward.3} parent=11 // pred_check
          %p448 = pneg %p219
        $region18: #{decoder_forward.3} parent=11 // pred_check_branch
          %450 = sbr.rel (%p448) target = $region20
        $region19: #{decoder_forward.3} parent=11 // pred_region
          _
        $region20: #{decoder_forward.3} parent=11 // pred_fallthru
          _
        // Predicated region
        $region21: #{decoder_forward.3} parent=11 // pred_check
          %p451 = pneg %p240
        $region22: #{decoder_forward.3} parent=11 // pred_check_branch
          %453 = sbr.rel (%p451) target = $region24
        $region23: #{decoder_forward.3} parent=11 // pred_region
          _
        $region24: #{decoder_forward.3} parent=11 // pred_fallthru
          _
        // Predicated region
        $region25: #{decoder_forward.3} parent=11 // pred_check
          %p454 = pneg %p261
        $region26: #{decoder_forward.3} parent=11 // pred_check_branch
          %456 = sbr.rel (%p454) target = $region28
        $region27: #{decoder_forward.3} parent=11 // pred_region
          _
        $region28: #{decoder_forward.3} parent=11 // pred_fallthru
          _
        // Predicated region
        $region29: #{decoder_forward.3} parent=11 // pred_check
          %p457 = pneg %p287
        $region30: #{decoder_forward.3} parent=11 // pred_check_branch
          %459 = sbr.rel (%p457) target = $region32
        $region31: #{decoder_forward.3} parent=11 // pred_region
          %p460 = scmp.lt.s32.totalorder %s36, 0
          %s461 = scalar_select %p460, %s36, 0
          %s462 = smul.addr %s461, 4
          %s463 = scalar_lea.vmem %s9, %s462
        $region32: #{decoder_forward.3} parent=11 // pred_fallthru
          _
        // Predicated region
        $region33: #{decoder_forward.3} parent=11 // pred_check
          %p464 = pneg %p313
        $region34: #{decoder_forward.3} parent=11 // pred_check_branch
          %466 = sbr.rel (%p464) target = $region36
        $region35: #{decoder_forward.3} parent=11 // pred_region
          %p467 = scmp.lt.s32.totalorder %s36, 0
          %s468 = scalar_select %p467, %s36, 0
          %s469 = scalar_lea.vmem %s10, %s468
        $region36: #{decoder_forward.3} parent=11 // pred_fallthru
          _
        // Predicated region
        $region37: #{decoder_forward.3} parent=11 // pred_check
          %p470 = pneg %p339
        $region38: #{decoder_forward.3} parent=11 // pred_check_branch
          %472 = sbr.rel (%p470) target = $region40
        $region39: #{decoder_forward.3} parent=11 // pred_region
          %s473 = smul.u32 8, %s36
          %p474 = scmp.lt.s32.totalorder %s473, 7
          %s475 = scalar_select %p474, %s473, 7
          %s476 = smul.addr %s475, 4
          %s477 = scalar_lea.vmem %s11, %s476
          %s478 = smul.u32 8, %s36
        $region40: #{decoder_forward.3} parent=11 // pred_fallthru
          _
        // Predicated region
        $region41: #{decoder_forward.3} parent=11 // pred_check
          %p479 = pneg %p360
        $region42: #{decoder_forward.3} parent=11 // pred_check_branch
          %481 = sbr.rel (%p479) target = $region44
        $region43: #{decoder_forward.3} parent=11 // pred_region
          _
        $region44: #{decoder_forward.3} parent=11 // pred_fallthru
          _
        // Predicated region
        $region45: #{decoder_forward.3} parent=11 // pred_check
          %p482 = pneg %p381
        $region46: #{decoder_forward.3} parent=11 // pred_check_branch
          %484 = sbr.rel (%p482) target = $region48
        $region47: #{decoder_forward.3} parent=11 // pred_region
          _
        $region48: #{decoder_forward.3} parent=11 // pred_fallthru
          _
        // Predicated region
        $region49: #{decoder_forward.3} parent=11 // pred_check
          %p485 = pneg %p402
        $region50: #{decoder_forward.3} parent=11 // pred_check_branch
          %487 = sbr.rel (%p485) target = $region52
        $region51: #{decoder_forward.3} parent=11 // pred_region
          _
        $region52: #{decoder_forward.3} parent=11 // pred_fallthru
          _
      $region12: #{decoder_forward.3} parent=5 // pred_fallthru
        _
      %p488 = scmp.lt.s32.totalorder %s24, 2
      // Predicated region
      $region53: #{decoder_forward.3} parent=5 // pred_check
        %p489 = pneg %p488
      $region54: #{decoder_forward.3} parent=5 // pred_check_branch
        %491 = sbr.rel (%p489) target = $region56
      $region55: #{decoder_forward.3} parent=5 // pred_region
        // Predicated region
        $region57: #{decoder_forward.3} parent=55 // pred_check
          %p492 = pneg %p65
        $region58: #{decoder_forward.3} parent=55 // pred_check_branch
          %494 = sbr.rel (%p492) target = $region60
        $region59: #{decoder_forward.3} parent=55 // pred_region
          %p495 = scmp.lt.s32.totalorder %s31, 1
          %s496 = scalar_select %p495, %s31, 1
          %p497 = scmp.lt.s32.totalorder %s32, 0
          %s498 = scalar_select %p497, %s32, 0
          %s499 = sadd.s32 %s498, %s496
          %s500 = smul.addr %s499, 4
          %s501 = scalar_lea.vmem %s0, %s500
        $region60: #{decoder_forward.3} parent=55 // pred_fallthru
          _
        // Predicated region
        $region61: #{decoder_forward.3} parent=55 // pred_check
          %p502 = pneg %p93
        $region62: #{decoder_forward.3} parent=55 // pred_check_branch
          %504 = sbr.rel (%p502) target = $region64
        $region63: #{decoder_forward.3} parent=55 // pred_region
          %p505 = scmp.lt.s32.totalorder %s31, 1
          %s506 = scalar_select %p505, %s31, 1
          %p507 = scmp.lt.s32.totalorder %s32, 0
          %s508 = scalar_select %p507, %s32, 0
          %s509 = smul.addr %s506, 4
          %s510 = sadd.s32 %s508, %s509
          %s511 = smul.addr %s510, 4
          %s512 = scalar_lea.vmem %s1, %s511
        $region64: #{decoder_forward.3} parent=55 // pred_fallthru
          _
        // Predicated region
        $region65: #{decoder_forward.3} parent=55 // pred_check
          %p513 = pneg %p119
        $region66: #{decoder_forward.3} parent=55 // pred_check_branch
          %515 = sbr.rel (%p513) target = $region68
        $region67: #{decoder_forward.3} parent=55 // pred_region
          %p516 = scmp.lt.s32.totalorder %s31, 1
          %s517 = scalar_select %p516, %s31, 1
          %s518 = smul.addr %s517, 4
          %s519 = smul.addr %s518, 4
          %s520 = scalar_lea.vmem %s2, %s519
        $region68: #{decoder_forward.3} parent=55 // pred_fallthru
          _
        // Predicated region
        $region69: #{decoder_forward.3} parent=55 // pred_check
          %p521 = pneg %p145
        $region70: #{decoder_forward.3} parent=55 // pred_check_branch
          %523 = sbr.rel (%p521) target = $region72
        $region71: #{decoder_forward.3} parent=55 // pred_region
          %p524 = scmp.lt.s32.totalorder %s31, 1
          %s525 = scalar_select %p524, %s31, 1
          %s526 = smul.addr %s525, 4
          %s527 = smul.addr %s526, 4
          %s528 = scalar_lea.vmem %s3, %s527
        $region72: #{decoder_forward.3} parent=55 // pred_fallthru
          _
        // Predicated region
        $region73: #{decoder_forward.3} parent=55 // pred_check
          %p529 = pneg %p171
        $region74: #{decoder_forward.3} parent=55 // pred_check_branch
          %531 = sbr.rel (%p529) target = $region76
        $region75: #{decoder_forward.3} parent=55 // pred_region
          %p532 = scmp.lt.s32.totalorder %s31, 1
          %s533 = scalar_select %p532, %s31, 1
          %s534 = scalar_lea.vmem %s4, %s533
        $region76: #{decoder_forward.3} parent=55 // pred_fallthru
          _
      $region56: #{decoder_forward.3} parent=5 // pred_fallthru
        _
      %p535 = scmp.le.s32.totalorder 1, %s24
      %p536 = scmp.lt.s32.totalorder %s24, 3
      %p537 = pnand %p535, %p536
      %p538 = pneg %p537
      // Predicated region
      $region77: #{decoder_forward.3} parent=5 // pred_check
        _
      $region78: #{decoder_forward.3} parent=5 // pred_check_branch
        %540 = sbr.rel (%p537) target = $region80
      $region79: #{decoder_forward.3} parent=5 // pred_region
        %s541 = ssub.s32 %s24, 1
        %p542 = scmp.lt.s32.totalorder %s34, 1
        %s543 = scalar_select %p542, %s34, 1
        %p544 = scmp.lt.s32.totalorder %s35, 0
        %s545 = scalar_select %p544, %s35, 0
        %s546 = sadd.s32 %s545, %s543
        %s547 = smul.addr %s546, 4
        %s548 = scalar_lea.vmem %s0, %s547
        %p549 = pneg %p71
        %p550 = pneg %p68
        %p551 = scmp.lt.s32.totalorder %s34, 1
        %s552 = scalar_select %p551, %s34, 1
        %p553 = scmp.lt.s32.totalorder %s35, 0
        %s554 = scalar_select %p553, %s35, 0
        %s555 = smul.addr %s552, 4
        %s556 = sadd.s32 %s554, %s555
        %s557 = smul.addr %s556, 4
        %s558 = scalar_lea.vmem %s1, %s557
        %p559 = pneg %p99
        %p560 = pneg %p96
        %p561 = scmp.lt.s32.totalorder %s34, 1
        %s562 = scalar_select %p561, %s34, 1
        %s563 = smul.addr %s562, 4
        %s564 = smul.addr %s563, 4
        %s565 = scalar_lea.vmem %s2, %s564
        %p566 = pneg %p125
        %p567 = pneg %p122
        %p568 = scmp.lt.s32.totalorder %s34, 1
        %s569 = scalar_select %p568, %s34, 1
        %s570 = smul.addr %s569, 4
        %s571 = smul.addr %s570, 4
        %s572 = scalar_lea.vmem %s3, %s571
        %p573 = pneg %p151
        %p574 = pneg %p148
        %p575 = scmp.lt.s32.totalorder %s34, 1
        %s576 = scalar_select %p575, %s34, 1
        %s577 = scalar_lea.vmem %s4, %s576
        %p578 = pneg %p177
        %p579 = pneg %p174
        %p580 = pneg %p198
        %p581 = pneg %p195
        %p582 = pneg %p219
        %p583 = pneg %p216
        %p584 = pneg %p240
        %p585 = pneg %p237
        %p586 = pneg %p261
        %p587 = pneg %p258
        %p588 = scmp.lt.s32.totalorder %s36, 0
        %s589 = scalar_select %p588, %s36, 0
        %s590 = smul.addr %s589, 4
        %s591 = scalar_lea.vmem %s9, %s590
        %p592 = pneg %p287
        %p593 = pneg %p284
        %p594 = scmp.lt.s32.totalorder %s36, 0
        %s595 = scalar_select %p594, %s36, 0
        %s596 = scalar_lea.vmem %s10, %s595
        %p597 = pneg %p313
        %p598 = pneg %p310
        %s599 = smul.u32 8, %s36
        %p600 = scmp.lt.s32.totalorder %s599, 7
        %s601 = scalar_select %p600, %s599, 7
        %s602 = smul.addr %s601, 4
        %s603 = scalar_lea.vmem %s11, %s602
        %p604 = pneg %p339
        %p605 = pneg %p336
        %p606 = pneg %p360
        %p607 = pneg %p357
        %p608 = pneg %p381
        %p609 = pneg %p378
        %p610 = pneg %p402
        %p611 = pneg %p399
        %p612 = pneg %p430
        %p613 = pneg %p427
        %s614 = sand.u32 %s417, 1
        %s615 = scalar_lea.sflag [#allocation6], %s614
        %s616 = sand.u32 %s417, 1
        %s617 = smul.addr %s616, 8
        %s618 = scalar_lea.vmem [#allocation5], %s617
        %p619 = scmp.lt.s32.totalorder %s34, 1
        %s620 = scalar_select %p619, %s34, 1
        %p621 = scmp.lt.s32.totalorder %s35, 0
        %s622 = scalar_select %p621, %s35, 0
        %s623 = sadd.s32 %s622, %s620
        %s624 = smul.addr %s623, 4
        %s625 = scalar_lea.vmem %s0, %s624
        %p626 = scmp.lt.s32.totalorder %s34, 1
        %s627 = scalar_select %p626, %s34, 1
        %p628 = scmp.lt.s32.totalorder %s35, 0
        %s629 = scalar_select %p628, %s35, 0
        %s630 = smul.addr %s627, 4
        %s631 = sadd.s32 %s629, %s630
        %s632 = smul.addr %s631, 4
        %s633 = scalar_lea.vmem %s1, %s632
        %p634 = scmp.lt.s32.totalorder %s34, 1
        %s635 = scalar_select %p634, %s34, 1
        %s636 = smul.addr %s635, 4
        %s637 = smul.addr %s636, 4
        %s638 = scalar_lea.vmem %s2, %s637
        %p639 = scmp.lt.s32.totalorder %s34, 1
        %s640 = scalar_select %p639, %s34, 1
        %s641 = smul.addr %s640, 4
        %s642 = smul.addr %s641, 4
        %s643 = scalar_lea.vmem %s3, %s642
        %p644 = scmp.lt.s32.totalorder %s34, 1
        %s645 = scalar_select %p644, %s34, 1
        %s646 = scalar_lea.vmem %s4, %s645
        %p647 = scmp.lt.s32.totalorder %s36, 0
        %s648 = scalar_select %p647, %s36, 0
        %s649 = smul.addr %s648, 4
        %s650 = scalar_lea.vmem %s9, %s649
        %p651 = scmp.lt.s32.totalorder %s36, 0
        %s652 = scalar_select %p651, %s36, 0
        %s653 = scalar_lea.vmem %s10, %s652
        %s654 = smul.u32 8, %s36
        %p655 = scmp.lt.s32.totalorder %s654, 7
        %s656 = scalar_select %p655, %s654, 7
        %s657 = smul.addr %s656, 4
        %s658 = scalar_lea.vmem %s11, %s657
        %s659 = smul.u32 8, %s36
        %p661 = scmp.eq.s32.totalorder %s36, 0
        // Predicated region
        $region81: #{decoder_forward.3} parent=79 // pred_check
          %p662 = pneg %p661
        $region82: #{decoder_forward.3} parent=79 // pred_check_branch
          %664 = sbr.rel (%p662) target = $region84
        $region83: #{decoder_forward.3} parent=79 // pred_region
          %v665 = vld [vmem:[%s633] sm:$0xf]
          %v666 = vld [vmem:[%s633 + $0x4] sm:$0xf]
          %v667 = vld [vmem:[%s633 + $0x8] sm:$0xf]
          %v668 = vld [vmem:[%s633 + $0xc] sm:$0xf]
          %v669 = vld [vmem:[%s638] sm:$0xf]
          %v670 = vld [vmem:[%s638 + $0x4] sm:$0xf]
          %v671 = vld [vmem:[%s638 + $0x8] sm:$0xf]
          %v672 = vld [vmem:[%s638 + $0xc] sm:$0xf]
          %v673 = vld [vmem:[%s646] sm:$0x1]
          %v675 = vperm.slane %v673, 0
          %vm677 = vcmask 64512
          %v679 = vsel %vm677, %v665, 0
          %v682 = vsel %vm677, %v669, 0
          %684 = vmatpush.bf16.xpose.msra.mxu0 0
          %685 = vmatpush.bf16.xpose.msra.mxu0 0
          %686 = vmatpush.bf16.xpose.msra.mxu0 0
          %687 = vmatpush.bf16.xpose.msra.mxu0 0
          %688 = vmatpush.bf16.xpose.msra.mxu0 0
          %689 = vmatpush.bf16.xpose.msra.mxu0 0
          %690 = vmatpush.bf16.xpose.msra.mxu0 0
          %691 = vmatpush.bf16.xpose.msra.mxu0 %v682
          %692 = vmatmul.bf16.gmra.mxu0 %v679
          %v693 = vpop.f32.mrf.mxu0
          %v694 = vadd.f32 %v675, %v693
          %v695 = vpop.f32.mrf.mxu0
          %696 = vdwg.mxu0
          %v698 = vsel %vm677, %v666, 0
          %v701 = vsel %vm677, %v670, 0
          %703 = vmatpush.bf16.xpose.msra.mxu0 0
          %704 = vmatpush.bf16.xpose.msra.mxu0 0
          %705 = vmatpush.bf16.xpose.msra.mxu0 0
          %706 = vmatpush.bf16.xpose.msra.mxu0 0
          %707 = vmatpush.bf16.xpose.msra.mxu0 0
          %708 = vmatpush.bf16.xpose.msra.mxu0 0
          %709 = vmatpush.bf16.xpose.msra.mxu0 0
          %710 = vmatpush.bf16.xpose.msra.mxu0 %v701
          %711 = vmatmul.bf16.gmra.mxu0 %v698
          %v712 = vpop.f32.mrf.mxu0
          %v713 = vadd.f32 %v675, %v712
          %v714 = vpop.f32.mrf.mxu0
          %715 = vdwg.mxu0
          %v717 = vsel %vm677, %v667, 0
          %v720 = vsel %vm677, %v671, 0
          %722 = vmatpush.bf16.xpose.msra.mxu0 0
          %723 = vmatpush.bf16.xpose.msra.mxu0 0
          %724 = vmatpush.bf16.xpose.msra.mxu0 0
          %725 = vmatpush.bf16.xpose.msra.mxu0 0
          %726 = vmatpush.bf16.xpose.msra.mxu0 0
          %727 = vmatpush.bf16.xpose.msra.mxu0 0
          %728 = vmatpush.bf16.xpose.msra.mxu0 0
          %729 = vmatpush.bf16.xpose.msra.mxu0 %v720
          %730 = vmatmul.bf16.gmra.mxu0 %v717
          %v731 = vpop.f32.mrf.mxu0
          %v732 = vadd.f32 %v675, %v731
          %v733 = vpop.f32.mrf.mxu0
          %734 = vdwg.mxu0
          %v736 = vsel %vm677, %v668, 0
          %v739 = vsel %vm677, %v672, 0
          %741 = vmatpush.bf16.xpose.msra.mxu0 0
          %742 = vmatpush.bf16.xpose.msra.mxu0 0
          %743 = vmatpush.bf16.xpose.msra.mxu0 0
          %744 = vmatpush.bf16.xpose.msra.mxu0 0
          %745 = vmatpush.bf16.xpose.msra.mxu0 0
          %746 = vmatpush.bf16.xpose.msra.mxu0 0
          %747 = vmatpush.bf16.xpose.msra.mxu0 0
          %748 = vmatpush.bf16.xpose.msra.mxu0 %v739
          %749 = vmatmul.bf16.gmra.mxu0 %v736
          %v750 = vpop.f32.mrf.mxu0
          %v751 = vadd.f32 %v675, %v750
          %v752 = vpop.f32.mrf.mxu0
          %753 = vdwg.mxu0
          %v754 = vsel %vm677, %v694, -inf
          %755 = vmax.xlane.f32.xlu0 %v754
          %v756 = vpop.xlane.xlu0 %755
          %v757 = vsel %vm677, %v713, -inf
          %758 = vmax.xlane.f32.xlu0 %v757
          %v759 = vpop.xlane.xlu0 %758
          %v760 = vsel %vm677, %v732, -inf
          %761 = vmax.xlane.f32.xlu0 %v760
          %v762 = vpop.xlane.xlu0 %761
          %v763 = vsel %vm677, %v751, -inf
          %764 = vmax.xlane.f32.xlu0 %v763
          %v765 = vpop.xlane.xlu0 %764
          %v766 = vsub.f32 %v694, %v756
          %v767 = vsub.f32 %v713, %v759
          %v768 = vsub.f32 %v732, %v762
          %v769 = vsub.f32 %v751, %v765
          %v770 = vmul.f32 %v766, 1.442695
          %v771 = vpow.pop %v770
          %v772 = vmul.f32 %v767, 1.442695
          %v773 = vpow.pop %v772
          %v774 = vmul.f32 %v768, 1.442695
          %v775 = vpow.pop %v774
          %v776 = vmul.f32 %v769, 1.442695
          %v777 = vpow.pop %v776
          %v778 = vsel %vm677, %v771, 0.0
          %779 = vadd.xlane.f32.xlu0 %v778
          %v780 = vpop.xlane.xlu0 %779
          %v781 = vsel %vm677, %v773, 0.0
          %782 = vadd.xlane.f32.xlu0 %v781
          %v783 = vpop.xlane.xlu0 %782
          %v784 = vsel %vm677, %v775, 0.0
          %785 = vadd.xlane.f32.xlu0 %v784
          %v786 = vpop.xlane.xlu0 %785
          %v787 = vsel %vm677, %v777, 0.0
          %788 = vadd.xlane.f32.xlu0 %v787
          %v789 = vpop.xlane.xlu0 %788
          %v790 = vpack.c.bf16 %v771, %v771
          %v791 = vpack.c.bf16 %v773, %v773
          %v792 = vpack.c.bf16 %v775, %v775
          %v793 = vpack.c.bf16 %v777, %v777
          %v794 = vld [vmem:[%s643] sm:$0xf]
          %v795 = vld [vmem:[%s643 + $0x4] sm:$0xf]
          %v796 = vld [vmem:[%s643 + $0x8] sm:$0xf]
          %v797 = vld [vmem:[%s643 + $0xc] sm:$0xf]
          %v799 = vsel %vm677, %v790, 0
          %vm801 = vcmask 1043456
          %v803 = vsel %vm801, %v794, 0
          %805 = vmatpush.bf16.msra.mxu0 0
          %806 = vmatpush.bf16.msra.mxu0 0
          %807 = vmatpush.bf16.msra.mxu0 0
          %808 = vmatpush.bf16.msra.mxu0 0
          %809 = vmatpush.bf16.msra.mxu0 0
          %810 = vmatpush.bf16.msra.mxu0 0
          %811 = vmatpush.bf16.msra.mxu0 0
          %812 = vmatpush.bf16.msra.mxu0 %v803
          %813 = vmatmul.bf16.gmra.mxu0 %v799
          %v814 = vpop.f32.mrf.mxu0
          %v815 = vadd.f32 0.0, %v814
          %v816 = vpop.f32.mrf.mxu0
          %817 = vdwg.mxu0
          %v819 = vsel %vm677, %v791, 0
          %v822 = vsel %vm801, %v795, 0
          %824 = vmatpush.bf16.msra.mxu0 0
          %825 = vmatpush.bf16.msra.mxu0 0
          %826 = vmatpush.bf16.msra.mxu0 0
          %827 = vmatpush.bf16.msra.mxu0 0
          %828 = vmatpush.bf16.msra.mxu0 0
          %829 = vmatpush.bf16.msra.mxu0 0
          %830 = vmatpush.bf16.msra.mxu0 0
          %831 = vmatpush.bf16.msra.mxu0 %v822
          %832 = vmatmul.bf16.gmra.mxu0 %v819
          %v833 = vpop.f32.mrf.mxu0
          %v834 = vadd.f32 0.0, %v833
          %v835 = vpop.f32.mrf.mxu0
          %836 = vdwg.mxu0
          %v838 = vsel %vm677, %v792, 0
          %v841 = vsel %vm801, %v796, 0
          %843 = vmatpush.bf16.msra.mxu0 0
          %844 = vmatpush.bf16.msra.mxu0 0
          %845 = vmatpush.bf16.msra.mxu0 0
          %846 = vmatpush.bf16.msra.mxu0 0
          %847 = vmatpush.bf16.msra.mxu0 0
          %848 = vmatpush.bf16.msra.mxu0 0
          %849 = vmatpush.bf16.msra.mxu0 0
          %850 = vmatpush.bf16.msra.mxu0 %v841
          %851 = vmatmul.bf16.gmra.mxu0 %v838
          %v852 = vpop.f32.mrf.mxu0
          %v853 = vadd.f32 0.0, %v852
          %v854 = vpop.f32.mrf.mxu0
          %855 = vdwg.mxu0
          %v857 = vsel %vm677, %v793, 0
          %v860 = vsel %vm801, %v797, 0
          %862 = vmatpush.bf16.msra.mxu0 0
          %863 = vmatpush.bf16.msra.mxu0 0
          %864 = vmatpush.bf16.msra.mxu0 0
          %865 = vmatpush.bf16.msra.mxu0 0
          %866 = vmatpush.bf16.msra.mxu0 0
          %867 = vmatpush.bf16.msra.mxu0 0
          %868 = vmatpush.bf16.msra.mxu0 0
          %869 = vmatpush.bf16.msra.mxu0 %v860
          %870 = vmatmul.bf16.gmra.mxu0 %v857
          %v871 = vpop.f32.mrf.mxu0
          %v872 = vadd.f32 0.0, %v871
          %v873 = vpop.f32.mrf.mxu0
          %874 = vdwg.mxu0
          %v875 = vrcp.pop %v780
          %v876 = vrcp.pop %v783
          %v877 = vrcp.pop %v786
          %v878 = vrcp.pop %v789
          %v879 = vmul.f32 %v815, %v875
          %v880 = vmul.f32 %v834, %v876
          %v881 = vmul.f32 %v853, %v877
          %v882 = vmul.f32 %v872, %v878
          %v883 = vpack.c.bf16 %v879, %v879
          %v884 = vpack.c.bf16 %v880, %v880
          %v885 = vpack.c.bf16 %v881, %v881
          %v886 = vpack.c.bf16 %v882, %v882
          %v887 = vld [vmem:[%s5] sm:$0xf]
          %s888 = scalar_lea.vmem %s5, 4
          %v889 = vld [vmem:[%s888] sm:$0xf]
          %v891 = vsel %vm677, %v884, 0
          %v894 = vsel %vm801, %v889, 0
          %896 = vmatpush.bf16.msra.mxu0 0
          %897 = vmatpush.bf16.msra.mxu0 0
          %898 = vmatpush.bf16.msra.mxu0 0
          %899 = vmatpush.bf16.msra.mxu0 0
          %900 = vmatpush.bf16.msra.mxu0 0
          %901 = vmatpush.bf16.msra.mxu0 0
          %902 = vmatpush.bf16.msra.mxu0 0
          %903 = vmatpush.bf16.msra.mxu0 %v894
          %904 = vmatmul.bf16.gmra.mxu0 %v891
          %v905 = vpop.f32.mrf.mxu0
          %v906 = vadd.f32 0.0, %v905
          %v907 = vpop.f32.mrf.mxu0
          %908 = vdwg.mxu0
          %v910 = vsel %vm677, %v883, 0
          %v913 = vsel %vm801, %v887, 0
          %915 = vmatpush.bf16.msra.mxu0 0
          %916 = vmatpush.bf16.msra.mxu0 0
          %917 = vmatpush.bf16.msra.mxu0 0
          %918 = vmatpush.bf16.msra.mxu0 0
          %919 = vmatpush.bf16.msra.mxu0 0
          %920 = vmatpush.bf16.msra.mxu0 0
          %921 = vmatpush.bf16.msra.mxu0 0
          %922 = vmatpush.bf16.msra.mxu0 %v913
          %923 = vmatmul.bf16.gmra.mxu0 %v910
          %v924 = vpop.f32.mrf.mxu0
          %v925 = vadd.f32 %v906, %v924
          %v926 = vpop.f32.mrf.mxu0
          %927 = vdwg.mxu0
          %s928 = scalar_lea.vmem %s5, 8
          %v929 = vld [vmem:[%s928] sm:$0xf]
          %v931 = vsel %vm677, %v885, 0
          %v934 = vsel %vm801, %v929, 0
          %936 = vmatpush.bf16.msra.mxu0 0
          %937 = vmatpush.bf16.msra.mxu0 0
          %938 = vmatpush.bf16.msra.mxu0 0
          %939 = vmatpush.bf16.msra.mxu0 0
          %940 = vmatpush.bf16.msra.mxu0 0
          %941 = vmatpush.bf16.msra.mxu0 0
          %942 = vmatpush.bf16.msra.mxu0 0
          %943 = vmatpush.bf16.msra.mxu0 %v934
          %944 = vmatmul.bf16.gmra.mxu0 %v931
          %v945 = vpop.f32.mrf.mxu0
          %v946 = vadd.f32 0.0, %v945
          %v947 = vpop.f32.mrf.mxu0
          %948 = vdwg.mxu0
          %v949 = vadd.f32 %v925, %v946
          %s950 = scalar_lea.vmem %s5, 12
          %v951 = vld [vmem:[%s950] sm:$0xf]
          %v953 = vsel %vm677, %v886, 0
          %v956 = vsel %vm801, %v951, 0
          %958 = vmatpush.bf16.msra.mxu0 0
          %959 = vmatpush.bf16.msra.mxu0 0
          %960 = vmatpush.bf16.msra.mxu0 0
          %961 = vmatpush.bf16.msra.mxu0 0
          %962 = vmatpush.bf16.msra.mxu0 0
          %963 = vmatpush.bf16.msra.mxu0 0
          %964 = vmatpush.bf16.msra.mxu0 0
          %965 = vmatpush.bf16.msra.mxu0 %v956
          %966 = vmatmul.bf16.gmra.mxu0 %v953
          %v967 = vpop.f32.mrf.mxu0
          %v968 = vadd.f32 0.0, %v967
          %v969 = vpop.f32.mrf.mxu0
          %970 = vdwg.mxu0
          %v971 = vadd.f32 %v949, %v968
          %v972 = vld [vmem:[%s6] sm:$0x1]
          %v974 = vperm.slane %v972, 0
          %v976 = vadd.f32 %v971, %v974
          %v977 = vld [vmem:[%s625] sm:$0xf]
          %v978 = vunpack.c.l.bf16 %v977
          %v979 = vadd.f32 %v978, %v976
          %v980 = vld [vmem:[%s7] sm:$0x1]
          %v981 = vld [vmem:[%s8] sm:$0x1]
          %vm982 = vcmask 261120
          %v983 = vsel %vm982, %v979, 0.0
          %984 = vadd.xlane.f32.xlu0 %v983
          %v985 = vpop.xlane.xlu0 %984
          %v986 = vrcp.pop 32.0
          %v987 = vmul.f32 32.0, %v986
          %v988 = vsub.f32 1.0, %v987
          %v989 = vmul.f32 %v986, %v988
          %v990 = vadd.f32 %v986, %v989
          %vm991 = vweird.f32 %v986
          %v992 = vsel %vm991, %v986, %v990
          %v993 = vmul.f32 %v985, %v992
          %v994 = vsub.f32 %v979, %v993
          %v995 = vmul.f32 %v994, %v994
          %v996 = vsel %vm982, %v995, 0.0
          %997 = vadd.xlane.f32.xlu0 %v996
          %v998 = vpop.xlane.xlu0 %997
          %v999 = vmul.f32 %v998, %v992
          %v1000 = vadd.f32 %v999, 1e-05
          %v1001 = vrsqrt.pop %v1000
          %v1002 = vmul.f32 %v1001, %v1000
          %v1003 = vmul.f32 %v1002, %v1001
          %v1004 = vmul.f32 0.5, %v1003
          %v1005 = vsub.f32 1.5, %v1004
          %v1006 = vmul.f32 %v1001, %v1005
          %vm1007 = vweird.f32 %v1000
          %vm1008 = vweird.f32 %v1001
          %vm1009 = vmor %vm1007, %vm1008
          %v1010 = vsel %vm1009, %v1001, %v1006
          %v1011 = vmul.f32 %v994, %v1010
          %v1013 = vperm.slane %v980, 0
          %v1015 = vmul.f32 %v1011, %v1013
          %v1017 = vperm.slane %v981, 0
          %v1019 = vadd.f32 %v1015, %v1017
          %1020 = vst.msk [vmem:[#allocation2] sm:$0xff] %vm982, %v1019
          %v1021 = vpack.c.bf16 %v1019, %v1019
          %vm1022 = vcmask 257024
          %1023 = vst.msk [vmem:[#allocation3] sm:$0xf] %vm1022, %v1021
          %1024 = vst.msk [vmem:[#allocation4] sm:$0xff] %vm982, 0.0
        $region84: #{decoder_forward.3} parent=79 // pred_fallthru
          _
        %v1025 = vld [vmem:[#allocation3] sm:$0xf]
        %v1026 = vld [vmem:[%s650] sm:$0xf]
        %v1027 = vld [vmem:[%s650 + $0x4] sm:$0xf]
        %v1028 = vld [vmem:[%s650 + $0x8] sm:$0xf]
        %v1029 = vld [vmem:[%s650 + $0xc] sm:$0xf]
        %v1030 = vld [vmem:[%s653] sm:$0x1]
        %v1032 = vperm.slane %v1030, 0
        %v1038 = vunpack.c.l.b16 %v1026
        %v1039 = vunpack.c.l.b16 %v1027
        %v1040 = vunpack.c.l.b16 %v1028
        %v1041 = vunpack.c.l.b16 %v1029
        %v1042 = vpack.c.b16 %v1039, %v1038
        %v1043 = vpack.c.b16 %v1041, %v1040
        %vm1046 = vcmask 261120
        %v1048 = vsel %vm1046, %v1025, 0
        %1050 = vmatpush.bf16.msra.mxu0 0
        %1051 = vmatpush.bf16.msra.mxu0 0
        %1052 = vmatpush.bf16.msra.mxu0 0
        %1053 = vmatpush.bf16.msra.mxu0 0
        %1054 = vmatpush.bf16.msra.mxu0 0
        %1055 = vmatpush.bf16.msra.mxu0 0
        %1056 = vmatpush.bf16.msra.mxu0 %v1043
        %1057 = vmatpush.bf16.msra.mxu0 %v1042
        %1058 = vmatmul.bf16.gmra.mxu0 %v1048
        %v1059 = vpop.f32.mrf.mxu0
        %v1060 = vadd.f32 %v1032, %v1059
        %v1061 = vpop.f32.mrf.mxu0
        %1062 = vdwg.mxu0
        %v1063 = vmul.f32 %v1060, 0.5
        %v1064 = vmul.f32 %v1060, 0.044715
        %v1065 = vmul.f32 %v1064, %v1060
        %v1066 = vmul.f32 %v1065, %v1060
        %v1067 = vadd.f32 %v1060, %v1066
        %v1068 = vmul.f32 %v1067, 0.7978846
        %v1069 = vtanh.pop %v1068
        %v1070 = vadd.f32 %v1069, 1.0
        %v1071 = vmul.f32 %v1063, %v1070
        %v1072 = vld [vmem:[#allocation4] sm:$0xff]
        %v1073 = vpack.c.bf16 %v1071, %v1071
        %v1074 = vld [vmem:[%s658] sm:$0xf]
        %v1075 = vld [vmem:[%s658 + $0x4] sm:$0xf]
        %v1076 = vld [vmem:[%s658 + $0x8] sm:$0xf]
        %v1077 = vld [vmem:[%s658 + $0xc] sm:$0xf]
        %v1078 = vld [vmem:[%s658 + $0x10] sm:$0xf]
        %v1079 = vld [vmem:[%s658 + $0x14] sm:$0xf]
        %v1080 = vld [vmem:[%s658 + $0x18] sm:$0xf]
        %v1081 = vld [vmem:[%s658 + $0x1c] sm:$0xf]
        %v1090 = vunpack.c.l.b16 %v1074
        %v1091 = vunpack.c.l.b16 %v1075
        %v1092 = vunpack.c.l.b16 %v1076
        %v1093 = vunpack.c.l.b16 %v1077
        %v1094 = vunpack.c.l.b16 %v1078
        %v1095 = vunpack.c.l.b16 %v1079
        %v1096 = vunpack.c.l.b16 %v1080
        %v1097 = vunpack.c.l.b16 %v1081
        %v1098 = vpack.c.b16 %v1091, %v1090
        %v1099 = vpack.c.b16 %v1093, %v1092
        %v1100 = vpack.c.b16 %v1095, %v1094
        %v1101 = vpack.c.b16 %v1097, %v1096
        %vm1106 = vcmask 523264
        %v1108 = vsel %vm1106, %v1073, 0
        %1110 = vmatpush.bf16.msra.mxu0 0
        %1111 = vmatpush.bf16.msra.mxu0 0
        %1112 = vmatpush.bf16.msra.mxu0 0
        %1113 = vmatpush.bf16.msra.mxu0 0
        %1114 = vmatpush.bf16.msra.mxu0 %v1101
        %1115 = vmatpush.bf16.msra.mxu0 %v1100
        %1116 = vmatpush.bf16.msra.mxu0 %v1099
        %1117 = vmatpush.bf16.msra.mxu0 %v1098
        %1118 = vmatmul.bf16.gmra.mxu0 %v1108
        %v1119 = vpop.f32.mrf.mxu0
        %v1120 = vadd.f32 0.0, %v1119
        %v1121 = vpop.f32.mrf.mxu0
        %1122 = vdwg.mxu0
        %v1123 = vadd.f32 %v1072, %v1120
        %1124 = vst.msk [vmem:[#allocation4] sm:$0xff] %vm1046, %v1123
        // Predicated region
        $region85: #{decoder_forward.3} parent=79 // pred_check
          %p1125 = pneg %p661
        $region86: #{decoder_forward.3} parent=79 // pred_check_branch
          %1127 = sbr.rel (%p1125) target = $region88
        $region87: #{decoder_forward.3} parent=79 // pred_region
          %v1128 = vld [vmem:[#allocation2] sm:$0xff]
          %v1129 = vld [vmem:[#allocation4] sm:$0xff]
          %v1130 = vadd.f32 %v1128, %v1129
          %v1131 = vld [vmem:[%s12] sm:$0x1]
          %v1133 = vperm.slane %v1131, 0
          %v1135 = vadd.f32 %v1130, %v1133
          %v1136 = vld [vmem:[%s13] sm:$0x1]
          %v1137 = vld [vmem:[%s14] sm:$0x1]
          %v1138 = vsel %vm1046, %v1135, 0.0
          %1139 = vadd.xlane.f32.xlu0 %v1138
          %v1140 = vpop.xlane.xlu0 %1139
          %v1141 = vrcp.pop 32.0
          %v1142 = vmul.f32 32.0, %v1141
          %v1143 = vsub.f32 1.0, %v1142
          %v1144 = vmul.f32 %v1141, %v1143
          %v1145 = vadd.f32 %v1141, %v1144
          %vm1146 = vweird.f32 %v1141
          %v1147 = vsel %vm1146, %v1141, %v1145
          %v1148 = vmul.f32 %v1140, %v1147
          %v1149 = vsub.f32 %v1135, %v1148
          %v1150 = vmul.f32 %v1149, %v1149
          %v1151 = vsel %vm1046, %v1150, 0.0
          %1152 = vadd.xlane.f32.xlu0 %v1151
          %v1153 = vpop.xlane.xlu0 %1152
          %v1154 = vmul.f32 %v1153, %v1147
          %v1155 = vadd.f32 %v1154, 1e-05
          %v1156 = vrsqrt.pop %v1155
          %v1157 = vmul.f32 %v1156, %v1155
          %v1158 = vmul.f32 %v1157, %v1156
          %v1159 = vmul.f32 0.5, %v1158
          %v1160 = vsub.f32 1.5, %v1159
          %v1161 = vmul.f32 %v1156, %v1160
          %vm1162 = vweird.f32 %v1155
          %vm1163 = vweird.f32 %v1156
          %vm1164 = vmor %vm1162, %vm1163
          %v1165 = vsel %vm1164, %v1156, %v1161
          %v1166 = vmul.f32 %v1149, %v1165
          %v1168 = vperm.slane %v1136, 0
          %v1170 = vmul.f32 %v1166, %v1168
          %v1172 = vperm.slane %v1137, 0
          %v1174 = vadd.f32 %v1170, %v1172
          %1175 = vst.msk [vmem:[%s618] sm:$0xff] %vm1046, %v1174
        $region88: #{decoder_forward.3} parent=79 // pred_fallthru
          _
        %s1176 = sand.u32 %s417, 1
        %s1177 = scalar_lea.sflag [#allocation6], %s1176
        %s1178 = sand.u32 %s417, 1
        %s1179 = smul.addr %s1178, 8
        %s1180 = scalar_lea.vmem [#allocation5], %s1179
        // Predicated region
        $region89: #{decoder_forward.3} parent=79 // pred_check
          %p1181 = pneg %p427
        $region90: #{decoder_forward.3} parent=79 // pred_check_branch
          %1183 = sbr.rel (%p1181) target = $region92
        $region91: #{decoder_forward.3} parent=79 // pred_region
          %1185 = vsyncadd %s1177, 0
          %s1186 = sadd.s32 %s35, %s34
          %s1187 = smul.addr %s1186, 8
          %s1188 = scalar_lea.hbm %s15, %s1187
          %s1190 = sshll.u32 %s1180, 4
          %s1191 = int_to_ptr.vmem [resolvable:$true] %s1190
          %s1192 = sshll.u32 %s1188, 4
          %s1193 = int_to_ptr.hbm [resolvable:$true] %s1192
          %1195 = dma.vmem_to_hbm [thread:$0]  %s1191, 128, %s1193, %s1177
        $region92: #{decoder_forward.3} parent=79 // pred_fallthru
          _
      $region80: #{decoder_forward.3} parent=5 // pred_fallthru
        _
      %p1196 = scmp.le.s32.totalorder 2, %s24
      // Predicated region
      $region93: #{decoder_forward.3} parent=5 // pred_check
        %p1197 = pneg %p1196
      $region94: #{decoder_forward.3} parent=5 // pred_check_branch
        %1199 = sbr.rel (%p1197) target = $region96
      $region95: #{decoder_forward.3} parent=5 // pred_region
        %s1200 = ssub.s32 %s24, 2
        // Predicated region
        $region97: #{decoder_forward.3} parent=95 // pred_check
          %p1201 = pneg %p433
        $region98: #{decoder_forward.3} parent=95 // pred_check_branch
          %1203 = sbr.rel (%p1201) target = $region100
        $region99: #{decoder_forward.3} parent=95 // pred_region
          %s1204 = sand.u32 %s418, 1
          %s1205 = scalar_lea.sflag [#allocation6], %s1204
          %s1206 = sand.u32 %s418, 1
          %s1207 = smul.addr %s1206, 8
          %s1208 = scalar_lea.vmem [#allocation5], %s1207
          %1210 = dma.done %s1205, 128
        $region100: #{decoder_forward.3} parent=95 // pred_fallthru
          _
      $region96: #{decoder_forward.3} parent=5 // pred_fallthru
        _
    $region6: #{decoder_forward.3} parent=1 // loop_footer
      %s28 = sadd.s32 1, %s24
    $region7: #{decoder_forward.3} parent=1 // loop_footer_branch
      %23 = sbr.rel target = $region3
    $region8: #{decoder_forward.3} parent=1 // loop_exit
      _
    %1211 = vsyncpa [#allocation6], 1
    %s1212 = scalar_lea.sflag [#allocation6], 1
    %1213 = vsyncpa %s1212, 1

// kernel: decoder_forward.2
$region0: #{decoder_forward.2}
  #allocation0 [shape = 'u32[]', space=smem, size = 0x4, offset = 0x4, fixed_abs, tag = 'smem constant byte address 0x4 - core index']
  #allocation1 [shape = 'u32[72,128]{1,0:T(1,128)}', space=vmem, size = 0x9000, scoped, tag = 'internal scratch']
  #allocation2 [shape = 'f32[8,32]{1,0:T(8,128)}', space=vmem, size = 0x1000, scoped, tag = 'scratch operand']
  #allocation3 [shape = 'bf16[8,32]{1,0:T(8,128)(2,1)}', space=vmem, size = 0x800, scoped, tag = 'scratch operand']
  #allocation4 [shape = 'f32[8,32]{1,0:T(8,128)}', space=vmem, size = 0x1000, scoped, tag = 'scratch operand']
  %s0 = inlined_call_operand.vmem [shape: bf16[2,8,32], index: 0, kind: input, shape index: {}]
  %s1 = inlined_call_operand.vmem [shape: bf16[2,4,8,8], index: 1, kind: input, shape index: {}]
  %s2 = inlined_call_operand.vmem [shape: bf16[2,4,8,8], index: 2, kind: input, shape index: {}]
  %s3 = inlined_call_operand.vmem [shape: bf16[2,4,8,8], index: 3, kind: input, shape index: {}]
  %s4 = inlined_call_operand.vmem [shape: f32[2,1,8], index: 4, kind: input, shape index: {}]
  %s5 = inlined_call_operand.vmem [shape: bf16[4,8,32], index: 5, kind: input, shape index: {}]
  %s6 = inlined_call_operand.vmem [shape: f32[1,32], index: 6, kind: input, shape index: {}]
  %s7 = inlined_call_operand.vmem [shape: f32[1,32], index: 7, kind: input, shape index: {}]
  %s8 = inlined_call_operand.vmem [shape: f32[1,32], index: 8, kind: input, shape index: {}]
  %s9 = inlined_call_operand.vmem [shape: bf16[32,64], index: 9, kind: input, shape index: {}]
  %s10 = inlined_call_operand.vmem [shape: f32[1,64], index: 10, kind: input, shape index: {}]
  %s11 = inlined_call_operand.vmem [shape: bf16[64,32], index: 11, kind: input, shape index: {}]
  %s12 = inlined_call_operand.vmem [shape: f32[1,32], index: 12, kind: input, shape index: {}]
  %s13 = inlined_call_operand.vmem [shape: f32[1,32], index: 13, kind: input, shape index: {}]
  %s14 = inlined_call_operand.vmem [shape: f32[1,32], index: 14, kind: input, shape index: {}]
  %s15 = inlined_call_operand.vmem [shape: f32[2,8,32], index: 15, kind: output, shape index: {}]
  %s16 = sld [smem:[#allocation0]]
  $region101: #{decoder_forward.2} parent=0
    _
  %s18 = ssub.s32 1, %s16
  %s19 = scalar_select 0, %s18, %s16
  loop: start=0, step=1, limit=4
  $region2: #{decoder_forward.2} parent=0 // loop_pre_header
    _
  $region3: #{decoder_forward.2} parent=0 // loop_header
    %s21 = sphi 0, %s25
    %p22 = scmp.ge.s32.totalorder %s21, 4
    %s28 = sphi 0, %s47
    %s29 = sphi 0, %s43
    %s30 = sphi 0, %s39
    %s31 = sphi 0, %s28
    %s32 = sphi 0, %s29
    %s33 = sphi 0, %s30
    %s34 = sphi 0, %s31
    %s35 = sphi 0, %s32
    %s36 = sphi 0, %s33
    %s52 = sphi 0, %s54
    %s55 = sphi 0, %s52
    %s56 = sphi 0, %s55
    %s72 = sphi 0, %s56
    %s80 = sphi 0, %s82
    %s83 = sphi 0, %s80
    %s84 = sphi 0, %s83
    %s100 = sphi 0, %s84
    %s106 = sphi 0, %s108
    %s109 = sphi 0, %s106
    %s110 = sphi 0, %s109
    %s126 = sphi 0, %s110
    %s132 = sphi 0, %s134
    %s135 = sphi 0, %s132
    %s136 = sphi 0, %s135
    %s152 = sphi 0, %s136
    %s158 = sphi 0, %s160
    %s161 = sphi 0, %s158
    %s162 = sphi 0, %s161
    %s178 = sphi 0, %s162
    %s182 = sphi 0, %s182
    %s184 = sphi 0, %s182
    %s185 = sphi 0, %s184
    %s199 = sphi 0, %s185
    %s203 = sphi 0, %s203
    %s205 = sphi 0, %s203
    %s206 = sphi 0, %s205
    %s220 = sphi 0, %s206
    %s224 = sphi 0, %s224
    %s226 = sphi 0, %s224
    %s227 = sphi 0, %s226
    %s241 = sphi 0, %s227
    %s245 = sphi 0, %s245
    %s247 = sphi 0, %s245
    %s248 = sphi 0, %s247
    %s262 = sphi 0, %s248
    %s268 = sphi 0, %s270
    %s271 = sphi 0, %s268
    %s272 = sphi 0, %s271
    %s288 = sphi 0, %s272
    %s294 = sphi 0, %s296
    %s297 = sphi 0, %s294
    %s298 = sphi 0, %s297
    %s314 = sphi 0, %s298
    %s320 = sphi 0, %s322
    %s323 = sphi 0, %s320
    %s324 = sphi 0, %s323
    %s340 = sphi 0, %s324
    %s344 = sphi 0, %s344
    %s346 = sphi 0, %s344
    %s347 = sphi 0, %s346
    %s361 = sphi 0, %s347
    %s365 = sphi 0, %s365
    %s367 = sphi 0, %s365
    %s368 = sphi 0, %s367
    %s382 = sphi 0, %s368
    %s386 = sphi 0, %s386
    %s388 = sphi 0, %s386
    %s389 = sphi 0, %s388
    %s403 = sphi 0, %s389
    %s411 = sphi 0, %s413
    %s414 = sphi 0, %s411
    %s415 = sphi 0, %s414
    %s431 = sphi 0, %s415
  $region4: #{decoder_forward.2} parent=0 // loop_header_branch
    %24 = sbr.rel (%p22) target = $region8
  $region5: #{decoder_forward.2} parent=0 // loop_body
    %s26 = ssub.s32 %s21, 1
    %s27 = ssub.s32 %s21, 2
    %s37 = sadd.s32 1, %s30
    %p38 = scmp.ge.s32.totalorder %s37, 1
    %s39 = scalar_select %p38, 0, %s37
    %s40 = sadd.s32 1, %s29
    %s41 = scalar_select %p38, %s40, %s29
    %p42 = scmp.ge.s32.totalorder %s41, 1
    %s43 = scalar_select %p42, 0, %s41
    %s44 = sadd.s32 1, %s28
    %s45 = scalar_select %p42, %s44, %s28
    %p46 = scmp.ge.s32.totalorder %s45, 2
    %s47 = scalar_select %p46, 0, %s45
    %s48 = ssub.s32 %s28, %s47
    %s49 = ssub.s32 %s29, %s43
    %s50 = sor.u32 %s48, %s49
    %p51 = scmp.eq.s32.totalorder %s50, 0
    %s53 = sadd.s32 %s52, 1
    %s54 = scalar_select %p51, %s52, %s53
    %p57 = pneg %p51
    %p58 = scmp.eq.s32.totalorder %s21, 1
    %p59 = por %p57, %p58
    %p60 = scmp.ne.s32.totalorder %s52, %s55
    %p61 = scmp.eq.s32.totalorder %s21, 0
    %p62 = por %p60, %p61
    %p63 = scmp.ne.s32.totalorder %s52, %s55
    %p64 = scmp.eq.s32.totalorder %s26, 1
    %p65 = por %p63, %p64
    %p66 = scmp.ne.s32.totalorder %s55, %s56
    %p67 = scmp.eq.s32.totalorder %s26, 0
    %p68 = por %p66, %p67
    %p69 = scmp.ne.s32.totalorder %s55, %s56
    %p70 = scmp.eq.s32.totalorder %s27, 1
    %p71 = por %p69, %p70
    %p73 = scmp.ne.s32.totalorder %s56, %s72
    %p74 = scmp.eq.s32.totalorder %s27, 0
    %p75 = por %p73, %p74
    %s76 = ssub.s32 %s28, %s47
    %s77 = ssub.s32 %s29, %s43
    %s78 = sor.u32 %s76, %s77
    %p79 = scmp.eq.s32.totalorder %s78, 0
    %s81 = sadd.s32 %s80, 1
    %s82 = scalar_select %p79, %s80, %s81
    %p85 = pneg %p79
    %p86 = scmp.eq.s32.totalorder %s21, 1
    %p87 = por %p85, %p86
    %p88 = scmp.ne.s32.totalorder %s80, %s83
    %p89 = scmp.eq.s32.totalorder %s21, 0
    %p90 = por %p88, %p89
    %p91 = scmp.ne.s32.totalorder %s80, %s83
    %p92 = scmp.eq.s32.totalorder %s26, 1
    %p93 = por %p91, %p92
    %p94 = scmp.ne.s32.totalorder %s83, %s84
    %p95 = scmp.eq.s32.totalorder %s26, 0
    %p96 = por %p94, %p95
    %p97 = scmp.ne.s32.totalorder %s83, %s84
    %p98 = scmp.eq.s32.totalorder %s27, 1
    %p99 = por %p97, %p98
    %p101 = scmp.ne.s32.totalorder %s84, %s100
    %p102 = scmp.eq.s32.totalorder %s27, 0
    %p103 = por %p101, %p102
    %s104 = ssub.s32 %s28, %s47
    %p105 = scmp.eq.s32.totalorder %s104, 0
    %s107 = sadd.s32 %s106, 1
    %s108 = scalar_select %p105, %s106, %s107
    %p111 = pneg %p105
    %p112 = scmp.eq.s32.totalorder %s21, 1
    %p113 = por %p111, %p112
    %p114 = scmp.ne.s32.totalorder %s106, %s109
    %p115 = scmp.eq.s32.totalorder %s21, 0
    %p116 = por %p114, %p115
    %p117 = scmp.ne.s32.totalorder %s106, %s109
    %p118 = scmp.eq.s32.totalorder %s26, 1
    %p119 = por %p117, %p118
    %p120 = scmp.ne.s32.totalorder %s109, %s110
    %p121 = scmp.eq.s32.totalorder %s26, 0
    %p122 = por %p120, %p121
    %p123 = scmp.ne.s32.totalorder %s109, %s110
    %p124 = scmp.eq.s32.totalorder %s27, 1
    %p125 = por %p123, %p124
    %p127 = scmp.ne.s32.totalorder %s110, %s126
    %p128 = scmp.eq.s32.totalorder %s27, 0
    %p129 = por %p127, %p128
    %s130 = ssub.s32 %s28, %s47
    %p131 = scmp.eq.s32.totalorder %s130, 0
    %s133 = sadd.s32 %s132, 1
    %s134 = scalar_select %p131, %s132, %s133
    %p137 = pneg %p131
    %p138 = scmp.eq.s32.totalorder %s21, 1
    %p139 = por %p137, %p138
    %p140 = scmp.ne.s32.totalorder %s132, %s135
    %p141 = scmp.eq.s32.totalorder %s21, 0
    %p142 = por %p140, %p141
    %p143 = scmp.ne.s32.totalorder %s132, %s135
    %p144 = scmp.eq.s32.totalorder %s26, 1
    %p145 = por %p143, %p144
    %p146 = scmp.ne.s32.totalorder %s135, %s136
    %p147 = scmp.eq.s32.totalorder %s26, 0
    %p148 = por %p146, %p147
    %p149 = scmp.ne.s32.totalorder %s135, %s136
    %p150 = scmp.eq.s32.totalorder %s27, 1
    %p151 = por %p149, %p150
    %p153 = scmp.ne.s32.totalorder %s136, %s152
    %p154 = scmp.eq.s32.totalorder %s27, 0
    %p155 = por %p153, %p154
    %s156 = ssub.s32 %s28, %s47
    %p157 = scmp.eq.s32.totalorder %s156, 0
    %s159 = sadd.s32 %s158, 1
    %s160 = scalar_select %p157, %s158, %s159
    %p163 = pneg %p157
    %p164 = scmp.eq.s32.totalorder %s21, 1
    %p165 = por %p163, %p164
    %p166 = scmp.ne.s32.totalorder %s158, %s161
    %p167 = scmp.eq.s32.totalorder %s21, 0
    %p168 = por %p166, %p167
    %p169 = scmp.ne.s32.totalorder %s158, %s161
    %p170 = scmp.eq.s32.totalorder %s26, 1
    %p171 = por %p169, %p170
    %p172 = scmp.ne.s32.totalorder %s161, %s162
    %p173 = scmp.eq.s32.totalorder %s26, 0
    %p174 = por %p172, %p173
    %p175 = scmp.ne.s32.totalorder %s161, %s162
    %p176 = scmp.eq.s32.totalorder %s27, 1
    %p177 = por %p175, %p176
    %p179 = scmp.ne.s32.totalorder %s162, %s178
    %p180 = scmp.eq.s32.totalorder %s27, 0
    %p181 = por %p179, %p180
    %s183 = sadd.s32 %s182, 1
    %p186 = scmp.eq.s32.totalorder %s21, 1
    %p187 = scmp.ne.s32.totalorder %s182, %s184
    %p188 = scmp.eq.s32.totalorder %s21, 0
    %p189 = por %p187, %p188
    %p190 = scmp.ne.s32.totalorder %s182, %s184
    %p191 = scmp.eq.s32.totalorder %s26, 1
    %p192 = por %p190, %p191
    %p193 = scmp.ne.s32.totalorder %s184, %s185
    %p194 = scmp.eq.s32.totalorder %s26, 0
    %p195 = por %p193, %p194
    %p196 = scmp.ne.s32.totalorder %s184, %s185
    %p197 = scmp.eq.s32.totalorder %s27, 1
    %p198 = por %p196, %p197
    %p200 = scmp.ne.s32.totalorder %s185, %s199
    %p201 = scmp.eq.s32.totalorder %s27, 0
    %p202 = por %p200, %p201
    %s204 = sadd.s32 %s203, 1
    %p207 = scmp.eq.s32.totalorder %s21, 1
    %p208 = scmp.ne.s32.totalorder %s203, %s205
    %p209 = scmp.eq.s32.totalorder %s21, 0
    %p210 = por %p208, %p209
    %p211 = scmp.ne.s32.totalorder %s203, %s205
    %p212 = scmp.eq.s32.totalorder %s26, 1
    %p213 = por %p211, %p212
    %p214 = scmp.ne.s32.totalorder %s205, %s206
    %p215 = scmp.eq.s32.totalorder %s26, 0
    %p216 = por %p214, %p215
    %p217 = scmp.ne.s32.totalorder %s205, %s206
    %p218 = scmp.eq.s32.totalorder %s27, 1
    %p219 = por %p217, %p218
    %p221 = scmp.ne.s32.totalorder %s206, %s220
    %p222 = scmp.eq.s32.totalorder %s27, 0
    %p223 = por %p221, %p222
    %s225 = sadd.s32 %s224, 1
    %p228 = scmp.eq.s32.totalorder %s21, 1
    %p229 = scmp.ne.s32.totalorder %s224, %s226
    %p230 = scmp.eq.s32.totalorder %s21, 0
    %p231 = por %p229, %p230
    %p232 = scmp.ne.s32.totalorder %s224, %s226
    %p233 = scmp.eq.s32.totalorder %s26, 1
    %p234 = por %p232, %p233
    %p235 = scmp.ne.s32.totalorder %s226, %s227
    %p236 = scmp.eq.s32.totalorder %s26, 0
    %p237 = por %p235, %p236
    %p238 = scmp.ne.s32.totalorder %s226, %s227
    %p239 = scmp.eq.s32.totalorder %s27, 1
    %p240 = por %p238, %p239
    %p242 = scmp.ne.s32.totalorder %s227, %s241
    %p243 = scmp.eq.s32.totalorder %s27, 0
    %p244 = por %p242, %p243
    %s246 = sadd.s32 %s245, 1
    %p249 = scmp.eq.s32.totalorder %s21, 1
    %p250 = scmp.ne.s32.totalorder %s245, %s247
    %p251 = scmp.eq.s32.totalorder %s21, 0
    %p252 = por %p250, %p251
    %p253 = scmp.ne.s32.totalorder %s245, %s247
    %p254 = scmp.eq.s32.totalorder %s26, 1
    %p255 = por %p253, %p254
    %p256 = scmp.ne.s32.totalorder %s247, %s248
    %p257 = scmp.eq.s32.totalorder %s26, 0
    %p258 = por %p256, %p257
    %p259 = scmp.ne.s32.totalorder %s247, %s248
    %p260 = scmp.eq.s32.totalorder %s27, 1
    %p261 = por %p259, %p260
    %p263 = scmp.ne.s32.totalorder %s248, %s262
    %p264 = scmp.eq.s32.totalorder %s27, 0
    %p265 = por %p263, %p264
    %s266 = ssub.s32 %s30, %s39
    %p267 = scmp.eq.s32.totalorder %s266, 0
    %s269 = sadd.s32 %s268, 1
    %s270 = scalar_select %p267, %s268, %s269
    %p273 = pneg %p267
    %p274 = scmp.eq.s32.totalorder %s21, 1
    %p275 = por %p273, %p274
    %p276 = scmp.ne.s32.totalorder %s268, %s271
    %p277 = scmp.eq.s32.totalorder %s21, 0
    %p278 = por %p276, %p277
    %p279 = scmp.ne.s32.totalorder %s268, %s271
    %p280 = scmp.eq.s32.totalorder %s26, 1
    %p281 = por %p279, %p280
    %p282 = scmp.ne.s32.totalorder %s271, %s272
    %p283 = scmp.eq.s32.totalorder %s26, 0
    %p284 = por %p282, %p283
    %p285 = scmp.ne.s32.totalorder %s271, %s272
    %p286 = scmp.eq.s32.totalorder %s27, 1
    %p287 = por %p285, %p286
    %p289 = scmp.ne.s32.totalorder %s272, %s288
    %p290 = scmp.eq.s32.totalorder %s27, 0
    %p291 = por %p289, %p290
    %s292 = ssub.s32 %s30, %s39
    %p293 = scmp.eq.s32.totalorder %s292, 0
    %s295 = sadd.s32 %s294, 1
    %s296 = scalar_select %p293, %s294, %s295
    %p299 = pneg %p293
    %p300 = scmp.eq.s32.totalorder %s21, 1
    %p301 = por %p299, %p300
    %p302 = scmp.ne.s32.totalorder %s294, %s297
    %p303 = scmp.eq.s32.totalorder %s21, 0
    %p304 = por %p302, %p303
    %p305 = scmp.ne.s32.totalorder %s294, %s297
    %p306 = scmp.eq.s32.totalorder %s26, 1
    %p307 = por %p305, %p306
    %p308 = scmp.ne.s32.totalorder %s297, %s298
    %p309 = scmp.eq.s32.totalorder %s26, 0
    %p310 = por %p308, %p309
    %p311 = scmp.ne.s32.totalorder %s297, %s298
    %p312 = scmp.eq.s32.totalorder %s27, 1
    %p313 = por %p311, %p312
    %p315 = scmp.ne.s32.totalorder %s298, %s314
    %p316 = scmp.eq.s32.totalorder %s27, 0
    %p317 = por %p315, %p316
    %s318 = ssub.s32 %s30, %s39
    %p319 = scmp.eq.s32.totalorder %s318, 0
    %s321 = sadd.s32 %s320, 1
    %s322 = scalar_select %p319, %s320, %s321
    %p325 = pneg %p319
    %p326 = scmp.eq.s32.totalorder %s21, 1
    %p327 = por %p325, %p326
    %p328 = scmp.ne.s32.totalorder %s320, %s323
    %p329 = scmp.eq.s32.totalorder %s21, 0
    %p330 = por %p328, %p329
    %p331 = scmp.ne.s32.totalorder %s320, %s323
    %p332 = scmp.eq.s32.totalorder %s26, 1
    %p333 = por %p331, %p332
    %p334 = scmp.ne.s32.totalorder %s323, %s324
    %p335 = scmp.eq.s32.totalorder %s26, 0
    %p336 = por %p334, %p335
    %p337 = scmp.ne.s32.totalorder %s323, %s324
    %p338 = scmp.eq.s32.totalorder %s27, 1
    %p339 = por %p337, %p338
    %p341 = scmp.ne.s32.totalorder %s324, %s340
    %p342 = scmp.eq.s32.totalorder %s27, 0
    %p343 = por %p341, %p342
    %s345 = sadd.s32 %s344, 1
    %p348 = scmp.eq.s32.totalorder %s21, 1
    %p349 = scmp.ne.s32.totalorder %s344, %s346
    %p350 = scmp.eq.s32.totalorder %s21, 0
    %p351 = por %p349, %p350
    %p352 = scmp.ne.s32.totalorder %s344, %s346
    %p353 = scmp.eq.s32.totalorder %s26, 1
    %p354 = por %p352, %p353
    %p355 = scmp.ne.s32.totalorder %s346, %s347
    %p356 = scmp.eq.s32.totalorder %s26, 0
    %p357 = por %p355, %p356
    %p358 = scmp.ne.s32.totalorder %s346, %s347
    %p359 = scmp.eq.s32.totalorder %s27, 1
    %p360 = por %p358, %p359
    %p362 = scmp.ne.s32.totalorder %s347, %s361
    %p363 = scmp.eq.s32.totalorder %s27, 0
    %p364 = por %p362, %p363
    %s366 = sadd.s32 %s365, 1
    %p369 = scmp.eq.s32.totalorder %s21, 1
    %p370 = scmp.ne.s32.totalorder %s365, %s367
    %p371 = scmp.eq.s32.totalorder %s21, 0
    %p372 = por %p370, %p371
    %p373 = scmp.ne.s32.totalorder %s365, %s367
    %p374 = scmp.eq.s32.totalorder %s26, 1
    %p375 = por %p373, %p374
    %p376 = scmp.ne.s32.totalorder %s367, %s368
    %p377 = scmp.eq.s32.totalorder %s26, 0
    %p378 = por %p376, %p377
    %p379 = scmp.ne.s32.totalorder %s367, %s368
    %p380 = scmp.eq.s32.totalorder %s27, 1
    %p381 = por %p379, %p380
    %p383 = scmp.ne.s32.totalorder %s368, %s382
    %p384 = scmp.eq.s32.totalorder %s27, 0
    %p385 = por %p383, %p384
    %s387 = sadd.s32 %s386, 1
    %p390 = scmp.eq.s32.totalorder %s21, 1
    %p391 = scmp.ne.s32.totalorder %s386, %s388
    %p392 = scmp.eq.s32.totalorder %s21, 0
    %p393 = por %p391, %p392
    %p394 = scmp.ne.s32.totalorder %s386, %s388
    %p395 = scmp.eq.s32.totalorder %s26, 1
    %p396 = por %p394, %p395
    %p397 = scmp.ne.s32.totalorder %s388, %s389
    %p398 = scmp.eq.s32.totalorder %s26, 0
    %p399 = por %p397, %p398
    %p400 = scmp.ne.s32.totalorder %s388, %s389
    %p401 = scmp.eq.s32.totalorder %s27, 1
    %p402 = por %p400, %p401
    %p404 = scmp.ne.s32.totalorder %s389, %s403
    %p405 = scmp.eq.s32.totalorder %s27, 0
    %p406 = por %p404, %p405
    %s407 = ssub.s32 %s28, %s47
    %s408 = ssub.s32 %s29, %s43
    %s409 = sor.u32 %s407, %s408
    %p410 = scmp.eq.s32.totalorder %s409, 0
    %s412 = sadd.s32 %s411, 1
    %s413 = scalar_select %p410, %s411, %s412
    %p416 = pneg %p410
    %p417 = scmp.eq.s32.totalorder %s21, 1
    %p418 = por %p416, %p417
    %p419 = scmp.ne.s32.totalorder %s411, %s414
    %p420 = scmp.eq.s32.totalorder %s21, 0
    %p421 = por %p419, %p420
    %p422 = scmp.ne.s32.totalorder %s411, %s414
    %p423 = scmp.eq.s32.totalorder %s26, 1
    %p424 = por %p422, %p423
    %p425 = scmp.ne.s32.totalorder %s414, %s415
    %p426 = scmp.eq.s32.totalorder %s26, 0
    %p427 = por %p425, %p426
    %p428 = scmp.ne.s32.totalorder %s414, %s415
    %p429 = scmp.eq.s32.totalorder %s27, 1
    %p430 = por %p428, %p429
    %p432 = scmp.ne.s32.totalorder %s415, %s431
    %p433 = scmp.eq.s32.totalorder %s27, 0
    %p434 = por %p432, %p433
    %p435 = scmp.le.s32.totalorder 1, %s21
    %p436 = scmp.lt.s32.totalorder %s21, 3
    %p437 = pnand %p435, %p436
    %p438 = pneg %p437
    // Predicated region
    $region9: #{decoder_forward.2} parent=5 // pred_check
      _
    $region10: #{decoder_forward.2} parent=5 // pred_check_branch
      %440 = sbr.rel (%p437) target = $region12
    $region11: #{decoder_forward.2} parent=5 // pred_region
      %s441 = ssub.s32 %s21, 1
      // Predicated region
      $region13: #{decoder_forward.2} parent=11 // pred_check
        %p442 = pneg %p195
      $region14: #{decoder_forward.2} parent=11 // pred_check_branch
        %444 = sbr.rel (%p442) target = $region16
      $region15: #{decoder_forward.2} parent=11 // pred_region
        _
      $region16: #{decoder_forward.2} parent=11 // pred_fallthru
        _
      // Predicated region
      $region17: #{decoder_forward.2} parent=11 // pred_check
        %p445 = pneg %p216
      $region18: #{decoder_forward.2} parent=11 // pred_check_branch
        %447 = sbr.rel (%p445) target = $region20
      $region19: #{decoder_forward.2} parent=11 // pred_region
        _
      $region20: #{decoder_forward.2} parent=11 // pred_fallthru
        _
      // Predicated region
      $region21: #{decoder_forward.2} parent=11 // pred_check
        %p448 = pneg %p237
      $region22: #{decoder_forward.2} parent=11 // pred_check_branch
        %450 = sbr.rel (%p448) target = $region24
      $region23: #{decoder_forward.2} parent=11 // pred_region
        _
      $region24: #{decoder_forward.2} parent=11 // pred_fallthru
        _
      // Predicated region
      $region25: #{decoder_forward.2} parent=11 // pred_check
        %p451 = pneg %p258
      $region26: #{decoder_forward.2} parent=11 // pred_check_branch
        %453 = sbr.rel (%p451) target = $region28
      $region27: #{decoder_forward.2} parent=11 // pred_region
        _
      $region28: #{decoder_forward.2} parent=11 // pred_fallthru
        _
      // Predicated region
      $region29: #{decoder_forward.2} parent=11 // pred_check
        %p454 = pneg %p284
      $region30: #{decoder_forward.2} parent=11 // pred_check_branch
        %456 = sbr.rel (%p454) target = $region32
      $region31: #{decoder_forward.2} parent=11 // pred_region
        %p457 = scmp.lt.s32.totalorder %s33, 0
        %s458 = scalar_select %p457, %s33, 0
        %s459 = smul.addr %s458, 4
        %s460 = scalar_lea.vmem %s9, %s459
      $region32: #{decoder_forward.2} parent=11 // pred_fallthru
        _
      // Predicated region
      $region33: #{decoder_forward.2} parent=11 // pred_check
        %p461 = pneg %p310
      $region34: #{decoder_forward.2} parent=11 // pred_check_branch
        %463 = sbr.rel (%p461) target = $region36
      $region35: #{decoder_forward.2} parent=11 // pred_region
        %p464 = scmp.lt.s32.totalorder %s33, 0
        %s465 = scalar_select %p464, %s33, 0
        %s466 = scalar_lea.vmem %s10, %s465
      $region36: #{decoder_forward.2} parent=11 // pred_fallthru
        _
      // Predicated region
      $region37: #{decoder_forward.2} parent=11 // pred_check
        %p467 = pneg %p336
      $region38: #{decoder_forward.2} parent=11 // pred_check_branch
        %469 = sbr.rel (%p467) target = $region40
      $region39: #{decoder_forward.2} parent=11 // pred_region
        %s470 = smul.u32 8, %s33
        %p471 = scmp.lt.s32.totalorder %s470, 7
        %s472 = scalar_select %p471, %s470, 7
        %s473 = smul.addr %s472, 4
        %s474 = scalar_lea.vmem %s11, %s473
        %s475 = smul.u32 8, %s33
      $region40: #{decoder_forward.2} parent=11 // pred_fallthru
        _
      // Predicated region
      $region41: #{decoder_forward.2} parent=11 // pred_check
        %p476 = pneg %p357
      $region42: #{decoder_forward.2} parent=11 // pred_check_branch
        %478 = sbr.rel (%p476) target = $region44
      $region43: #{decoder_forward.2} parent=11 // pred_region
        _
      $region44: #{decoder_forward.2} parent=11 // pred_fallthru
        _
      // Predicated region
      $region45: #{decoder_forward.2} parent=11 // pred_check
        %p479 = pneg %p378
      $region46: #{decoder_forward.2} parent=11 // pred_check_branch
        %481 = sbr.rel (%p479) target = $region48
      $region47: #{decoder_forward.2} parent=11 // pred_region
        _
      $region48: #{decoder_forward.2} parent=11 // pred_fallthru
        _
      // Predicated region
      $region49: #{decoder_forward.2} parent=11 // pred_check
        %p482 = pneg %p399
      $region50: #{decoder_forward.2} parent=11 // pred_check_branch
        %484 = sbr.rel (%p482) target = $region52
      $region51: #{decoder_forward.2} parent=11 // pred_region
        _
      $region52: #{decoder_forward.2} parent=11 // pred_fallthru
        _
    $region12: #{decoder_forward.2} parent=5 // pred_fallthru
      _
    %p485 = scmp.lt.s32.totalorder %s21, 2
    // Predicated region
    $region53: #{decoder_forward.2} parent=5 // pred_check
      %p486 = pneg %p485
    $region54: #{decoder_forward.2} parent=5 // pred_check_branch
      %488 = sbr.rel (%p486) target = $region56
    $region55: #{decoder_forward.2} parent=5 // pred_region
      // Predicated region
      $region57: #{decoder_forward.2} parent=55 // pred_check
        %p489 = pneg %p62
      $region58: #{decoder_forward.2} parent=55 // pred_check_branch
        %491 = sbr.rel (%p489) target = $region60
      $region59: #{decoder_forward.2} parent=55 // pred_region
        %p492 = scmp.lt.s32.totalorder %s28, 1
        %s493 = scalar_select %p492, %s28, 1
        %p494 = scmp.lt.s32.totalorder %s29, 0
        %s495 = scalar_select %p494, %s29, 0
        %s496 = sadd.s32 %s495, %s493
        %s497 = smul.addr %s496, 4
        %s498 = scalar_lea.vmem %s0, %s497
      $region60: #{decoder_forward.2} parent=55 // pred_fallthru
        _
      // Predicated region
      $region61: #{decoder_forward.2} parent=55 // pred_check
        %p499 = pneg %p90
      $region62: #{decoder_forward.2} parent=55 // pred_check_branch
        %501 = sbr.rel (%p499) target = $region64
      $region63: #{decoder_forward.2} parent=55 // pred_region
        %p502 = scmp.lt.s32.totalorder %s28, 1
        %s503 = scalar_select %p502, %s28, 1
        %p504 = scmp.lt.s32.totalorder %s29, 0
        %s505 = scalar_select %p504, %s29, 0
        %s506 = smul.addr %s503, 4
        %s507 = sadd.s32 %s505, %s506
        %s508 = smul.addr %s507, 4
        %s509 = scalar_lea.vmem %s1, %s508
      $region64: #{decoder_forward.2} parent=55 // pred_fallthru
        _
      // Predicated region
      $region65: #{decoder_forward.2} parent=55 // pred_check
        %p510 = pneg %p116
      $region66: #{decoder_forward.2} parent=55 // pred_check_branch
        %512 = sbr.rel (%p510) target = $region68
      $region67: #{decoder_forward.2} parent=55 // pred_region
        %p513 = scmp.lt.s32.totalorder %s28, 1
        %s514 = scalar_select %p513, %s28, 1
        %s515 = smul.addr %s514, 4
        %s516 = smul.addr %s515, 4
        %s517 = scalar_lea.vmem %s2, %s516
      $region68: #{decoder_forward.2} parent=55 // pred_fallthru
        _
      // Predicated region
      $region69: #{decoder_forward.2} parent=55 // pred_check
        %p518 = pneg %p142
      $region70: #{decoder_forward.2} parent=55 // pred_check_branch
        %520 = sbr.rel (%p518) target = $region72
      $region71: #{decoder_forward.2} parent=55 // pred_region
        %p521 = scmp.lt.s32.totalorder %s28, 1
        %s522 = scalar_select %p521, %s28, 1
        %s523 = smul.addr %s522, 4
        %s524 = smul.addr %s523, 4
        %s525 = scalar_lea.vmem %s3, %s524
      $region72: #{decoder_forward.2} parent=55 // pred_fallthru
        _
      // Predicated region
      $region73: #{decoder_forward.2} parent=55 // pred_check
        %p526 = pneg %p168
      $region74: #{decoder_forward.2} parent=55 // pred_check_branch
        %528 = sbr.rel (%p526) target = $region76
      $region75: #{decoder_forward.2} parent=55 // pred_region
        %p529 = scmp.lt.s32.totalorder %s28, 1
        %s530 = scalar_select %p529, %s28, 1
        %s531 = scalar_lea.vmem %s4, %s530
      $region76: #{decoder_forward.2} parent=55 // pred_fallthru
        _
    $region56: #{decoder_forward.2} parent=5 // pred_fallthru
      _
    %p532 = scmp.le.s32.totalorder 1, %s21
    %p533 = scmp.lt.s32.totalorder %s21, 3
    %p534 = pnand %p532, %p533
    %p535 = pneg %p534
    // Predicated region
    $region77: #{decoder_forward.2} parent=5 // pred_check
      _
    $region78: #{decoder_forward.2} parent=5 // pred_check_branch
      %537 = sbr.rel (%p534) target = $region80
    $region79: #{decoder_forward.2} parent=5 // pred_region
      %s538 = ssub.s32 %s21, 1
      %p539 = scmp.lt.s32.totalorder %s31, 1
      %s540 = scalar_select %p539, %s31, 1
      %p541 = scmp.lt.s32.totalorder %s32, 0
      %s542 = scalar_select %p541, %s32, 0
      %s543 = sadd.s32 %s542, %s540
      %s544 = smul.addr %s543, 4
      %s545 = scalar_lea.vmem %s0, %s544
      %p546 = pneg %p68
      %p547 = pneg %p65
      %p548 = scmp.lt.s32.totalorder %s31, 1
      %s549 = scalar_select %p548, %s31, 1
      %p550 = scmp.lt.s32.totalorder %s32, 0
      %s551 = scalar_select %p550, %s32, 0
      %s552 = smul.addr %s549, 4
      %s553 = sadd.s32 %s551, %s552
      %s554 = smul.addr %s553, 4
      %s555 = scalar_lea.vmem %s1, %s554
      %p556 = pneg %p96
      %p557 = pneg %p93
      %p558 = scmp.lt.s32.totalorder %s31, 1
      %s559 = scalar_select %p558, %s31, 1
      %s560 = smul.addr %s559, 4
      %s561 = smul.addr %s560, 4
      %s562 = scalar_lea.vmem %s2, %s561
      %p563 = pneg %p122
      %p564 = pneg %p119
      %p565 = scmp.lt.s32.totalorder %s31, 1
      %s566 = scalar_select %p565, %s31, 1
      %s567 = smul.addr %s566, 4
      %s568 = smul.addr %s567, 4
      %s569 = scalar_lea.vmem %s3, %s568
      %p570 = pneg %p148
      %p571 = pneg %p145
      %p572 = scmp.lt.s32.totalorder %s31, 1
      %s573 = scalar_select %p572, %s31, 1
      %s574 = scalar_lea.vmem %s4, %s573
      %p575 = pneg %p174
      %p576 = pneg %p171
      %p577 = pneg %p195
      %p578 = pneg %p192
      %p579 = pneg %p216
      %p580 = pneg %p213
      %p581 = pneg %p237
      %p582 = pneg %p234
      %p583 = pneg %p258
      %p584 = pneg %p255
      %p585 = scmp.lt.s32.totalorder %s33, 0
      %s586 = scalar_select %p585, %s33, 0
      %s587 = smul.addr %s586, 4
      %s588 = scalar_lea.vmem %s9, %s587
      %p589 = pneg %p284
      %p590 = pneg %p281
      %p591 = scmp.lt.s32.totalorder %s33, 0
      %s592 = scalar_select %p591, %s33, 0
      %s593 = scalar_lea.vmem %s10, %s592
      %p594 = pneg %p310
      %p595 = pneg %p307
      %s596 = smul.u32 8, %s33
      %p597 = scmp.lt.s32.totalorder %s596, 7
      %s598 = scalar_select %p597, %s596, 7
      %s599 = smul.addr %s598, 4
      %s600 = scalar_lea.vmem %s11, %s599
      %p601 = pneg %p336
      %p602 = pneg %p333
      %p603 = pneg %p357
      %p604 = pneg %p354
      %p605 = pneg %p378
      %p606 = pneg %p375
      %p607 = pneg %p399
      %p608 = pneg %p396
      %p609 = pneg %p427
      %p610 = pneg %p424
      %p611 = scmp.lt.s32.totalorder %s31, 1
      %s612 = scalar_select %p611, %s31, 1
      %p613 = scmp.lt.s32.totalorder %s32, 0
      %s614 = scalar_select %p613, %s32, 0
      %s615 = sadd.s32 %s614, %s612
      %s616 = smul.addr %s615, 8
      %s617 = scalar_lea.vmem %s15, %s616
      %p618 = scmp.lt.s32.totalorder %s31, 1
      %s619 = scalar_select %p618, %s31, 1
      %p620 = scmp.lt.s32.totalorder %s32, 0
      %s621 = scalar_select %p620, %s32, 0
      %s622 = sadd.s32 %s621, %s619
      %s623 = smul.addr %s622, 4
      %s624 = scalar_lea.vmem %s0, %s623
      %p625 = scmp.lt.s32.totalorder %s31, 1
      %s626 = scalar_select %p625, %s31, 1
      %p627 = scmp.lt.s32.totalorder %s32, 0
      %s628 = scalar_select %p627, %s32, 0
      %s629 = smul.addr %s626, 4
      %s630 = sadd.s32 %s628, %s629
      %s631 = smul.addr %s630, 4
      %s632 = scalar_lea.vmem %s1, %s631
      %p633 = scmp.lt.s32.totalorder %s31, 1
      %s634 = scalar_select %p633, %s31, 1
      %s635 = smul.addr %s634, 4
      %s636 = smul.addr %s635, 4
      %s637 = scalar_lea.vmem %s2, %s636
      %p638 = scmp.lt.s32.totalorder %s31, 1
      %s639 = scalar_select %p638, %s31, 1
      %s640 = smul.addr %s639, 4
      %s641 = smul.addr %s640, 4
      %s642 = scalar_lea.vmem %s3, %s641
      %p643 = scmp.lt.s32.totalorder %s31, 1
      %s644 = scalar_select %p643, %s31, 1
      %s645 = scalar_lea.vmem %s4, %s644
      %p646 = scmp.lt.s32.totalorder %s33, 0
      %s647 = scalar_select %p646, %s33, 0
      %s648 = smul.addr %s647, 4
      %s649 = scalar_lea.vmem %s9, %s648
      %p650 = scmp.lt.s32.totalorder %s33, 0
      %s651 = scalar_select %p650, %s33, 0
      %s652 = scalar_lea.vmem %s10, %s651
      %s653 = smul.u32 8, %s33
      %p654 = scmp.lt.s32.totalorder %s653, 7
      %s655 = scalar_select %p654, %s653, 7
      %s656 = smul.addr %s655, 4
      %s657 = scalar_lea.vmem %s11, %s656
      %s658 = smul.u32 8, %s33
      %p659 = scmp.lt.s32.totalorder %s31, 1
      %s660 = scalar_select %p659, %s31, 1
      %p661 = scmp.lt.s32.totalorder %s32, 0
      %s662 = scalar_select %p661, %s32, 0
      %s663 = sadd.s32 %s662, %s660
      %s664 = smul.addr %s663, 8
      %s665 = scalar_lea.vmem %s15, %s664
      %p667 = scmp.eq.s32.totalorder %s33, 0
      // Predicated region
      $region81: #{decoder_forward.2} parent=79 // pred_check
        %p668 = pneg %p667
      $region82: #{decoder_forward.2} parent=79 // pred_check_branch
        %670 = sbr.rel (%p668) target = $region84
      $region83: #{decoder_forward.2} parent=79 // pred_region
        %v671 = vld [vmem:[%s632] sm:$0xf]
        %v672 = vld [vmem:[%s632 + $0x4] sm:$0xf]
        %v673 = vld [vmem:[%s632 + $0x8] sm:$0xf]
        %v674 = vld [vmem:[%s632 + $0xc] sm:$0xf]
        %v675 = vld [vmem:[%s637] sm:$0xf]
        %v676 = vld [vmem:[%s637 + $0x4] sm:$0xf]
        %v677 = vld [vmem:[%s637 + $0x8] sm:$0xf]
        %v678 = vld [vmem:[%s637 + $0xc] sm:$0xf]
        %v679 = vld [vmem:[%s645] sm:$0x1]
        %v681 = vperm.slane %v679, 0
        %vm683 = vcmask 64512
        %v685 = vsel %vm683, %v671, 0
        %v688 = vsel %vm683, %v675, 0
        %690 = vmatpush.bf16.xpose.msra.mxu0 0
        %691 = vmatpush.bf16.xpose.msra.mxu0 0
        %692 = vmatpush.bf16.xpose.msra.mxu0 0
        %693 = vmatpush.bf16.xpose.msra.mxu0 0
        %694 = vmatpush.bf16.xpose.msra.mxu0 0
        %695 = vmatpush.bf16.xpose.msra.mxu0 0
        %696 = vmatpush.bf16.xpose.msra.mxu0 0
        %697 = vmatpush.bf16.xpose.msra.mxu0 %v688
        %698 = vmatmul.bf16.gmra.mxu0 %v685
        %v699 = vpop.f32.mrf.mxu0
        %v700 = vadd.f32 %v681, %v699
        %v701 = vpop.f32.mrf.mxu0
        %702 = vdwg.mxu0
        %v704 = vsel %vm683, %v672, 0
        %v707 = vsel %vm683, %v676, 0
        %709 = vmatpush.bf16.xpose.msra.mxu0 0
        %710 = vmatpush.bf16.xpose.msra.mxu0 0
        %711 = vmatpush.bf16.xpose.msra.mxu0 0
        %712 = vmatpush.bf16.xpose.msra.mxu0 0
        %713 = vmatpush.bf16.xpose.msra.mxu0 0
        %714 = vmatpush.bf16.xpose.msra.mxu0 0
        %715 = vmatpush.bf16.xpose.msra.mxu0 0
        %716 = vmatpush.bf16.xpose.msra.mxu0 %v707
        %717 = vmatmul.bf16.gmra.mxu0 %v704
        %v718 = vpop.f32.mrf.mxu0
        %v719 = vadd.f32 %v681, %v718
        %v720 = vpop.f32.mrf.mxu0
        %721 = vdwg.mxu0
        %v723 = vsel %vm683, %v673, 0
        %v726 = vsel %vm683, %v677, 0
        %728 = vmatpush.bf16.xpose.msra.mxu0 0
        %729 = vmatpush.bf16.xpose.msra.mxu0 0
        %730 = vmatpush.bf16.xpose.msra.mxu0 0
        %731 = vmatpush.bf16.xpose.msra.mxu0 0
        %732 = vmatpush.bf16.xpose.msra.mxu0 0
        %733 = vmatpush.bf16.xpose.msra.mxu0 0
        %734 = vmatpush.bf16.xpose.msra.mxu0 0
        %735 = vmatpush.bf16.xpose.msra.mxu0 %v726
        %736 = vmatmul.bf16.gmra.mxu0 %v723
        %v737 = vpop.f32.mrf.mxu0
        %v738 = vadd.f32 %v681, %v737
        %v739 = vpop.f32.mrf.mxu0
        %740 = vdwg.mxu0
        %v742 = vsel %vm683, %v674, 0
        %v745 = vsel %vm683, %v678, 0
        %747 = vmatpush.bf16.xpose.msra.mxu0 0
        %748 = vmatpush.bf16.xpose.msra.mxu0 0
        %749 = vmatpush.bf16.xpose.msra.mxu0 0
        %750 = vmatpush.bf16.xpose.msra.mxu0 0
        %751 = vmatpush.bf16.xpose.msra.mxu0 0
        %752 = vmatpush.bf16.xpose.msra.mxu0 0
        %753 = vmatpush.bf16.xpose.msra.mxu0 0
        %754 = vmatpush.bf16.xpose.msra.mxu0 %v745
        %755 = vmatmul.bf16.gmra.mxu0 %v742
        %v756 = vpop.f32.mrf.mxu0
        %v757 = vadd.f32 %v681, %v756
        %v758 = vpop.f32.mrf.mxu0
        %759 = vdwg.mxu0
        %v760 = vsel %vm683, %v700, -inf
        %761 = vmax.xlane.f32.xlu0 %v760
        %v762 = vpop.xlane.xlu0 %761
        %v763 = vsel %vm683, %v719, -inf
        %764 = vmax.xlane.f32.xlu0 %v763
        %v765 = vpop.xlane.xlu0 %764
        %v766 = vsel %vm683, %v738, -inf
        %767 = vmax.xlane.f32.xlu0 %v766
        %v768 = vpop.xlane.xlu0 %767
        %v769 = vsel %vm683, %v757, -inf
        %770 = vmax.xlane.f32.xlu0 %v769
        %v771 = vpop.xlane.xlu0 %770
        %v772 = vsub.f32 %v700, %v762
        %v773 = vsub.f32 %v719, %v765
        %v774 = vsub.f32 %v738, %v768
        %v775 = vsub.f32 %v757, %v771
        %v776 = vmul.f32 %v772, 1.442695
        %v777 = vpow.pop %v776
        %v778 = vmul.f32 %v773, 1.442695
        %v779 = vpow.pop %v778
        %v780 = vmul.f32 %v774, 1.442695
        %v781 = vpow.pop %v780
        %v782 = vmul.f32 %v775, 1.442695
        %v783 = vpow.pop %v782
        %v784 = vsel %vm683, %v777, 0.0
        %785 = vadd.xlane.f32.xlu0 %v784
        %v786 = vpop.xlane.xlu0 %785
        %v787 = vsel %vm683, %v779, 0.0
        %788 = vadd.xlane.f32.xlu0 %v787
        %v789 = vpop.xlane.xlu0 %788
        %v790 = vsel %vm683, %v781, 0.0
        %791 = vadd.xlane.f32.xlu0 %v790
        %v792 = vpop.xlane.xlu0 %791
        %v793 = vsel %vm683, %v783, 0.0
        %794 = vadd.xlane.f32.xlu0 %v793
        %v795 = vpop.xlane.xlu0 %794
        %v796 = vpack.c.bf16 %v777, %v777
        %v797 = vpack.c.bf16 %v779, %v779
        %v798 = vpack.c.bf16 %v781, %v781
        %v799 = vpack.c.bf16 %v783, %v783
        %v800 = vld [vmem:[%s642] sm:$0xf]
        %v801 = vld [vmem:[%s642 + $0x4] sm:$0xf]
        %v802 = vld [vmem:[%s642 + $0x8] sm:$0xf]
        %v803 = vld [vmem:[%s642 + $0xc] sm:$0xf]
        %v805 = vsel %vm683, %v796, 0
        %vm807 = vcmask 1043456
        %v809 = vsel %vm807, %v800, 0
        %811 = vmatpush.bf16.msra.mxu0 0
        %812 = vmatpush.bf16.msra.mxu0 0
        %813 = vmatpush.bf16.msra.mxu0 0
        %814 = vmatpush.bf16.msra.mxu0 0
        %815 = vmatpush.bf16.msra.mxu0 0
        %816 = vmatpush.bf16.msra.mxu0 0
        %817 = vmatpush.bf16.msra.mxu0 0
        %818 = vmatpush.bf16.msra.mxu0 %v809
        %819 = vmatmul.bf16.gmra.mxu0 %v805
        %v820 = vpop.f32.mrf.mxu0
        %v821 = vadd.f32 0.0, %v820
        %v822 = vpop.f32.mrf.mxu0
        %823 = vdwg.mxu0
        %v825 = vsel %vm683, %v797, 0
        %v828 = vsel %vm807, %v801, 0
        %830 = vmatpush.bf16.msra.mxu0 0
        %831 = vmatpush.bf16.msra.mxu0 0
        %832 = vmatpush.bf16.msra.mxu0 0
        %833 = vmatpush.bf16.msra.mxu0 0
        %834 = vmatpush.bf16.msra.mxu0 0
        %835 = vmatpush.bf16.msra.mxu0 0
        %836 = vmatpush.bf16.msra.mxu0 0
        %837 = vmatpush.bf16.msra.mxu0 %v828
        %838 = vmatmul.bf16.gmra.mxu0 %v825
        %v839 = vpop.f32.mrf.mxu0
        %v840 = vadd.f32 0.0, %v839
        %v841 = vpop.f32.mrf.mxu0
        %842 = vdwg.mxu0
        %v844 = vsel %vm683, %v798, 0
        %v847 = vsel %vm807, %v802, 0
        %849 = vmatpush.bf16.msra.mxu0 0
        %850 = vmatpush.bf16.msra.mxu0 0
        %851 = vmatpush.bf16.msra.mxu0 0
        %852 = vmatpush.bf16.msra.mxu0 0
        %853 = vmatpush.bf16.msra.mxu0 0
        %854 = vmatpush.bf16.msra.mxu0 0
        %855 = vmatpush.bf16.msra.mxu0 0
        %856 = vmatpush.bf16.msra.mxu0 %v847
        %857 = vmatmul.bf16.gmra.mxu0 %v844
        %v858 = vpop.f32.mrf.mxu0
        %v859 = vadd.f32 0.0, %v858
        %v860 = vpop.f32.mrf.mxu0
        %861 = vdwg.mxu0
        %v863 = vsel %vm683, %v799, 0
        %v866 = vsel %vm807, %v803, 0
        %868 = vmatpush.bf16.msra.mxu0 0
        %869 = vmatpush.bf16.msra.mxu0 0
        %870 = vmatpush.bf16.msra.mxu0 0
        %871 = vmatpush.bf16.msra.mxu0 0
        %872 = vmatpush.bf16.msra.mxu0 0
        %873 = vmatpush.bf16.msra.mxu0 0
        %874 = vmatpush.bf16.msra.mxu0 0
        %875 = vmatpush.bf16.msra.mxu0 %v866
        %876 = vmatmul.bf16.gmra.mxu0 %v863
        %v877 = vpop.f32.mrf.mxu0
        %v878 = vadd.f32 0.0, %v877
        %v879 = vpop.f32.mrf.mxu0
        %880 = vdwg.mxu0
        %v881 = vrcp.pop %v786
        %v882 = vrcp.pop %v789
        %v883 = vrcp.pop %v792
        %v884 = vrcp.pop %v795
        %v885 = vmul.f32 %v821, %v881
        %v886 = vmul.f32 %v840, %v882
        %v887 = vmul.f32 %v859, %v883
        %v888 = vmul.f32 %v878, %v884
        %v889 = vpack.c.bf16 %v885, %v885
        %v890 = vpack.c.bf16 %v886, %v886
        %v891 = vpack.c.bf16 %v887, %v887
        %v892 = vpack.c.bf16 %v888, %v888
        %v893 = vld [vmem:[%s5] sm:$0xf]
        %s894 = scalar_lea.vmem %s5, 4
        %v895 = vld [vmem:[%s894] sm:$0xf]
        %v897 = vsel %vm683, %v890, 0
        %v900 = vsel %vm807, %v895, 0
        %902 = vmatpush.bf16.msra.mxu0 0
        %903 = vmatpush.bf16.msra.mxu0 0
        %904 = vmatpush.bf16.msra.mxu0 0
        %905 = vmatpush.bf16.msra.mxu0 0
        %906 = vmatpush.bf16.msra.mxu0 0
        %907 = vmatpush.bf16.msra.mxu0 0
        %908 = vmatpush.bf16.msra.mxu0 0
        %909 = vmatpush.bf16.msra.mxu0 %v900
        %910 = vmatmul.bf16.gmra.mxu0 %v897
        %v911 = vpop.f32.mrf.mxu0
        %v912 = vadd.f32 0.0, %v911
        %v913 = vpop.f32.mrf.mxu0
        %914 = vdwg.mxu0
        %v916 = vsel %vm683, %v889, 0
        %v919 = vsel %vm807, %v893, 0
        %921 = vmatpush.bf16.msra.mxu0 0
        %922 = vmatpush.bf16.msra.mxu0 0
        %923 = vmatpush.bf16.msra.mxu0 0
        %924 = vmatpush.bf16.msra.mxu0 0
        %925 = vmatpush.bf16.msra.mxu0 0
        %926 = vmatpush.bf16.msra.mxu0 0
        %927 = vmatpush.bf16.msra.mxu0 0
        %928 = vmatpush.bf16.msra.mxu0 %v919
        %929 = vmatmul.bf16.gmra.mxu0 %v916
        %v930 = vpop.f32.mrf.mxu0
        %v931 = vadd.f32 %v912, %v930
        %v932 = vpop.f32.mrf.mxu0
        %933 = vdwg.mxu0
        %s934 = scalar_lea.vmem %s5, 8
        %v935 = vld [vmem:[%s934] sm:$0xf]
        %v937 = vsel %vm683, %v891, 0
        %v940 = vsel %vm807, %v935, 0
        %942 = vmatpush.bf16.msra.mxu0 0
        %943 = vmatpush.bf16.msra.mxu0 0
        %944 = vmatpush.bf16.msra.mxu0 0
        %945 = vmatpush.bf16.msra.mxu0 0
        %946 = vmatpush.bf16.msra.mxu0 0
        %947 = vmatpush.bf16.msra.mxu0 0
        %948 = vmatpush.bf16.msra.mxu0 0
        %949 = vmatpush.bf16.msra.mxu0 %v940
        %950 = vmatmul.bf16.gmra.mxu0 %v937
        %v951 = vpop.f32.mrf.mxu0
        %v952 = vadd.f32 0.0, %v951
        %v953 = vpop.f32.mrf.mxu0
        %954 = vdwg.mxu0
        %v955 = vadd.f32 %v931, %v952
        %s956 = scalar_lea.vmem %s5, 12
        %v957 = vld [vmem:[%s956] sm:$0xf]
        %v959 = vsel %vm683, %v892, 0
        %v962 = vsel %vm807, %v957, 0
        %964 = vmatpush.bf16.msra.mxu0 0
        %965 = vmatpush.bf16.msra.mxu0 0
        %966 = vmatpush.bf16.msra.mxu0 0
        %967 = vmatpush.bf16.msra.mxu0 0
        %968 = vmatpush.bf16.msra.mxu0 0
        %969 = vmatpush.bf16.msra.mxu0 0
        %970 = vmatpush.bf16.msra.mxu0 0
        %971 = vmatpush.bf16.msra.mxu0 %v962
        %972 = vmatmul.bf16.gmra.mxu0 %v959
        %v973 = vpop.f32.mrf.mxu0
        %v974 = vadd.f32 0.0, %v973
        %v975 = vpop.f32.mrf.mxu0
        %976 = vdwg.mxu0
        %v977 = vadd.f32 %v955, %v974
        %v978 = vld [vmem:[%s6] sm:$0x1]
        %v980 = vperm.slane %v978, 0
        %v982 = vadd.f32 %v977, %v980
        %v983 = vld [vmem:[%s624] sm:$0xf]
        %v984 = vunpack.c.l.bf16 %v983
        %v985 = vadd.f32 %v984, %v982
        %v986 = vld [vmem:[%s7] sm:$0x1]
        %v987 = vld [vmem:[%s8] sm:$0x1]
        %vm988 = vcmask 261120
        %v989 = vsel %vm988, %v985, 0.0
        %990 = vadd.xlane.f32.xlu0 %v989
        %v991 = vpop.xlane.xlu0 %990
        %v992 = vrcp.pop 32.0
        %v993 = vmul.f32 32.0, %v992
        %v994 = vsub.f32 1.0, %v993
        %v995 = vmul.f32 %v992, %v994
        %v996 = vadd.f32 %v992, %v995
        %vm997 = vweird.f32 %v992
        %v998 = vsel %vm997, %v992, %v996
        %v999 = vmul.f32 %v991, %v998
        %v1000 = vsub.f32 %v985, %v999
        %v1001 = vmul.f32 %v1000, %v1000
        %v1002 = vsel %vm988, %v1001, 0.0
        %1003 = vadd.xlane.f32.xlu0 %v1002
        %v1004 = vpop.xlane.xlu0 %1003
        %v1005 = vmul.f32 %v1004, %v998
        %v1006 = vadd.f32 %v1005, 1e-05
        %v1007 = vrsqrt.pop %v1006
        %v1008 = vmul.f32 %v1007, %v1006
        %v1009 = vmul.f32 %v1008, %v1007
        %v1010 = vmul.f32 0.5, %v1009
        %v1011 = vsub.f32 1.5, %v1010
        %v1012 = vmul.f32 %v1007, %v1011
        %vm1013 = vweird.f32 %v1006
        %vm1014 = vweird.f32 %v1007
        %vm1015 = vmor %vm1013, %vm1014
        %v1016 = vsel %vm1015, %v1007, %v1012
        %v1017 = vmul.f32 %v1000, %v1016
        %v1019 = vperm.slane %v986, 0
        %v1021 = vmul.f32 %v1017, %v1019
        %v1023 = vperm.slane %v987, 0
        %v1025 = vadd.f32 %v1021, %v1023
        %1026 = vst.msk [vmem:[#allocation2] sm:$0xff] %vm988, %v1025
        %v1027 = vpack.c.bf16 %v1025, %v1025
        %vm1028 = vcmask 257024
        %1029 = vst.msk [vmem:[#allocation3] sm:$0xf] %vm1028, %v1027
        %1030 = vst.msk [vmem:[#allocation4] sm:$0xff] %vm988, 0.0
      $region84: #{decoder_forward.2} parent=79 // pred_fallthru
        _
      %v1031 = vld [vmem:[#allocation3] sm:$0xf]
      %v1032 = vld [vmem:[%s649] sm:$0xf]
      %v1033 = vld [vmem:[%s649 + $0x4] sm:$0xf]
      %v1034 = vld [vmem:[%s649 + $0x8] sm:$0xf]
      %v1035 = vld [vmem:[%s649 + $0xc] sm:$0xf]
      %v1036 = vld [vmem:[%s652] sm:$0x1]
      %v1038 = vperm.slane %v1036, 0
      %v1044 = vunpack.c.l.b16 %v1032
      %v1045 = vunpack.c.l.b16 %v1033
      %v1046 = vunpack.c.l.b16 %v1034
      %v1047 = vunpack.c.l.b16 %v1035
      %v1048 = vpack.c.b16 %v1045, %v1044
      %v1049 = vpack.c.b16 %v1047, %v1046
      %vm1052 = vcmask 261120
      %v1054 = vsel %vm1052, %v1031, 0
      %1056 = vmatpush.bf16.msra.mxu0 0
      %1057 = vmatpush.bf16.msra.mxu0 0
      %1058 = vmatpush.bf16.msra.mxu0 0
      %1059 = vmatpush.bf16.msra.mxu0 0
      %1060 = vmatpush.bf16.msra.mxu0 0
      %1061 = vmatpush.bf16.msra.mxu0 0
      %1062 = vmatpush.bf16.msra.mxu0 %v1049
      %1063 = vmatpush.bf16.msra.mxu0 %v1048
      %1064 = vmatmul.bf16.gmra.mxu0 %v1054
      %v1065 = vpop.f32.mrf.mxu0
      %v1066 = vadd.f32 %v1038, %v1065
      %v1067 = vpop.f32.mrf.mxu0
      %1068 = vdwg.mxu0
      %v1069 = vmul.f32 %v1066, 0.5
      %v1070 = vmul.f32 %v1066, 0.044715
      %v1071 = vmul.f32 %v1070, %v1066
      %v1072 = vmul.f32 %v1071, %v1066
      %v1073 = vadd.f32 %v1066, %v1072
      %v1074 = vmul.f32 %v1073, 0.7978846
      %v1075 = vtanh.pop %v1074
      %v1076 = vadd.f32 %v1075, 1.0
      %v1077 = vmul.f32 %v1069, %v1076
      %v1078 = vld [vmem:[#allocation4] sm:$0xff]
      %v1079 = vpack.c.bf16 %v1077, %v1077
      %v1080 = vld [vmem:[%s657] sm:$0xf]
      %v1081 = vld [vmem:[%s657 + $0x4] sm:$0xf]
      %v1082 = vld [vmem:[%s657 + $0x8] sm:$0xf]
      %v1083 = vld [vmem:[%s657 + $0xc] sm:$0xf]
      %v1084 = vld [vmem:[%s657 + $0x10] sm:$0xf]
      %v1085 = vld [vmem:[%s657 + $0x14] sm:$0xf]
      %v1086 = vld [vmem:[%s657 + $0x18] sm:$0xf]
      %v1087 = vld [vmem:[%s657 + $0x1c] sm:$0xf]
      %v1096 = vunpack.c.l.b16 %v1080
      %v1097 = vunpack.c.l.b16 %v1081
      %v1098 = vunpack.c.l.b16 %v1082
      %v1099 = vunpack.c.l.b16 %v1083
      %v1100 = vunpack.c.l.b16 %v1084
      %v1101 = vunpack.c.l.b16 %v1085
      %v1102 = vunpack.c.l.b16 %v1086
      %v1103 = vunpack.c.l.b16 %v1087
      %v1104 = vpack.c.b16 %v1097, %v1096
      %v1105 = vpack.c.b16 %v1099, %v1098
      %v1106 = vpack.c.b16 %v1101, %v1100
      %v1107 = vpack.c.b16 %v1103, %v1102
      %vm1112 = vcmask 523264
      %v1114 = vsel %vm1112, %v1079, 0
      %1116 = vmatpush.bf16.msra.mxu0 0
      %1117 = vmatpush.bf16.msra.mxu0 0
      %1118 = vmatpush.bf16.msra.mxu0 0
      %1119 = vmatpush.bf16.msra.mxu0 0
      %1120 = vmatpush.bf16.msra.mxu0 %v1107
      %1121 = vmatpush.bf16.msra.mxu0 %v1106
      %1122 = vmatpush.bf16.msra.mxu0 %v1105
      %1123 = vmatpush.bf16.msra.mxu0 %v1104
      %1124 = vmatmul.bf16.gmra.mxu0 %v1114
      %v1125 = vpop.f32.mrf.mxu0
      %v1126 = vadd.f32 0.0, %v1125
      %v1127 = vpop.f32.mrf.mxu0
      %1128 = vdwg.mxu0
      %v1129 = vadd.f32 %v1078, %v1126
      %1130 = vst.msk [vmem:[#allocation4] sm:$0xff] %vm1052, %v1129
      // Predicated region
      $region85: #{decoder_forward.2} parent=79 // pred_check
        %p1131 = pneg %p667
      $region86: #{decoder_forward.2} parent=79 // pred_check_branch
        %1133 = sbr.rel (%p1131) target = $region88
      $region87: #{decoder_forward.2} parent=79 // pred_region
        %v1134 = vld [vmem:[#allocation2] sm:$0xff]
        %v1135 = vld [vmem:[#allocation4] sm:$0xff]
        %v1136 = vadd.f32 %v1134, %v1135
        %v1137 = vld [vmem:[%s12] sm:$0x1]
        %v1139 = vperm.slane %v1137, 0
        %v1141 = vadd.f32 %v1136, %v1139
        %v1142 = vld [vmem:[%s13] sm:$0x1]
        %v1143 = vld [vmem:[%s14] sm:$0x1]
        %v1144 = vsel %vm1052, %v1141, 0.0
        %1145 = vadd.xlane.f32.xlu0 %v1144
        %v1146 = vpop.xlane.xlu0 %1145
        %v1147 = vrcp.pop 32.0
        %v1148 = vmul.f32 32.0, %v1147
        %v1149 = vsub.f32 1.0, %v1148
        %v1150 = vmul.f32 %v1147, %v1149
        %v1151 = vadd.f32 %v1147, %v1150
        %vm1152 = vweird.f32 %v1147
        %v1153 = vsel %vm1152, %v1147, %v1151
        %v1154 = vmul.f32 %v1146, %v1153
        %v1155 = vsub.f32 %v1141, %v1154
        %v1156 = vmul.f32 %v1155, %v1155
        %v1157 = vsel %vm1052, %v1156, 0.0
        %1158 = vadd.xlane.f32.xlu0 %v1157
        %v1159 = vpop.xlane.xlu0 %1158
        %v1160 = vmul.f32 %v1159, %v1153
        %v1161 = vadd.f32 %v1160, 1e-05
        %v1162 = vrsqrt.pop %v1161
        %v1163 = vmul.f32 %v1162, %v1161
        %v1164 = vmul.f32 %v1163, %v1162
        %v1165 = vmul.f32 0.5, %v1164
        %v1166 = vsub.f32 1.5, %v1165
        %v1167 = vmul.f32 %v1162, %v1166
        %vm1168 = vweird.f32 %v1161
        %vm1169 = vweird.f32 %v1162
        %vm1170 = vmor %vm1168, %vm1169
        %v1171 = vsel %vm1170, %v1162, %v1167
        %v1172 = vmul.f32 %v1155, %v1171
        %v1174 = vperm.slane %v1142, 0
        %v1176 = vmul.f32 %v1172, %v1174
        %v1178 = vperm.slane %v1143, 0
        %v1180 = vadd.f32 %v1176, %v1178
        %1181 = vst.msk [vmem:[%s665] sm:$0xff] %vm1052, %v1180
      $region88: #{decoder_forward.2} parent=79 // pred_fallthru
        _
      %p1182 = scmp.lt.s32.totalorder %s31, 1
      %s1183 = scalar_select %p1182, %s31, 1
      %p1184 = scmp.lt.s32.totalorder %s32, 0
      %s1185 = scalar_select %p1184, %s32, 0
      %s1186 = sadd.s32 %s1185, %s1183
      %s1187 = smul.addr %s1186, 8
      %s1188 = scalar_lea.vmem %s15, %s1187
      // Predicated region
      $region89: #{decoder_forward.2} parent=79 // pred_check
        %p1189 = pneg %p424
      $region90: #{decoder_forward.2} parent=79 // pred_check_branch
        %1191 = sbr.rel (%p1189) target = $region92
      $region91: #{decoder_forward.2} parent=79 // pred_region
        _
      $region92: #{decoder_forward.2} parent=79 // pred_fallthru
        _
    $region80: #{decoder_forward.2} parent=5 // pred_fallthru
      _
    %p1192 = scmp.le.s32.totalorder 2, %s21
    // Predicated region
    $region93: #{decoder_forward.2} parent=5 // pred_check
      %p1193 = pneg %p1192
    $region94: #{decoder_forward.2} parent=5 // pred_check_branch
      %1195 = sbr.rel (%p1193) target = $region96
    $region95: #{decoder_forward.2} parent=5 // pred_region
      %s1196 = ssub.s32 %s21, 2
      // Predicated region
      $region97: #{decoder_forward.2} parent=95 // pred_check
        %p1197 = pneg %p430
      $region98: #{decoder_forward.2} parent=95 // pred_check_branch
        %1199 = sbr.rel (%p1197) target = $region100
      $region99: #{decoder_forward.2} parent=95 // pred_region
        %p1200 = scmp.lt.s32.totalorder %s34, 1
        %s1201 = scalar_select %p1200, %s34, 1
        %p1202 = scmp.lt.s32.totalorder %s35, 0
        %s1203 = scalar_select %p1202, %s35, 0
        %s1204 = sadd.s32 %s1203, %s1201
        %s1205 = smul.addr %s1204, 8
        %s1206 = scalar_lea.vmem %s15, %s1205
      $region100: #{decoder_forward.2} parent=95 // pred_fallthru
        _
    $region96: #{decoder_forward.2} parent=5 // pred_fallthru
      _
  $region6: #{decoder_forward.2} parent=0 // loop_footer
    %s25 = sadd.s32 1, %s21
  $region7: #{decoder_forward.2} parent=0 // loop_footer_branch
    %20 = sbr.rel target = $region3
  $region8: #{decoder_forward.2} parent=0 // loop_exit
    _

</llo_original>
